<compile_context>
chip_gen: v6e
topology: v6e:2x2x1
jax: 0.10.0
libtpu: 0.0.40
codegen_flags: <defaults>
</compile_context>

<pallas_src>
import functools

import jax
import jax.numpy as jnp
from jax.experimental import pallas as pl
from jax.experimental.pallas import tpu as pltpu


MXU_DTYPE = jnp.bfloat16   # MXU operand dtype (f32 accumulation everywhere)


# ------------------------------ helpers ------------------------------------

def _round_up(v, m):
    return ((v + m - 1) // m) * m


def _layer_norm(x, g, b, eps=1e-5):
    mu = jnp.mean(x, axis=-1, keepdims=True)
    var = jnp.mean(jnp.square(x - mu), axis=-1, keepdims=True)
    return (x - mu) * jax.lax.rsqrt(var + eps) * g + b


# --------------------------- fused ViT kernel ------------------------------

def _vit_fused_kernel(patches_ref, base_ref, patch_w_ref,
                      ln1_g_ref, ln1_b_ref, wqkv_ref, wp_ref, proj_b_ref,
                      ln2_g_ref, ln2_b_ref, ff_w1_ref, ff_b1_ref,
                      ff_w2_ref, ff_b2_ref,
                      head_g_ref, head_b_ref, head_w_ref, head_bias_ref,
                      o_ref, *, depth, heads, dim_head, n_valid, scale):
    f32 = jnp.float32
    mxu = MXU_DTYPE

    # Patch embedding.  `base` already holds cls+pos on row 0, patch_b+pos on
    # rows 1..n_patches, zeros on padding rows, so this single matmul + add
    # reproduces cat(cls, emb) + pos_embedding.
    x = jnp.dot(patches_ref[0].astype(mxu), patch_w_ref[...],
                preferred_element_type=f32) + base_ref[0]          # (Np, D) f32
    n_tok, dim = x.shape

    # Key-validity mask (padded key columns), hoisted out of the depth loop.
    col = jax.lax.broadcasted_iota(jnp.int32, (heads, n_tok, n_tok), 2)
    key_valid = col < n_valid

    for d in range(depth):                      # static unroll over depth
        # ---- attention sublayer: LN1 -> QKV -> MHA -> proj -> +residual ----
        xn = _layer_norm(x, ln1_g_ref[d], ln1_b_ref[d]).astype(mxu)
        xnb = jnp.broadcast_to(xn, (3 * heads, n_tok, dim))
        # Batched over (qkv, head): no lane-slicing of a wide qkv tensor.
        qkv = jax.lax.dot_general(xnb, wqkv_ref[d],
                                  (((2,), (1,)), ((0,), (0,))),
                                  preferred_element_type=f32)      # (3H,Np,dh)
        q = (qkv[0:heads] * scale).astype(mxu)                     # (H,Np,dh)
        k = qkv[heads:2 * heads].astype(mxu)
        v = qkv[2 * heads:3 * heads].astype(mxu)

        s = jax.lax.dot_general(q, k, (((2,), (2,)), ((0,), (0,))),
                                preferred_element_type=f32)        # (H,Np,Np)
        s = jnp.where(key_valid, s, jnp.float32(-1e30))
        s = s - jnp.max(s, axis=-1, keepdims=True)
        p = jnp.exp(s)
        p = p * pl.reciprocal(jnp.sum(p, axis=-1, keepdims=True), approx=True)

        o = jax.lax.dot_general(p.astype(mxu), v,
                                (((2,), (1,)), ((0,), (0,))),
                                preferred_element_type=f32)        # (H,Np,dh)
        # concat(heads) @ Wp  ==  sum_h  o_h @ Wp_h   (batched, then summed)
        oh = jax.lax.dot_general(o.astype(mxu), wp_ref[d],
                                 (((2,), (1,)), ((0,), (0,))),
                                 preferred_element_type=f32)       # (H,Np,D)
        attn_out = oh[0]
        for h in range(1, heads):
            attn_out = attn_out + oh[h]
        x = x + attn_out + proj_b_ref[d]

        # ---- feed-forward sublayer: LN2 -> FF1 -> GELU -> FF2 -> +residual --
        xn = _layer_norm(x, ln2_g_ref[d], ln2_b_ref[d])
        hdn = jnp.dot(xn.astype(mxu), ff_w1_ref[d],
                      preferred_element_type=f32) + ff_b1_ref[d]
        # exact GELU (matches torch.nn.GELU default); stays in f32
        hdn = 0.5 * hdn * (1.0 + jax.lax.erf(hdn * jnp.float32(0.7071067811865476)))
        x = x + jnp.dot(hdn.astype(mxu), ff_w2_ref[d],
                        preferred_element_type=f32) + ff_b2_ref[d]

    # ---- head: LayerNorm + classifier on CLS token (lane-dense 128 output) --
    cls = _layer_norm(x[0:1, :], head_g_ref[...], head_b_ref[...])
    o_ref[0] = jnp.dot(cls.astype(mxu), head_w_ref[...],
                       preferred_element_type=f32) + head_bias_ref[...]


# ------------------------------- parameters --------------------------------

def init_params(key, cfg):
    dim = cfg["dim"]
    heads = cfg["heads"]
    dim_head = cfg["dim_head"]
    inner = heads * dim_head
    mlp_dim = cfg["mlp_dim"]
    num_classes = cfg["num_classes"]
    ph = pw = cfg["patch_size"]
    channels = cfg["channels"]
    patch_dim = channels * ph * pw
    num_patches = (cfg["image_size"] // ph) * (cfg["image_size"] // pw)

    def nrm(k, shape, std=0.02):
        return std * jax.random.normal(k, shape, dtype=jnp.float32)

    n_keys = 4 + 7 * cfg["depth"] + 2
    keys = jax.random.split(key, n_keys)
    ki = iter(keys)

    params = {
        "patch_w": nrm(next(ki), (patch_dim, dim)),
        "patch_b": nrm(next(ki), (dim,)),
        "cls_token": nrm(next(ki), (1, 1, dim)),
        "pos_embedding": nrm(next(ki), (1, num_patches + 1, dim)),
        "blocks": [],
        "head_ln_g": jnp.ones((dim,), jnp.float32),
        "head_ln_b": jnp.zeros((dim,), jnp.float32),
    }
    for _ in range(cfg["depth"]):
        blk = {
            "ln1_g": jnp.ones((dim,), jnp.float32),
            "ln1_b": jnp.zeros((dim,), jnp.float32),
            "qkv_w": nrm(next(ki), (dim, inner * 3)),          # no bias
            "proj_w": nrm(next(ki), (inner, dim)),
            "proj_b": nrm(next(ki), (dim,)),
            "ln2_g": jnp.ones((dim,), jnp.float32),
            "ln2_b": jnp.zeros((dim,), jnp.float32),
            "ff_w1": nrm(next(ki), (dim, mlp_dim)),
            "ff_b1": nrm(next(ki), (mlp_dim,)),
            "ff_w2": nrm(next(ki), (mlp_dim, dim)),
            "ff_b2": nrm(next(ki), (dim,)),
        }
        params["blocks"].append(blk)
    params["head_w"] = nrm(next(ki), (dim, num_classes))
    params["head_b"] = nrm(next(ki), (num_classes,))
    return params


def prepare_params(params, cfg):
    """One-time repack of torch-style params into kernel-friendly tensors."""
    dim = cfg["dim"]
    heads = cfg["heads"]
    dh = cfg["dim_head"]
    depth = cfg["depth"]
    mlp = cfg["mlp_dim"]
    nc = cfg["num_classes"]
    ph = cfg["patch_size"]
    n_patches = (cfg["image_size"] // ph) * (cfg["image_size"] // ph)
    n_tok = n_patches + 1
    n_pad = _round_up(n_tok, 8)
    c_pad = max(128, _round_up(nc, 128))
    mxu = MXU_DTYPE

    # Token "base": row 0 = cls + pos[0]; rows 1..n_patches = patch_b + pos[i];
    # padded rows = 0.  Added to (padded_patches @ patch_w) inside the kernel.
    rows = jnp.concatenate(
        [params["cls_token"][0],
         jnp.broadcast_to(params["patch_b"][None, :], (n_patches, dim))],
        axis=0)                                                    # (n_tok, D)
    base = rows + params["pos_embedding"][0, :n_tok, :]
    base = jnp.pad(base, ((0, n_pad - n_tok), (0, 0)))[None]       # (1,Np,D)

    def stack(name):
        return jnp.stack([blk[name] for blk in params["blocks"]])

    # QKV weight -> (depth, 3*heads, D, dh); group index g = qkv_idx*heads + h
    qkv_w = stack("qkv_w")                                         # (depth,D,3*inner)
    wqkv = qkv_w.reshape(depth, dim, 3, heads, dh)
    wqkv = wqkv.transpose(0, 2, 3, 1, 4).reshape(depth, 3 * heads, dim, dh)
    # proj weight -> (depth, heads, dh, D)
    wp = stack("proj_w").reshape(depth, heads, dh, dim)

    return dict(
        patch_w=params["patch_w"].astype(mxu),
        base=base,
        ln1_g=stack("ln1_g").reshape(depth, 1, dim),
        ln1_b=stack("ln1_b").reshape(depth, 1, dim),
        wqkv=wqkv.astype(mxu),
        wp=wp.astype(mxu),
        proj_b=stack("proj_b").reshape(depth, 1, dim),
        ln2_g=stack("ln2_g").reshape(depth, 1, dim),
        ln2_b=stack("ln2_b").reshape(depth, 1, dim),
        ff_w1=stack("ff_w1").astype(mxu),
        ff_b1=stack("ff_b1").reshape(depth, 1, mlp),
        ff_w2=stack("ff_w2").astype(mxu),
        ff_b2=stack("ff_b2").reshape(depth, 1, dim),
        head_g=params["head_ln_g"].reshape(1, dim),
        head_b=params["head_ln_b"].reshape(1, dim),
        head_w=jnp.pad(params["head_w"], ((0, 0), (0, c_pad - nc))).astype(mxu),
        head_bias=jnp.pad(params["head_b"], ((0, c_pad - nc),)).reshape(1, c_pad),
    )


# -------------------------------- forward ----------------------------------

def _const_spec(shape):
    ndim = len(shape)
    return pl.BlockSpec(shape, lambda b: (0,) * ndim)


def vit_forward(prep, img, cfg):
    B, C, H, W = img.shape
    ph = pw = cfg["patch_size"]
    gh, gw = H // ph, W // pw
    heads = cfg["heads"]
    dh = cfg["dim_head"]
    depth = cfg["depth"]
    nc = cfg["num_classes"]
    n_patches = gh * gw
    n_tok = n_patches + 1
    n_pad = _round_up(n_tok, 8)
    patch_dim = ph * pw * C
    c_pad = prep["head_w"].shape[1]

    # Rearrange 'b c (h ph) (w pw) -> b (h w) (ph pw c)'; pad the token axis:
    # one zero row in front (cls slot) + tail rows up to a sublane multiple.
    x = img.reshape(B, C, gh, ph, gw, pw).transpose(0, 2, 4, 3, 5, 1)
    x = x.reshape(B, n_patches, patch_dim)
    x = jnp.pad(x, ((0, 0), (1, n_pad - n_tok), (0, 0)))    # (B, Np, patch_dim)

    kern = functools.partial(_vit_fused_kernel, depth=depth, heads=heads,
                             dim_head=dh, n_valid=n_tok, scale=dh ** -0.5)

    operands = (x, prep["base"], prep["patch_w"],
                prep["ln1_g"], prep["ln1_b"], prep["wqkv"], prep["wp"],
                prep["proj_b"], prep["ln2_g"], prep["ln2_b"],
                prep["ff_w1"], prep["ff_b1"], prep["ff_w2"], prep["ff_b2"],
                prep["head_g"], prep["head_b"], prep["head_w"],
                prep["head_bias"])

    in_specs = [pl.BlockSpec((1, n_pad, patch_dim), lambda b: (b, 0, 0))]
    in_specs += [_const_spec(op.shape) for op in operands[1:]]

    logits = pl.pallas_call(
        kern,
        grid=(B,),
        in_specs=in_specs,
        out_specs=pl.BlockSpec((1, 1, c_pad), lambda b: (b, 0, 0)),
        out_shape=jax.ShapeDtypeStruct((B, 1, c_pad), jnp.float32),
        compiler_params=pltpu.CompilerParams(
            dimension_semantics=("parallel",)),
    )(*operands)

    return logits[:, 0, :nc]                                 # (B, num_classes)


# --------------------------- pure-JAX reference -----------------------------

def vit_forward_ref(params, img, cfg):
    B, C, H, W = img.shape
    ph = pw = cfg["patch_size"]
    gh, gw = H // ph, W // pw
    dim, heads, dim_head = cfg["dim"], cfg["heads"], cfg["dim_head"]
    inner = heads * dim_head
    scale = dim_head ** -0.5

    def ln(x, g, b):
        mu = jnp.mean(x, axis=-1, keepdims=True)
        var = jnp.mean(jnp.square(x - mu), axis=-1, keepdims=True)
        return (x - mu) * jax.lax.rsqrt(var + 1e-5) * g + b

    x = img.reshape(B, C, gh, ph, gw, pw).transpose(0, 2, 4, 3, 5, 1)
    x = x.reshape(B, gh * gw, ph * pw * C)
    x = x @ params["patch_w"] + params["patch_b"]
    cls = jnp.broadcast_to(params["cls_token"], (B, 1, dim))
    x = jnp.concatenate([cls, x], axis=1)
    N = x.shape[1]
    x = x + params["pos_embedding"][:, :N, :]
    for blk in params["blocks"]:
        xn = ln(x, blk["ln1_g"], blk["ln1_b"])
        qkv = (xn @ blk["qkv_w"]).reshape(B, N, 3, heads, dim_head)
        qkv = qkv.transpose(2, 0, 3, 1, 4)
        q, k, v = qkv[0] * scale, qkv[1], qkv[2]
        attn = jax.nn.softmax(q @ k.transpose(0, 1, 3, 2), axis=-1)
        out = (attn @ v).transpose(0, 2, 1, 3).reshape(B, N, inner)
        x = x + (out @ blk["proj_w"] + blk["proj_b"])
        xn = ln(x, blk["ln2_g"], blk["ln2_b"])
        hdn = jax.nn.gelu(xn @ blk["ff_w1"] + blk["ff_b1"], approximate=False)
        x = x + (hdn @ blk["ff_w2"] + blk["ff_b2"])
    cls_out = ln(x[:, 0], params["head_ln_g"], params["head_ln_b"])
    return cls_out @ params["head_w"] + params["head_b"]


# ----------------------------------- main -----------------------------------

if __name__ == "__main__":
    cfg = dict(
        image_size=16,
        patch_size=4,
        channels=3,
        num_classes=10,
        dim=64,
        depth=2,
        heads=2,
        dim_head=16,
        mlp_dim=128,
    )
    key = jax.random.PRNGKey(0)
    kp, kx = jax.random.split(key)
    params = init_params(kp, cfg)
    prep = prepare_params(params, cfg)          # one-time weight repack (bf16 etc.)

    # layout: NCHW, matching PyTorch conv/rearrange input convention
    img = jax.random.normal(
        kx, (2, cfg["channels"], cfg["image_size"], cfg["image_size"]),
        dtype=jnp.float32)

    fwd = jax.jit(functools.partial(vit_forward, cfg=cfg))
    logits = jax.block_until_ready(fwd(prep, img))

    ref = jax.block_until_ready(vit_forward_ref(params, img, cfg))
    assert logits.shape == (2, cfg["num_classes"])
    max_err = float(jnp.max(jnp.abs(logits - ref)))
    assert jnp.allclose(logits, ref, atol=2e-2, rtol=2e-2), (
        f"max abs diff {max_err}"
    )

    print("KERNEL_OK")
</pallas_src>

<mosaic_0001>
module attributes {stable_mosaic.version = 11 : i64} {
  func.func @_vit_fused_kernel(%arg0: i32, %arg1: memref<1x24x48xf32, #tpu.memory_space<vmem>>, %arg2: memref<1x24x64xf32, #tpu.memory_space<vmem>>, %arg3: memref<48x64xbf16, #tpu.memory_space<vmem>>, %arg4: memref<2x1x64xf32, #tpu.memory_space<vmem>>, %arg5: memref<2x1x64xf32, #tpu.memory_space<vmem>>, %arg6: memref<2x6x64x16xbf16, #tpu.memory_space<vmem>>, %arg7: memref<2x2x16x64xbf16, #tpu.memory_space<vmem>>, %arg8: memref<2x1x64xf32, #tpu.memory_space<vmem>>, %arg9: memref<2x1x64xf32, #tpu.memory_space<vmem>>, %arg10: memref<2x1x64xf32, #tpu.memory_space<vmem>>, %arg11: memref<2x64x128xbf16, #tpu.memory_space<vmem>>, %arg12: memref<2x1x128xf32, #tpu.memory_space<vmem>>, %arg13: memref<2x128x64xbf16, #tpu.memory_space<vmem>>, %arg14: memref<2x1x64xf32, #tpu.memory_space<vmem>>, %arg15: memref<1x64xf32, #tpu.memory_space<vmem>>, %arg16: memref<1x64xf32, #tpu.memory_space<vmem>>, %arg17: memref<64x128xbf16, #tpu.memory_space<vmem>>, %arg18: memref<1x128xf32, #tpu.memory_space<vmem>>, %arg19: memref<1x1x128xf32, #tpu.memory_space<vmem>>) attributes {dimension_semantics = [#tpu.dimension_semantics<parallel>], iteration_bounds = array<i64: 2>, scalar_prefetch = 0 : i64, scratch_operands = 0 : i64, tpu.core_type = #tpu.core_type<tc>, window_params = [{transform_indices = @transform_0, window_bounds = array<i64: 1, 24, 48>}, {pipeline_mode = #tpu.pipeline_mode<synchronous>, transform_indices = @transform_1, window_bounds = array<i64: 1, 24, 64>}, {pipeline_mode = #tpu.pipeline_mode<synchronous>, transform_indices = @transform_2, window_bounds = array<i64: 48, 64>}, {pipeline_mode = #tpu.pipeline_mode<synchronous>, transform_indices = @transform_3, window_bounds = array<i64: 2, 1, 64>}, {pipeline_mode = #tpu.pipeline_mode<synchronous>, transform_indices = @transform_4, window_bounds = array<i64: 2, 1, 64>}, {pipeline_mode = #tpu.pipeline_mode<synchronous>, transform_indices = @transform_5, window_bounds = array<i64: 2, 6, 64, 16>}, {pipeline_mode = #tpu.pipeline_mode<synchronous>, transform_indices = @transform_6, window_bounds = array<i64: 2, 2, 16, 64>}, {pipeline_mode = #tpu.pipeline_mode<synchronous>, transform_indices = @transform_7, window_bounds = array<i64: 2, 1, 64>}, {pipeline_mode = #tpu.pipeline_mode<synchronous>, transform_indices = @transform_8, window_bounds = array<i64: 2, 1, 64>}, {pipeline_mode = #tpu.pipeline_mode<synchronous>, transform_indices = @transform_9, window_bounds = array<i64: 2, 1, 64>}, {pipeline_mode = #tpu.pipeline_mode<synchronous>, transform_indices = @transform_10, window_bounds = array<i64: 2, 64, 128>}, {pipeline_mode = #tpu.pipeline_mode<synchronous>, transform_indices = @transform_11, window_bounds = array<i64: 2, 1, 128>}, {pipeline_mode = #tpu.pipeline_mode<synchronous>, transform_indices = @transform_12, window_bounds = array<i64: 2, 128, 64>}, {pipeline_mode = #tpu.pipeline_mode<synchronous>, transform_indices = @transform_13, window_bounds = array<i64: 2, 1, 64>}, {pipeline_mode = #tpu.pipeline_mode<synchronous>, transform_indices = @transform_14, window_bounds = array<i64: 1, 64>}, {pipeline_mode = #tpu.pipeline_mode<synchronous>, transform_indices = @transform_15, window_bounds = array<i64: 1, 64>}, {pipeline_mode = #tpu.pipeline_mode<synchronous>, transform_indices = @transform_16, window_bounds = array<i64: 64, 128>}, {pipeline_mode = #tpu.pipeline_mode<synchronous>, transform_indices = @transform_17, window_bounds = array<i64: 1, 128>}, {transform_indices = @transform_18, window_bounds = array<i64: 1, 1, 128>}]} {
    %c0 = arith.constant 0 : index
    %c0_0 = arith.constant 0 : index
    %c0_1 = arith.constant 0 : index
    %0 = vector.load %arg1[%c0, %c0_0, %c0_1] : memref<1x24x48xf32, #tpu.memory_space<vmem>>, vector<1x24x48xf32>
    %1 = vector.shape_cast %0 : vector<1x24x48xf32> to vector<24x48xf32>
    %2 = arith.truncf %1 : vector<24x48xf32> to vector<24x48xbf16>
    %c0_2 = arith.constant 0 : index
    %c0_3 = arith.constant 0 : index
    %3 = vector.load %arg3[%c0_2, %c0_3] : memref<48x64xbf16, #tpu.memory_space<vmem>>, vector<48x64xbf16>
    %cst = arith.constant dense<0.000000e+00> : vector<24x64xf32>
    %4 = tpu.matmul %2, %3, %cst {dimension_numbers = #tpu.dot_dimension_numbers<[1], [0], [0], [1], [0, 0, 1, 1], [], []>} : vector<24x48xbf16>, vector<48x64xbf16>, vector<24x64xf32> -> vector<24x64xf32>
    %c0_4 = arith.constant 0 : index
    %c0_5 = arith.constant 0 : index
    %c0_6 = arith.constant 0 : index
    %5 = vector.load %arg2[%c0_4, %c0_5, %c0_6] : memref<1x24x64xf32, #tpu.memory_space<vmem>>, vector<1x24x64xf32>
    %6 = vector.shape_cast %5 : vector<1x24x64xf32> to vector<24x64xf32>
    %7 = arith.addf %4, %6 : vector<24x64xf32>
    %8 = tpu.iota {dimensions = array<i32: 2>} : vector<2x24x24xi32>
    %c17_i32 = arith.constant 17 : i32
    %9 = vector.broadcast %c17_i32 : i32 to vector<2x24x24xi32>
    %10 = arith.cmpi slt, %8, %9 : vector<2x24x24xi32>
    %c0_7 = arith.constant 0 : index
    %c0_8 = arith.constant 0 : index
    %c0_9 = arith.constant 0 : index
    %11 = vector.load %arg4[%c0_7, %c0_8, %c0_9] : memref<2x1x64xf32, #tpu.memory_space<vmem>>, vector<1x1x64xf32>
    %12 = vector.shape_cast %11 : vector<1x1x64xf32> to vector<1x64xf32>
    %c0_10 = arith.constant 0 : index
    %c0_11 = arith.constant 0 : index
    %c0_12 = arith.constant 0 : index
    %13 = vector.load %arg5[%c0_10, %c0_11, %c0_12] : memref<2x1x64xf32, #tpu.memory_space<vmem>>, vector<1x1x64xf32>
    %14 = vector.shape_cast %13 : vector<1x1x64xf32> to vector<1x64xf32>
    %cst_13 = arith.constant dense<0.000000e+00> : vector<24xf32>
    %15 = vector.multi_reduction <add>, %7, %cst_13 [1] : vector<24x64xf32> to vector<24xf32>
    %16 = vector.shape_cast %15 : vector<24xf32> to vector<24x1xf32>
    %cst_14 = arith.constant 6.400000e+01 : f32
    %17 = vector.broadcast %cst_14 : f32 to vector<24x1xf32>
    %18 = arith.divf %16, %17 : vector<24x1xf32>
    %19 = vector.broadcast %18 : vector<24x1xf32> to vector<24x64xf32>
    %20 = arith.subf %7, %19 : vector<24x64xf32>
    %21 = arith.mulf %20, %20 : vector<24x64xf32>
    %cst_15 = arith.constant dense<0.000000e+00> : vector<24xf32>
    %22 = vector.multi_reduction <add>, %21, %cst_15 [1] : vector<24x64xf32> to vector<24xf32>
    %23 = vector.shape_cast %22 : vector<24xf32> to vector<24x1xf32>
    %cst_16 = arith.constant 6.400000e+01 : f32
    %24 = vector.broadcast %cst_16 : f32 to vector<24x1xf32>
    %25 = arith.divf %23, %24 : vector<24x1xf32>
    %26 = vector.broadcast %18 : vector<24x1xf32> to vector<24x64xf32>
    %27 = arith.subf %7, %26 : vector<24x64xf32>
    %cst_17 = arith.constant 9.99999974E-6 : f32
    %28 = vector.broadcast %cst_17 : f32 to vector<24x1xf32>
    %29 = arith.addf %25, %28 : vector<24x1xf32>
    %30 = math.rsqrt %29 : vector<24x1xf32>
    %31 = vector.broadcast %30 : vector<24x1xf32> to vector<24x64xf32>
    %32 = arith.mulf %27, %31 : vector<24x64xf32>
    %33 = vector.broadcast %12 : vector<1x64xf32> to vector<24x64xf32>
    %34 = arith.mulf %32, %33 : vector<24x64xf32>
    %35 = vector.broadcast %14 : vector<1x64xf32> to vector<24x64xf32>
    %36 = arith.addf %34, %35 : vector<24x64xf32>
    %37 = arith.truncf %36 : vector<24x64xf32> to vector<24x64xbf16>
    %38 = vector.shape_cast %37 : vector<24x64xbf16> to vector<1x24x64xbf16>
    %39 = vector.broadcast %38 : vector<1x24x64xbf16> to vector<6x24x64xbf16>
    %c0_18 = arith.constant 0 : index
    %c0_19 = arith.constant 0 : index
    %c0_20 = arith.constant 0 : index
    %c0_21 = arith.constant 0 : index
    %40 = vector.load %arg6[%c0_18, %c0_19, %c0_20, %c0_21] : memref<2x6x64x16xbf16, #tpu.memory_space<vmem>>, vector<1x6x64x16xbf16>
    %41 = vector.shape_cast %40 : vector<1x6x64x16xbf16> to vector<6x64x16xbf16>
    %cst_22 = arith.constant dense<0.000000e+00> : vector<6x24x16xf32>
    %42 = tpu.matmul %39, %41, %cst_22 {dimension_numbers = #tpu.dot_dimension_numbers<[2], [1], [1], [2], [0, 0, 0, 1, 1, 2], [0], [0]>} : vector<6x24x64xbf16>, vector<6x64x16xbf16>, vector<6x24x16xf32> -> vector<6x24x16xf32>
    %43 = vector.extract_strided_slice %42 {offsets = [0, 0, 0], sizes = [2, 24, 16], strides = [1, 1, 1]} : vector<6x24x16xf32> to vector<2x24x16xf32>
    %cst_23 = arith.constant 2.500000e-01 : f32
    %44 = vector.broadcast %cst_23 : f32 to vector<2x24x16xf32>
    %45 = arith.mulf %43, %44 : vector<2x24x16xf32>
    %46 = arith.truncf %45 : vector<2x24x16xf32> to vector<2x24x16xbf16>
    %47 = vector.extract_strided_slice %42 {offsets = [2, 0, 0], sizes = [2, 24, 16], strides = [1, 1, 1]} : vector<6x24x16xf32> to vector<2x24x16xf32>
    %48 = arith.truncf %47 : vector<2x24x16xf32> to vector<2x24x16xbf16>
    %49 = vector.extract_strided_slice %42 {offsets = [4, 0, 0], sizes = [2, 24, 16], strides = [1, 1, 1]} : vector<6x24x16xf32> to vector<2x24x16xf32>
    %50 = arith.truncf %49 : vector<2x24x16xf32> to vector<2x24x16xbf16>
    %cst_24 = arith.constant dense<0.000000e+00> : vector<2x24x24xf32>
    %51 = tpu.matmul %46, %48, %cst_24 {dimension_numbers = #tpu.dot_dimension_numbers<[2], [2], [1], [1], [0, 0, 0, 1, 1, 1], [0], [0]>} : vector<2x24x16xbf16>, vector<2x24x16xbf16>, vector<2x24x24xf32> -> vector<2x24x24xf32>
    %cst_25 = arith.constant -1.000000e+30 : f32
    %52 = vector.broadcast %cst_25 : f32 to vector<2x24x24xf32>
    %53 = arith.select %10, %51, %52 : vector<2x24x24xi1>, vector<2x24x24xf32>
    %cst_26 = arith.constant dense<0xFF800000> : vector<2x24xf32>
    %54 = vector.multi_reduction <maximumf>, %53, %cst_26 [2] : vector<2x24x24xf32> to vector<2x24xf32>
    %55 = vector.shape_cast %54 : vector<2x24xf32> to vector<2x24x1xf32>
    %56 = vector.broadcast %55 : vector<2x24x1xf32> to vector<2x24x24xf32>
    %57 = arith.subf %53, %56 : vector<2x24x24xf32>
    %58 = math.exp %57 : vector<2x24x24xf32>
    %cst_27 = arith.constant dense<0.000000e+00> : vector<2x24xf32>
    %59 = vector.multi_reduction <add>, %58, %cst_27 [2] : vector<2x24x24xf32> to vector<2x24xf32>
    %60 = vector.shape_cast %59 : vector<2x24xf32> to vector<2x24x1xf32>
    %61 = tpu.reciprocal %60 {approx = true} : vector<2x24x1xf32> -> vector<2x24x1xf32>
    %62 = vector.broadcast %61 : vector<2x24x1xf32> to vector<2x24x24xf32>
    %63 = arith.mulf %58, %62 : vector<2x24x24xf32>
    %64 = arith.truncf %63 : vector<2x24x24xf32> to vector<2x24x24xbf16>
    %cst_28 = arith.constant dense<0.000000e+00> : vector<2x24x16xf32>
    %65 = tpu.matmul %64, %50, %cst_28 {dimension_numbers = #tpu.dot_dimension_numbers<[2], [1], [1], [2], [0, 0, 0, 1, 1, 2], [0], [0]>} : vector<2x24x24xbf16>, vector<2x24x16xbf16>, vector<2x24x16xf32> -> vector<2x24x16xf32>
    %66 = arith.truncf %65 : vector<2x24x16xf32> to vector<2x24x16xbf16>
    %c0_29 = arith.constant 0 : index
    %c0_30 = arith.constant 0 : index
    %c0_31 = arith.constant 0 : index
    %c0_32 = arith.constant 0 : index
    %67 = vector.load %arg7[%c0_29, %c0_30, %c0_31, %c0_32] : memref<2x2x16x64xbf16, #tpu.memory_space<vmem>>, vector<1x2x16x64xbf16>
    %68 = vector.shape_cast %67 : vector<1x2x16x64xbf16> to vector<2x16x64xbf16>
    %cst_33 = arith.constant dense<0.000000e+00> : vector<2x24x64xf32>
    %69 = tpu.matmul %66, %68, %cst_33 {dimension_numbers = #tpu.dot_dimension_numbers<[2], [1], [1], [2], [0, 0, 0, 1, 1, 2], [0], [0]>} : vector<2x24x16xbf16>, vector<2x16x64xbf16>, vector<2x24x64xf32> -> vector<2x24x64xf32>
    %70 = vector.extract_strided_slice %69 {offsets = [0, 0, 0], sizes = [1, 24, 64], strides = [1, 1, 1]} : vector<2x24x64xf32> to vector<1x24x64xf32>
    %71 = vector.shape_cast %70 : vector<1x24x64xf32> to vector<24x64xf32>
    %72 = vector.extract_strided_slice %69 {offsets = [1, 0, 0], sizes = [1, 24, 64], strides = [1, 1, 1]} : vector<2x24x64xf32> to vector<1x24x64xf32>
    %73 = vector.shape_cast %72 : vector<1x24x64xf32> to vector<24x64xf32>
    %74 = arith.addf %71, %73 : vector<24x64xf32>
    %75 = arith.addf %7, %74 : vector<24x64xf32>
    %c0_34 = arith.constant 0 : index
    %c0_35 = arith.constant 0 : index
    %c0_36 = arith.constant 0 : index
    %76 = vector.load %arg8[%c0_34, %c0_35, %c0_36] : memref<2x1x64xf32, #tpu.memory_space<vmem>>, vector<1x1x64xf32>
    %77 = vector.shape_cast %76 : vector<1x1x64xf32> to vector<1x64xf32>
    %78 = vector.broadcast %77 : vector<1x64xf32> to vector<24x64xf32>
    %79 = arith.addf %75, %78 : vector<24x64xf32>
    %c0_37 = arith.constant 0 : index
    %c0_38 = arith.constant 0 : index
    %c0_39 = arith.constant 0 : index
    %80 = vector.load %arg9[%c0_37, %c0_38, %c0_39] : memref<2x1x64xf32, #tpu.memory_space<vmem>>, vector<1x1x64xf32>
    %81 = vector.shape_cast %80 : vector<1x1x64xf32> to vector<1x64xf32>
    %c0_40 = arith.constant 0 : index
    %c0_41 = arith.constant 0 : index
    %c0_42 = arith.constant 0 : index
    %82 = vector.load %arg10[%c0_40, %c0_41, %c0_42] : memref<2x1x64xf32, #tpu.memory_space<vmem>>, vector<1x1x64xf32>
    %83 = vector.shape_cast %82 : vector<1x1x64xf32> to vector<1x64xf32>
    %cst_43 = arith.constant dense<0.000000e+00> : vector<24xf32>
    %84 = vector.multi_reduction <add>, %79, %cst_43 [1] : vector<24x64xf32> to vector<24xf32>
    %85 = vector.shape_cast %84 : vector<24xf32> to vector<24x1xf32>
    %cst_44 = arith.constant 6.400000e+01 : f32
    %86 = vector.broadcast %cst_44 : f32 to vector<24x1xf32>
    %87 = arith.divf %85, %86 : vector<24x1xf32>
    %88 = vector.broadcast %87 : vector<24x1xf32> to vector<24x64xf32>
    %89 = arith.subf %79, %88 : vector<24x64xf32>
    %90 = arith.mulf %89, %89 : vector<24x64xf32>
    %cst_45 = arith.constant dense<0.000000e+00> : vector<24xf32>
    %91 = vector.multi_reduction <add>, %90, %cst_45 [1] : vector<24x64xf32> to vector<24xf32>
    %92 = vector.shape_cast %91 : vector<24xf32> to vector<24x1xf32>
    %cst_46 = arith.constant 6.400000e+01 : f32
    %93 = vector.broadcast %cst_46 : f32 to vector<24x1xf32>
    %94 = arith.divf %92, %93 : vector<24x1xf32>
    %95 = vector.broadcast %87 : vector<24x1xf32> to vector<24x64xf32>
    %96 = arith.subf %79, %95 : vector<24x64xf32>
    %cst_47 = arith.constant 9.99999974E-6 : f32
    %97 = vector.broadcast %cst_47 : f32 to vector<24x1xf32>
    %98 = arith.addf %94, %97 : vector<24x1xf32>
    %99 = math.rsqrt %98 : vector<24x1xf32>
    %100 = vector.broadcast %99 : vector<24x1xf32> to vector<24x64xf32>
    %101 = arith.mulf %96, %100 : vector<24x64xf32>
    %102 = vector.broadcast %81 : vector<1x64xf32> to vector<24x64xf32>
    %103 = arith.mulf %101, %102 : vector<24x64xf32>
    %104 = vector.broadcast %83 : vector<1x64xf32> to vector<24x64xf32>
    %105 = arith.addf %103, %104 : vector<24x64xf32>
    %106 = arith.truncf %105 : vector<24x64xf32> to vector<24x64xbf16>
    %c0_48 = arith.constant 0 : index
    %c0_49 = arith.constant 0 : index
    %c0_50 = arith.constant 0 : index
    %107 = vector.load %arg11[%c0_48, %c0_49, %c0_50] : memref<2x64x128xbf16, #tpu.memory_space<vmem>>, vector<1x64x128xbf16>
    %108 = vector.shape_cast %107 : vector<1x64x128xbf16> to vector<64x128xbf16>
    %cst_51 = arith.constant dense<0.000000e+00> : vector<24x128xf32>
    %109 = tpu.matmul %106, %108, %cst_51 {dimension_numbers = #tpu.dot_dimension_numbers<[1], [0], [0], [1], [0, 0, 1, 1], [], []>} : vector<24x64xbf16>, vector<64x128xbf16>, vector<24x128xf32> -> vector<24x128xf32>
    %c0_52 = arith.constant 0 : index
    %c0_53 = arith.constant 0 : index
    %c0_54 = arith.constant 0 : index
    %110 = vector.load %arg12[%c0_52, %c0_53, %c0_54] : memref<2x1x128xf32, #tpu.memory_space<vmem>>, vector<1x1x128xf32>
    %111 = vector.shape_cast %110 : vector<1x1x128xf32> to vector<1x128xf32>
    %112 = vector.broadcast %111 : vector<1x128xf32> to vector<24x128xf32>
    %113 = arith.addf %109, %112 : vector<24x128xf32>
    %cst_55 = arith.constant 5.000000e-01 : f32
    %114 = vector.broadcast %cst_55 : f32 to vector<24x128xf32>
    %115 = arith.mulf %114, %113 : vector<24x128xf32>
    %cst_56 = arith.constant 0.707106769 : f32
    %116 = vector.broadcast %cst_56 : f32 to vector<24x128xf32>
    %117 = arith.mulf %113, %116 : vector<24x128xf32>
    %118 = math.erf %117 : vector<24x128xf32>
    %cst_57 = arith.constant 1.000000e+00 : f32
    %119 = vector.broadcast %cst_57 : f32 to vector<24x128xf32>
    %120 = arith.addf %119, %118 : vector<24x128xf32>
    %121 = arith.mulf %115, %120 : vector<24x128xf32>
    %122 = arith.truncf %121 : vector<24x128xf32> to vector<24x128xbf16>
    %c0_58 = arith.constant 0 : index
    %c0_59 = arith.constant 0 : index
    %c0_60 = arith.constant 0 : index
    %123 = vector.load %arg13[%c0_58, %c0_59, %c0_60] : memref<2x128x64xbf16, #tpu.memory_space<vmem>>, vector<1x128x64xbf16>
    %124 = vector.shape_cast %123 : vector<1x128x64xbf16> to vector<128x64xbf16>
    %cst_61 = arith.constant dense<0.000000e+00> : vector<24x64xf32>
    %125 = tpu.matmul %122, %124, %cst_61 {dimension_numbers = #tpu.dot_dimension_numbers<[1], [0], [0], [1], [0, 0, 1, 1], [], []>} : vector<24x128xbf16>, vector<128x64xbf16>, vector<24x64xf32> -> vector<24x64xf32>
    %126 = arith.addf %79, %125 : vector<24x64xf32>
    %c0_62 = arith.constant 0 : index
    %c0_63 = arith.constant 0 : index
    %c0_64 = arith.constant 0 : index
    %127 = vector.load %arg14[%c0_62, %c0_63, %c0_64] : memref<2x1x64xf32, #tpu.memory_space<vmem>>, vector<1x1x64xf32>
    %128 = vector.shape_cast %127 : vector<1x1x64xf32> to vector<1x64xf32>
    %129 = vector.broadcast %128 : vector<1x64xf32> to vector<24x64xf32>
    %130 = arith.addf %126, %129 : vector<24x64xf32>
    %c1 = arith.constant 1 : index
    %c0_65 = arith.constant 0 : index
    %c0_66 = arith.constant 0 : index
    %131 = vector.load %arg4[%c1, %c0_65, %c0_66] : memref<2x1x64xf32, #tpu.memory_space<vmem>>, vector<1x1x64xf32>
    %132 = vector.shape_cast %131 : vector<1x1x64xf32> to vector<1x64xf32>
    %c1_67 = arith.constant 1 : index
    %c0_68 = arith.constant 0 : index
    %c0_69 = arith.constant 0 : index
    %133 = vector.load %arg5[%c1_67, %c0_68, %c0_69] : memref<2x1x64xf32, #tpu.memory_space<vmem>>, vector<1x1x64xf32>
    %134 = vector.shape_cast %133 : vector<1x1x64xf32> to vector<1x64xf32>
    %cst_70 = arith.constant dense<0.000000e+00> : vector<24xf32>
    %135 = vector.multi_reduction <add>, %130, %cst_70 [1] : vector<24x64xf32> to vector<24xf32>
    %136 = vector.shape_cast %135 : vector<24xf32> to vector<24x1xf32>
    %cst_71 = arith.constant 6.400000e+01 : f32
    %137 = vector.broadcast %cst_71 : f32 to vector<24x1xf32>
    %138 = arith.divf %136, %137 : vector<24x1xf32>
    %139 = vector.broadcast %138 : vector<24x1xf32> to vector<24x64xf32>
    %140 = arith.subf %130, %139 : vector<24x64xf32>
    %141 = arith.mulf %140, %140 : vector<24x64xf32>
    %cst_72 = arith.constant dense<0.000000e+00> : vector<24xf32>
    %142 = vector.multi_reduction <add>, %141, %cst_72 [1] : vector<24x64xf32> to vector<24xf32>
    %143 = vector.shape_cast %142 : vector<24xf32> to vector<24x1xf32>
    %cst_73 = arith.constant 6.400000e+01 : f32
    %144 = vector.broadcast %cst_73 : f32 to vector<24x1xf32>
    %145 = arith.divf %143, %144 : vector<24x1xf32>
    %146 = vector.broadcast %138 : vector<24x1xf32> to vector<24x64xf32>
    %147 = arith.subf %130, %146 : vector<24x64xf32>
    %cst_74 = arith.constant 9.99999974E-6 : f32
    %148 = vector.broadcast %cst_74 : f32 to vector<24x1xf32>
    %149 = arith.addf %145, %148 : vector<24x1xf32>
    %150 = math.rsqrt %149 : vector<24x1xf32>
    %151 = vector.broadcast %150 : vector<24x1xf32> to vector<24x64xf32>
    %152 = arith.mulf %147, %151 : vector<24x64xf32>
    %153 = vector.broadcast %132 : vector<1x64xf32> to vector<24x64xf32>
    %154 = arith.mulf %152, %153 : vector<24x64xf32>
    %155 = vector.broadcast %134 : vector<1x64xf32> to vector<24x64xf32>
    %156 = arith.addf %154, %155 : vector<24x64xf32>
    %157 = arith.truncf %156 : vector<24x64xf32> to vector<24x64xbf16>
    %158 = vector.shape_cast %157 : vector<24x64xbf16> to vector<1x24x64xbf16>
    %159 = vector.broadcast %158 : vector<1x24x64xbf16> to vector<6x24x64xbf16>
    %c1_75 = arith.constant 1 : index
    %c0_76 = arith.constant 0 : index
    %c0_77 = arith.constant 0 : index
    %c0_78 = arith.constant 0 : index
    %160 = vector.load %arg6[%c1_75, %c0_76, %c0_77, %c0_78] : memref<2x6x64x16xbf16, #tpu.memory_space<vmem>>, vector<1x6x64x16xbf16>
    %161 = vector.shape_cast %160 : vector<1x6x64x16xbf16> to vector<6x64x16xbf16>
    %cst_79 = arith.constant dense<0.000000e+00> : vector<6x24x16xf32>
    %162 = tpu.matmul %159, %161, %cst_79 {dimension_numbers = #tpu.dot_dimension_numbers<[2], [1], [1], [2], [0, 0, 0, 1, 1, 2], [0], [0]>} : vector<6x24x64xbf16>, vector<6x64x16xbf16>, vector<6x24x16xf32> -> vector<6x24x16xf32>
    %163 = vector.extract_strided_slice %162 {offsets = [0, 0, 0], sizes = [2, 24, 16], strides = [1, 1, 1]} : vector<6x24x16xf32> to vector<2x24x16xf32>
    %cst_80 = arith.constant 2.500000e-01 : f32
    %164 = vector.broadcast %cst_80 : f32 to vector<2x24x16xf32>
    %165 = arith.mulf %163, %164 : vector<2x24x16xf32>
    %166 = arith.truncf %165 : vector<2x24x16xf32> to vector<2x24x16xbf16>
    %167 = vector.extract_strided_slice %162 {offsets = [2, 0, 0], sizes = [2, 24, 16], strides = [1, 1, 1]} : vector<6x24x16xf32> to vector<2x24x16xf32>
    %168 = arith.truncf %167 : vector<2x24x16xf32> to vector<2x24x16xbf16>
    %169 = vector.extract_strided_slice %162 {offsets = [4, 0, 0], sizes = [2, 24, 16], strides = [1, 1, 1]} : vector<6x24x16xf32> to vector<2x24x16xf32>
    %170 = arith.truncf %169 : vector<2x24x16xf32> to vector<2x24x16xbf16>
    %cst_81 = arith.constant dense<0.000000e+00> : vector<2x24x24xf32>
    %171 = tpu.matmul %166, %168, %cst_81 {dimension_numbers = #tpu.dot_dimension_numbers<[2], [2], [1], [1], [0, 0, 0, 1, 1, 1], [0], [0]>} : vector<2x24x16xbf16>, vector<2x24x16xbf16>, vector<2x24x24xf32> -> vector<2x24x24xf32>
    %cst_82 = arith.constant -1.000000e+30 : f32
    %172 = vector.broadcast %cst_82 : f32 to vector<2x24x24xf32>
    %173 = arith.select %10, %171, %172 : vector<2x24x24xi1>, vector<2x24x24xf32>
    %cst_83 = arith.constant dense<0xFF800000> : vector<2x24xf32>
    %174 = vector.multi_reduction <maximumf>, %173, %cst_83 [2] : vector<2x24x24xf32> to vector<2x24xf32>
    %175 = vector.shape_cast %174 : vector<2x24xf32> to vector<2x24x1xf32>
    %176 = vector.broadcast %175 : vector<2x24x1xf32> to vector<2x24x24xf32>
    %177 = arith.subf %173, %176 : vector<2x24x24xf32>
    %178 = math.exp %177 : vector<2x24x24xf32>
    %cst_84 = arith.constant dense<0.000000e+00> : vector<2x24xf32>
    %179 = vector.multi_reduction <add>, %178, %cst_84 [2] : vector<2x24x24xf32> to vector<2x24xf32>
    %180 = vector.shape_cast %179 : vector<2x24xf32> to vector<2x24x1xf32>
    %181 = tpu.reciprocal %180 {approx = true} : vector<2x24x1xf32> -> vector<2x24x1xf32>
    %182 = vector.broadcast %181 : vector<2x24x1xf32> to vector<2x24x24xf32>
    %183 = arith.mulf %178, %182 : vector<2x24x24xf32>
    %184 = arith.truncf %183 : vector<2x24x24xf32> to vector<2x24x24xbf16>
    %cst_85 = arith.constant dense<0.000000e+00> : vector<2x24x16xf32>
    %185 = tpu.matmul %184, %170, %cst_85 {dimension_numbers = #tpu.dot_dimension_numbers<[2], [1], [1], [2], [0, 0, 0, 1, 1, 2], [0], [0]>} : vector<2x24x24xbf16>, vector<2x24x16xbf16>, vector<2x24x16xf32> -> vector<2x24x16xf32>
    %186 = arith.truncf %185 : vector<2x24x16xf32> to vector<2x24x16xbf16>
    %c1_86 = arith.constant 1 : index
    %c0_87 = arith.constant 0 : index
    %c0_88 = arith.constant 0 : index
    %c0_89 = arith.constant 0 : index
    %187 = vector.load %arg7[%c1_86, %c0_87, %c0_88, %c0_89] : memref<2x2x16x64xbf16, #tpu.memory_space<vmem>>, vector<1x2x16x64xbf16>
    %188 = vector.shape_cast %187 : vector<1x2x16x64xbf16> to vector<2x16x64xbf16>
    %cst_90 = arith.constant dense<0.000000e+00> : vector<2x24x64xf32>
    %189 = tpu.matmul %186, %188, %cst_90 {dimension_numbers = #tpu.dot_dimension_numbers<[2], [1], [1], [2], [0, 0, 0, 1, 1, 2], [0], [0]>} : vector<2x24x16xbf16>, vector<2x16x64xbf16>, vector<2x24x64xf32> -> vector<2x24x64xf32>
    %190 = vector.extract_strided_slice %189 {offsets = [0, 0, 0], sizes = [1, 24, 64], strides = [1, 1, 1]} : vector<2x24x64xf32> to vector<1x24x64xf32>
    %191 = vector.shape_cast %190 : vector<1x24x64xf32> to vector<24x64xf32>
    %192 = vector.extract_strided_slice %189 {offsets = [1, 0, 0], sizes = [1, 24, 64], strides = [1, 1, 1]} : vector<2x24x64xf32> to vector<1x24x64xf32>
    %193 = vector.shape_cast %192 : vector<1x24x64xf32> to vector<24x64xf32>
    %194 = arith.addf %191, %193 : vector<24x64xf32>
    %195 = arith.addf %130, %194 : vector<24x64xf32>
    %c1_91 = arith.constant 1 : index
    %c0_92 = arith.constant 0 : index
    %c0_93 = arith.constant 0 : index
    %196 = vector.load %arg8[%c1_91, %c0_92, %c0_93] : memref<2x1x64xf32, #tpu.memory_space<vmem>>, vector<1x1x64xf32>
    %197 = vector.shape_cast %196 : vector<1x1x64xf32> to vector<1x64xf32>
    %198 = vector.broadcast %197 : vector<1x64xf32> to vector<24x64xf32>
    %199 = arith.addf %195, %198 : vector<24x64xf32>
    %c1_94 = arith.constant 1 : index
    %c0_95 = arith.constant 0 : index
    %c0_96 = arith.constant 0 : index
    %200 = vector.load %arg9[%c1_94, %c0_95, %c0_96] : memref<2x1x64xf32, #tpu.memory_space<vmem>>, vector<1x1x64xf32>
    %201 = vector.shape_cast %200 : vector<1x1x64xf32> to vector<1x64xf32>
    %c1_97 = arith.constant 1 : index
    %c0_98 = arith.constant 0 : index
    %c0_99 = arith.constant 0 : index
    %202 = vector.load %arg10[%c1_97, %c0_98, %c0_99] : memref<2x1x64xf32, #tpu.memory_space<vmem>>, vector<1x1x64xf32>
    %203 = vector.shape_cast %202 : vector<1x1x64xf32> to vector<1x64xf32>
    %cst_100 = arith.constant dense<0.000000e+00> : vector<24xf32>
    %204 = vector.multi_reduction <add>, %199, %cst_100 [1] : vector<24x64xf32> to vector<24xf32>
    %205 = vector.shape_cast %204 : vector<24xf32> to vector<24x1xf32>
    %cst_101 = arith.constant 6.400000e+01 : f32
    %206 = vector.broadcast %cst_101 : f32 to vector<24x1xf32>
    %207 = arith.divf %205, %206 : vector<24x1xf32>
    %208 = vector.broadcast %207 : vector<24x1xf32> to vector<24x64xf32>
    %209 = arith.subf %199, %208 : vector<24x64xf32>
    %210 = arith.mulf %209, %209 : vector<24x64xf32>
    %cst_102 = arith.constant dense<0.000000e+00> : vector<24xf32>
    %211 = vector.multi_reduction <add>, %210, %cst_102 [1] : vector<24x64xf32> to vector<24xf32>
    %212 = vector.shape_cast %211 : vector<24xf32> to vector<24x1xf32>
    %cst_103 = arith.constant 6.400000e+01 : f32
    %213 = vector.broadcast %cst_103 : f32 to vector<24x1xf32>
    %214 = arith.divf %212, %213 : vector<24x1xf32>
    %215 = vector.broadcast %207 : vector<24x1xf32> to vector<24x64xf32>
    %216 = arith.subf %199, %215 : vector<24x64xf32>
    %cst_104 = arith.constant 9.99999974E-6 : f32
    %217 = vector.broadcast %cst_104 : f32 to vector<24x1xf32>
    %218 = arith.addf %214, %217 : vector<24x1xf32>
    %219 = math.rsqrt %218 : vector<24x1xf32>
    %220 = vector.broadcast %219 : vector<24x1xf32> to vector<24x64xf32>
    %221 = arith.mulf %216, %220 : vector<24x64xf32>
    %222 = vector.broadcast %201 : vector<1x64xf32> to vector<24x64xf32>
    %223 = arith.mulf %221, %222 : vector<24x64xf32>
    %224 = vector.broadcast %203 : vector<1x64xf32> to vector<24x64xf32>
    %225 = arith.addf %223, %224 : vector<24x64xf32>
    %226 = arith.truncf %225 : vector<24x64xf32> to vector<24x64xbf16>
    %c1_105 = arith.constant 1 : index
    %c0_106 = arith.constant 0 : index
    %c0_107 = arith.constant 0 : index
    %227 = vector.load %arg11[%c1_105, %c0_106, %c0_107] : memref<2x64x128xbf16, #tpu.memory_space<vmem>>, vector<1x64x128xbf16>
    %228 = vector.shape_cast %227 : vector<1x64x128xbf16> to vector<64x128xbf16>
    %cst_108 = arith.constant dense<0.000000e+00> : vector<24x128xf32>
    %229 = tpu.matmul %226, %228, %cst_108 {dimension_numbers = #tpu.dot_dimension_numbers<[1], [0], [0], [1], [0, 0, 1, 1], [], []>} : vector<24x64xbf16>, vector<64x128xbf16>, vector<24x128xf32> -> vector<24x128xf32>
    %c1_109 = arith.constant 1 : index
    %c0_110 = arith.constant 0 : index
    %c0_111 = arith.constant 0 : index
    %230 = vector.load %arg12[%c1_109, %c0_110, %c0_111] : memref<2x1x128xf32, #tpu.memory_space<vmem>>, vector<1x1x128xf32>
    %231 = vector.shape_cast %230 : vector<1x1x128xf32> to vector<1x128xf32>
    %232 = vector.broadcast %231 : vector<1x128xf32> to vector<24x128xf32>
    %233 = arith.addf %229, %232 : vector<24x128xf32>
    %cst_112 = arith.constant 5.000000e-01 : f32
    %234 = vector.broadcast %cst_112 : f32 to vector<24x128xf32>
    %235 = arith.mulf %234, %233 : vector<24x128xf32>
    %cst_113 = arith.constant 0.707106769 : f32
    %236 = vector.broadcast %cst_113 : f32 to vector<24x128xf32>
    %237 = arith.mulf %233, %236 : vector<24x128xf32>
    %238 = math.erf %237 : vector<24x128xf32>
    %cst_114 = arith.constant 1.000000e+00 : f32
    %239 = vector.broadcast %cst_114 : f32 to vector<24x128xf32>
    %240 = arith.addf %239, %238 : vector<24x128xf32>
    %241 = arith.mulf %235, %240 : vector<24x128xf32>
    %242 = arith.truncf %241 : vector<24x128xf32> to vector<24x128xbf16>
    %c1_115 = arith.constant 1 : index
    %c0_116 = arith.constant 0 : index
    %c0_117 = arith.constant 0 : index
    %243 = vector.load %arg13[%c1_115, %c0_116, %c0_117] : memref<2x128x64xbf16, #tpu.memory_space<vmem>>, vector<1x128x64xbf16>
    %244 = vector.shape_cast %243 : vector<1x128x64xbf16> to vector<128x64xbf16>
    %cst_118 = arith.constant dense<0.000000e+00> : vector<24x64xf32>
    %245 = tpu.matmul %242, %244, %cst_118 {dimension_numbers = #tpu.dot_dimension_numbers<[1], [0], [0], [1], [0, 0, 1, 1], [], []>} : vector<24x128xbf16>, vector<128x64xbf16>, vector<24x64xf32> -> vector<24x64xf32>
    %246 = arith.addf %199, %245 : vector<24x64xf32>
    %c1_119 = arith.constant 1 : index
    %c0_120 = arith.constant 0 : index
    %c0_121 = arith.constant 0 : index
    %247 = vector.load %arg14[%c1_119, %c0_120, %c0_121] : memref<2x1x64xf32, #tpu.memory_space<vmem>>, vector<1x1x64xf32>
    %248 = vector.shape_cast %247 : vector<1x1x64xf32> to vector<1x64xf32>
    %249 = vector.broadcast %248 : vector<1x64xf32> to vector<24x64xf32>
    %250 = arith.addf %246, %249 : vector<24x64xf32>
    %251 = vector.extract_strided_slice %250 {offsets = [0, 0], sizes = [1, 64], strides = [1, 1]} : vector<24x64xf32> to vector<1x64xf32>
    %c0_122 = arith.constant 0 : index
    %c0_123 = arith.constant 0 : index
    %252 = vector.load %arg15[%c0_122, %c0_123] : memref<1x64xf32, #tpu.memory_space<vmem>>, vector<1x64xf32>
    %c0_124 = arith.constant 0 : index
    %c0_125 = arith.constant 0 : index
    %253 = vector.load %arg16[%c0_124, %c0_125] : memref<1x64xf32, #tpu.memory_space<vmem>>, vector<1x64xf32>
    %cst_126 = arith.constant dense<0.000000e+00> : vector<1xf32>
    %254 = vector.multi_reduction <add>, %251, %cst_126 [1] : vector<1x64xf32> to vector<1xf32>
    %255 = vector.shape_cast %254 : vector<1xf32> to vector<1x1xf32>
    %cst_127 = arith.constant 6.400000e+01 : f32
    %256 = vector.broadcast %cst_127 : f32 to vector<1x1xf32>
    %257 = arith.divf %255, %256 : vector<1x1xf32>
    %258 = vector.broadcast %257 : vector<1x1xf32> to vector<1x64xf32>
    %259 = arith.subf %251, %258 : vector<1x64xf32>
    %260 = arith.mulf %259, %259 : vector<1x64xf32>
    %cst_128 = arith.constant dense<0.000000e+00> : vector<1xf32>
    %261 = vector.multi_reduction <add>, %260, %cst_128 [1] : vector<1x64xf32> to vector<1xf32>
    %262 = vector.shape_cast %261 : vector<1xf32> to vector<1x1xf32>
    %cst_129 = arith.constant 6.400000e+01 : f32
    %263 = vector.broadcast %cst_129 : f32 to vector<1x1xf32>
    %264 = arith.divf %262, %263 : vector<1x1xf32>
    %265 = vector.broadcast %257 : vector<1x1xf32> to vector<1x64xf32>
    %266 = arith.subf %251, %265 : vector<1x64xf32>
    %cst_130 = arith.constant 9.99999974E-6 : f32
    %267 = vector.broadcast %cst_130 : f32 to vector<1x1xf32>
    %268 = arith.addf %264, %267 : vector<1x1xf32>
    %269 = math.rsqrt %268 : vector<1x1xf32>
    %270 = vector.broadcast %269 : vector<1x1xf32> to vector<1x64xf32>
    %271 = arith.mulf %266, %270 : vector<1x64xf32>
    %272 = arith.mulf %271, %252 : vector<1x64xf32>
    %273 = arith.addf %272, %253 : vector<1x64xf32>
    %274 = arith.truncf %273 : vector<1x64xf32> to vector<1x64xbf16>
    %c0_131 = arith.constant 0 : index
    %c0_132 = arith.constant 0 : index
    %275 = vector.load %arg17[%c0_131, %c0_132] : memref<64x128xbf16, #tpu.memory_space<vmem>>, vector<64x128xbf16>
    %cst_133 = arith.constant dense<0.000000e+00> : vector<1x128xf32>
    %276 = tpu.matmul %274, %275, %cst_133 {dimension_numbers = #tpu.dot_dimension_numbers<[1], [0], [0], [1], [0, 0, 1, 1], [], []>} : vector<1x64xbf16>, vector<64x128xbf16>, vector<1x128xf32> -> vector<1x128xf32>
    %c0_134 = arith.constant 0 : index
    %c0_135 = arith.constant 0 : index
    %277 = vector.load %arg18[%c0_134, %c0_135] : memref<1x128xf32, #tpu.memory_space<vmem>>, vector<1x128xf32>
    %278 = arith.addf %276, %277 : vector<1x128xf32>
    %c0_136 = arith.constant 0 : index
    %c0_137 = arith.constant 0 : index
    %c0_138 = arith.constant 0 : index
    %279 = vector.load %arg19[%c0_136, %c0_137, %c0_138] : memref<1x1x128xf32, #tpu.memory_space<vmem>>, vector<1x1x128xf32>
    %280 = vector.shape_cast %279 : vector<1x1x128xf32> to vector<1x128xf32>
    %281 = vector.shape_cast %278 : vector<1x128xf32> to vector<1x1x128xf32>
    tpu.vector_store %arg19[%c0_136, %c0_137, %c0_138], %281 {strides = array<i32>} : memref<1x1x128xf32, #tpu.memory_space<vmem>>, vector<1x1x128xf32>,
    return
  }
  func.func @transform_0(%arg0: i32) -> (i32, i32, i32) {
    %c0_i32 = arith.constant 0 : i32
    %c0_i32_0 = arith.constant 0 : i32
    %c0_i32_1 = arith.constant 0 : i32
    return %arg0, %c0_i32, %c0_i32_0 : i32, i32, i32
  }
  func.func @transform_1(%arg0: i32) -> (i32, i32, i32) {
    %c0_i32 = arith.constant 0 : i32
    %c0_i32_0 = arith.constant 0 : i32
    %c0_i32_1 = arith.constant 0 : i32
    %c0_i32_2 = arith.constant 0 : i32
    return %c0_i32, %c0_i32_0, %c0_i32_1 : i32, i32, i32
  }
  func.func @transform_2(%arg0: i32) -> (i32, i32) {
    %c0_i32 = arith.constant 0 : i32
    %c0_i32_0 = arith.constant 0 : i32
    %c0_i32_1 = arith.constant 0 : i32
    return %c0_i32, %c0_i32_0 : i32, i32
  }
  func.func @transform_3(%arg0: i32) -> (i32, i32, i32) {
    %c0_i32 = arith.constant 0 : i32
    %c0_i32_0 = arith.constant 0 : i32
    %c0_i32_1 = arith.constant 0 : i32
    %c0_i32_2 = arith.constant 0 : i32
    return %c0_i32, %c0_i32_0, %c0_i32_1 : i32, i32, i32
  }
  func.func @transform_4(%arg0: i32) -> (i32, i32, i32) {
    %c0_i32 = arith.constant 0 : i32
    %c0_i32_0 = arith.constant 0 : i32
    %c0_i32_1 = arith.constant 0 : i32
    %c0_i32_2 = arith.constant 0 : i32
    return %c0_i32, %c0_i32_0, %c0_i32_1 : i32, i32, i32
  }
  func.func @transform_5(%arg0: i32) -> (i32, i32, i32, i32) {
    %c0_i32 = arith.constant 0 : i32
    %c0_i32_0 = arith.constant 0 : i32
    %c0_i32_1 = arith.constant 0 : i32
    %c0_i32_2 = arith.constant 0 : i32
    %c0_i32_3 = arith.constant 0 : i32
    return %c0_i32, %c0_i32_0, %c0_i32_1, %c0_i32_2 : i32, i32, i32, i32
  }
  func.func @transform_6(%arg0: i32) -> (i32, i32, i32, i32) {
    %c0_i32 = arith.constant 0 : i32
    %c0_i32_0 = arith.constant 0 : i32
    %c0_i32_1 = arith.constant 0 : i32
    %c0_i32_2 = arith.constant 0 : i32
    %c0_i32_3 = arith.constant 0 : i32
    return %c0_i32, %c0_i32_0, %c0_i32_1, %c0_i32_2 : i32, i32, i32, i32
  }
  func.func @transform_7(%arg0: i32) -> (i32, i32, i32) {
    %c0_i32 = arith.constant 0 : i32
    %c0_i32_0 = arith.constant 0 : i32
    %c0_i32_1 = arith.constant 0 : i32
    %c0_i32_2 = arith.constant 0 : i32
    return %c0_i32, %c0_i32_0, %c0_i32_1 : i32, i32, i32
  }
  func.func @transform_8(%arg0: i32) -> (i32, i32, i32) {
    %c0_i32 = arith.constant 0 : i32
    %c0_i32_0 = arith.constant 0 : i32
    %c0_i32_1 = arith.constant 0 : i32
    %c0_i32_2 = arith.constant 0 : i32
    return %c0_i32, %c0_i32_0, %c0_i32_1 : i32, i32, i32
  }
  func.func @transform_9(%arg0: i32) -> (i32, i32, i32) {
    %c0_i32 = arith.constant 0 : i32
    %c0_i32_0 = arith.constant 0 : i32
    %c0_i32_1 = arith.constant 0 : i32
    %c0_i32_2 = arith.constant 0 : i32
    return %c0_i32, %c0_i32_0, %c0_i32_1 : i32, i32, i32
  }
  func.func @transform_10(%arg0: i32) -> (i32, i32, i32) {
    %c0_i32 = arith.constant 0 : i32
    %c0_i32_0 = arith.constant 0 : i32
    %c0_i32_1 = arith.constant 0 : i32
    %c0_i32_2 = arith.constant 0 : i32
    return %c0_i32, %c0_i32_0, %c0_i32_1 : i32, i32, i32
  }
  func.func @transform_11(%arg0: i32) -> (i32, i32, i32) {
    %c0_i32 = arith.constant 0 : i32
    %c0_i32_0 = arith.constant 0 : i32
    %c0_i32_1 = arith.constant 0 : i32
    %c0_i32_2 = arith.constant 0 : i32
    return %c0_i32, %c0_i32_0, %c0_i32_1 : i32, i32, i32
  }
  func.func @transform_12(%arg0: i32) -> (i32, i32, i32) {
    %c0_i32 = arith.constant 0 : i32
    %c0_i32_0 = arith.constant 0 : i32
    %c0_i32_1 = arith.constant 0 : i32
    %c0_i32_2 = arith.constant 0 : i32
    return %c0_i32, %c0_i32_0, %c0_i32_1 : i32, i32, i32
  }
  func.func @transform_13(%arg0: i32) -> (i32, i32, i32) {
    %c0_i32 = arith.constant 0 : i32
    %c0_i32_0 = arith.constant 0 : i32
    %c0_i32_1 = arith.constant 0 : i32
    %c0_i32_2 = arith.constant 0 : i32
    return %c0_i32, %c0_i32_0, %c0_i32_1 : i32, i32, i32
  }
  func.func @transform_14(%arg0: i32) -> (i32, i32) {
    %c0_i32 = arith.constant 0 : i32
    %c0_i32_0 = arith.constant 0 : i32
    %c0_i32_1 = arith.constant 0 : i32
    return %c0_i32, %c0_i32_0 : i32, i32
  }
  func.func @transform_15(%arg0: i32) -> (i32, i32) {
    %c0_i32 = arith.constant 0 : i32
    %c0_i32_0 = arith.constant 0 : i32
    %c0_i32_1 = arith.constant 0 : i32
    return %c0_i32, %c0_i32_0 : i32, i32
  }
  func.func @transform_16(%arg0: i32) -> (i32, i32) {
    %c0_i32 = arith.constant 0 : i32
    %c0_i32_0 = arith.constant 0 : i32
    %c0_i32_1 = arith.constant 0 : i32
    return %c0_i32, %c0_i32_0 : i32, i32
  }
  func.func @transform_17(%arg0: i32) -> (i32, i32) {
    %c0_i32 = arith.constant 0 : i32
    %c0_i32_0 = arith.constant 0 : i32
    %c0_i32_1 = arith.constant 0 : i32
    return %c0_i32, %c0_i32_0 : i32, i32
  }
  func.func @transform_18(%arg0: i32) -> (i32, i32, i32) {
    %c0_i32 = arith.constant 0 : i32
    %c0_i32_0 = arith.constant 0 : i32
    %c0_i32_1 = arith.constant 0 : i32
    return %arg0, %c0_i32, %c0_i32_0 : i32, i32, i32
  }
}

</mosaic_0001>

<llo_original>
// kernel: vit_forward.1
$region0: #{vit_forward.1}
  #allocation0 [shape = 'u32[]', space=smem, size = 0x4, offset = 0x4, fixed_abs, tag = 'smem constant byte address 0x4 - core index']
  #allocation1 [shape = 'u32[144,128]{1,0:T(1,128)}', space=vmem, size = 0x12000, scoped, tag = 'internal scratch']
  %s0 = inlined_call_operand.vmem [shape: f32[2,24,48], index: 0, kind: input, shape index: {}]
  %s1 = inlined_call_operand.vmem [shape: f32[1,24,64], index: 1, kind: input, shape index: {}]
  %s2 = inlined_call_operand.vmem [shape: bf16[48,64], index: 2, kind: input, shape index: {}]
  %s3 = inlined_call_operand.vmem [shape: f32[2,1,64], index: 3, kind: input, shape index: {}]
  %s4 = inlined_call_operand.vmem [shape: f32[2,1,64], index: 4, kind: input, shape index: {}]
  %s5 = inlined_call_operand.vmem [shape: bf16[2,6,64,16], index: 5, kind: input, shape index: {}]
  %s6 = inlined_call_operand.vmem [shape: bf16[2,2,16,64], index: 6, kind: input, shape index: {}]
  %s7 = inlined_call_operand.vmem [shape: f32[2,1,64], index: 7, kind: input, shape index: {}]
  %s8 = inlined_call_operand.vmem [shape: f32[2,1,64], index: 8, kind: input, shape index: {}]
  %s9 = inlined_call_operand.vmem [shape: f32[2,1,64], index: 9, kind: input, shape index: {}]
  %s10 = inlined_call_operand.vmem [shape: bf16[2,64,128], index: 10, kind: input, shape index: {}]
  %s11 = inlined_call_operand.vmem [shape: f32[2,1,128], index: 11, kind: input, shape index: {}]
  %s12 = inlined_call_operand.vmem [shape: bf16[2,128,64], index: 12, kind: input, shape index: {}]
  %s13 = inlined_call_operand.vmem [shape: f32[2,1,64], index: 13, kind: input, shape index: {}]
  %s14 = inlined_call_operand.vmem [shape: f32[1,64], index: 14, kind: input, shape index: {}]
  %s15 = inlined_call_operand.vmem [shape: f32[1,64], index: 15, kind: input, shape index: {}]
  %s16 = inlined_call_operand.vmem [shape: bf16[64,128], index: 16, kind: input, shape index: {}]
  %s17 = inlined_call_operand.vmem [shape: f32[1,128], index: 17, kind: input, shape index: {}]
  %s18 = inlined_call_operand.hbm [shape: f32[2,1,128], index: 18, kind: output, shape index: {}]
  %s19 = sld [smem:[#allocation0]]
  $region105: #{vit_forward.1} parent=0
    _
  %s21 = ssub.s32 1, %s19
  %s22 = scalar_select 0, %s21, %s19
  $region1: #{vit_forward.1} parent=0
    #allocation2 [shape = 'u8[1024]{0}', space=vmem, size = 0x400, scoped, tag = 'output window, operand 0']
    #allocation3 [shape = 's32[2]{0}', space=sflag, size = 0x8, scoped, tag = 'scoped memory for vit_forward.1']
    %23 = vsyncpa [#allocation3], 0
    %s24 = scalar_lea.sflag [#allocation3], 1
    %25 = vsyncpa %s24, 0
    loop: start=0, step=1, limit=4
    $region2: #{vit_forward.1} parent=1 // loop_pre_header
      _
    $region3: #{vit_forward.1} parent=1 // loop_header
      %s27 = sphi 0, %s31
      %p28 = scmp.ge.s32.totalorder %s27, 4
      %s37 = sphi 0, %s39
      %s40 = sphi 0, %s37
      %s41 = sphi 0, %s40
      %s57 = sphi 0, %s41
      %s61 = sphi 0, %s61
      %s63 = sphi 0, %s61
      %s64 = sphi 0, %s63
      %s78 = sphi 0, %s64
      %s82 = sphi 0, %s82
      %s84 = sphi 0, %s82
      %s85 = sphi 0, %s84
      %s99 = sphi 0, %s85
      %s103 = sphi 0, %s103
      %s105 = sphi 0, %s103
      %s106 = sphi 0, %s105
      %s120 = sphi 0, %s106
      %s124 = sphi 0, %s124
      %s126 = sphi 0, %s124
      %s127 = sphi 0, %s126
      %s141 = sphi 0, %s127
      %s145 = sphi 0, %s145
      %s147 = sphi 0, %s145
      %s148 = sphi 0, %s147
      %s162 = sphi 0, %s148
      %s166 = sphi 0, %s166
      %s168 = sphi 0, %s166
      %s169 = sphi 0, %s168
      %s183 = sphi 0, %s169
      %s187 = sphi 0, %s187
      %s189 = sphi 0, %s187
      %s190 = sphi 0, %s189
      %s204 = sphi 0, %s190
      %s208 = sphi 0, %s208
      %s210 = sphi 0, %s208
      %s211 = sphi 0, %s210
      %s225 = sphi 0, %s211
      %s229 = sphi 0, %s229
      %s231 = sphi 0, %s229
      %s232 = sphi 0, %s231
      %s246 = sphi 0, %s232
      %s250 = sphi 0, %s250
      %s252 = sphi 0, %s250
      %s253 = sphi 0, %s252
      %s267 = sphi 0, %s253
      %s271 = sphi 0, %s271
      %s273 = sphi 0, %s271
      %s274 = sphi 0, %s273
      %s288 = sphi 0, %s274
      %s292 = sphi 0, %s292
      %s294 = sphi 0, %s292
      %s295 = sphi 0, %s294
      %s309 = sphi 0, %s295
      %s313 = sphi 0, %s313
      %s315 = sphi 0, %s313
      %s316 = sphi 0, %s315
      %s330 = sphi 0, %s316
      %s334 = sphi 0, %s334
      %s336 = sphi 0, %s334
      %s337 = sphi 0, %s336
      %s351 = sphi 0, %s337
      %s355 = sphi 0, %s355
      %s357 = sphi 0, %s355
      %s358 = sphi 0, %s357
      %s372 = sphi 0, %s358
      %s376 = sphi 0, %s376
      %s378 = sphi 0, %s376
      %s379 = sphi 0, %s378
      %s393 = sphi 0, %s379
      %s397 = sphi 0, %s397
      %s399 = sphi 0, %s397
      %s400 = sphi 0, %s399
      %s414 = sphi 0, %s400
      %s420 = sphi 0, %s422
      %s423 = sphi 0, %s420
      %s424 = sphi 0, %s423
      %s440 = sphi 0, %s424
    $region4: #{vit_forward.1} parent=1 // loop_header_branch
      %30 = sbr.rel (%p28) target = $region8
    $region5: #{vit_forward.1} parent=1 // loop_body
      %s32 = ssub.s32 %s27, 1
      %s33 = ssub.s32 %s27, 2
      %s34 = sadd.s32 %s27, 1
      %s35 = ssub.s32 %s27, %s34
      %p36 = scmp.eq.s32.totalorder %s35, 0
      %s38 = sadd.s32 %s37, 1
      %s39 = scalar_select %p36, %s37, %s38
      %p42 = pneg %p36
      %p43 = scmp.eq.s32.totalorder %s27, 1
      %p44 = por %p42, %p43
      %p45 = scmp.ne.s32.totalorder %s37, %s40
      %p46 = scmp.eq.s32.totalorder %s27, 0
      %p47 = por %p45, %p46
      %p48 = scmp.ne.s32.totalorder %s37, %s40
      %p49 = scmp.eq.s32.totalorder %s32, 1
      %p50 = por %p48, %p49
      %p51 = scmp.ne.s32.totalorder %s40, %s41
      %p52 = scmp.eq.s32.totalorder %s32, 0
      %p53 = por %p51, %p52
      %p54 = scmp.ne.s32.totalorder %s40, %s41
      %p55 = scmp.eq.s32.totalorder %s33, 1
      %p56 = por %p54, %p55
      %p58 = scmp.ne.s32.totalorder %s41, %s57
      %p59 = scmp.eq.s32.totalorder %s33, 0
      %p60 = por %p58, %p59
      %s62 = sadd.s32 %s61, 1
      %p65 = scmp.eq.s32.totalorder %s27, 1
      %p66 = scmp.ne.s32.totalorder %s61, %s63
      %p67 = scmp.eq.s32.totalorder %s27, 0
      %p68 = por %p66, %p67
      %p69 = scmp.ne.s32.totalorder %s61, %s63
      %p70 = scmp.eq.s32.totalorder %s32, 1
      %p71 = por %p69, %p70
      %p72 = scmp.ne.s32.totalorder %s63, %s64
      %p73 = scmp.eq.s32.totalorder %s32, 0
      %p74 = por %p72, %p73
      %p75 = scmp.ne.s32.totalorder %s63, %s64
      %p76 = scmp.eq.s32.totalorder %s33, 1
      %p77 = por %p75, %p76
      %p79 = scmp.ne.s32.totalorder %s64, %s78
      %p80 = scmp.eq.s32.totalorder %s33, 0
      %p81 = por %p79, %p80
      %s83 = sadd.s32 %s82, 1
      %p86 = scmp.eq.s32.totalorder %s27, 1
      %p87 = scmp.ne.s32.totalorder %s82, %s84
      %p88 = scmp.eq.s32.totalorder %s27, 0
      %p89 = por %p87, %p88
      %p90 = scmp.ne.s32.totalorder %s82, %s84
      %p91 = scmp.eq.s32.totalorder %s32, 1
      %p92 = por %p90, %p91
      %p93 = scmp.ne.s32.totalorder %s84, %s85
      %p94 = scmp.eq.s32.totalorder %s32, 0
      %p95 = por %p93, %p94
      %p96 = scmp.ne.s32.totalorder %s84, %s85
      %p97 = scmp.eq.s32.totalorder %s33, 1
      %p98 = por %p96, %p97
      %p100 = scmp.ne.s32.totalorder %s85, %s99
      %p101 = scmp.eq.s32.totalorder %s33, 0
      %p102 = por %p100, %p101
      %s104 = sadd.s32 %s103, 1
      %p107 = scmp.eq.s32.totalorder %s27, 1
      %p108 = scmp.ne.s32.totalorder %s103, %s105
      %p109 = scmp.eq.s32.totalorder %s27, 0
      %p110 = por %p108, %p109
      %p111 = scmp.ne.s32.totalorder %s103, %s105
      %p112 = scmp.eq.s32.totalorder %s32, 1
      %p113 = por %p111, %p112
      %p114 = scmp.ne.s32.totalorder %s105, %s106
      %p115 = scmp.eq.s32.totalorder %s32, 0
      %p116 = por %p114, %p115
      %p117 = scmp.ne.s32.totalorder %s105, %s106
      %p118 = scmp.eq.s32.totalorder %s33, 1
      %p119 = por %p117, %p118
      %p121 = scmp.ne.s32.totalorder %s106, %s120
      %p122 = scmp.eq.s32.totalorder %s33, 0
      %p123 = por %p121, %p122
      %s125 = sadd.s32 %s124, 1
      %p128 = scmp.eq.s32.totalorder %s27, 1
      %p129 = scmp.ne.s32.totalorder %s124, %s126
      %p130 = scmp.eq.s32.totalorder %s27, 0
      %p131 = por %p129, %p130
      %p132 = scmp.ne.s32.totalorder %s124, %s126
      %p133 = scmp.eq.s32.totalorder %s32, 1
      %p134 = por %p132, %p133
      %p135 = scmp.ne.s32.totalorder %s126, %s127
      %p136 = scmp.eq.s32.totalorder %s32, 0
      %p137 = por %p135, %p136
      %p138 = scmp.ne.s32.totalorder %s126, %s127
      %p139 = scmp.eq.s32.totalorder %s33, 1
      %p140 = por %p138, %p139
      %p142 = scmp.ne.s32.totalorder %s127, %s141
      %p143 = scmp.eq.s32.totalorder %s33, 0
      %p144 = por %p142, %p143
      %s146 = sadd.s32 %s145, 1
      %p149 = scmp.eq.s32.totalorder %s27, 1
      %p150 = scmp.ne.s32.totalorder %s145, %s147
      %p151 = scmp.eq.s32.totalorder %s27, 0
      %p152 = por %p150, %p151
      %p153 = scmp.ne.s32.totalorder %s145, %s147
      %p154 = scmp.eq.s32.totalorder %s32, 1
      %p155 = por %p153, %p154
      %p156 = scmp.ne.s32.totalorder %s147, %s148
      %p157 = scmp.eq.s32.totalorder %s32, 0
      %p158 = por %p156, %p157
      %p159 = scmp.ne.s32.totalorder %s147, %s148
      %p160 = scmp.eq.s32.totalorder %s33, 1
      %p161 = por %p159, %p160
      %p163 = scmp.ne.s32.totalorder %s148, %s162
      %p164 = scmp.eq.s32.totalorder %s33, 0
      %p165 = por %p163, %p164
      %s167 = sadd.s32 %s166, 1
      %p170 = scmp.eq.s32.totalorder %s27, 1
      %p171 = scmp.ne.s32.totalorder %s166, %s168
      %p172 = scmp.eq.s32.totalorder %s27, 0
      %p173 = por %p171, %p172
      %p174 = scmp.ne.s32.totalorder %s166, %s168
      %p175 = scmp.eq.s32.totalorder %s32, 1
      %p176 = por %p174, %p175
      %p177 = scmp.ne.s32.totalorder %s168, %s169
      %p178 = scmp.eq.s32.totalorder %s32, 0
      %p179 = por %p177, %p178
      %p180 = scmp.ne.s32.totalorder %s168, %s169
      %p181 = scmp.eq.s32.totalorder %s33, 1
      %p182 = por %p180, %p181
      %p184 = scmp.ne.s32.totalorder %s169, %s183
      %p185 = scmp.eq.s32.totalorder %s33, 0
      %p186 = por %p184, %p185
      %s188 = sadd.s32 %s187, 1
      %p191 = scmp.eq.s32.totalorder %s27, 1
      %p192 = scmp.ne.s32.totalorder %s187, %s189
      %p193 = scmp.eq.s32.totalorder %s27, 0
      %p194 = por %p192, %p193
      %p195 = scmp.ne.s32.totalorder %s187, %s189
      %p196 = scmp.eq.s32.totalorder %s32, 1
      %p197 = por %p195, %p196
      %p198 = scmp.ne.s32.totalorder %s189, %s190
      %p199 = scmp.eq.s32.totalorder %s32, 0
      %p200 = por %p198, %p199
      %p201 = scmp.ne.s32.totalorder %s189, %s190
      %p202 = scmp.eq.s32.totalorder %s33, 1
      %p203 = por %p201, %p202
      %p205 = scmp.ne.s32.totalorder %s190, %s204
      %p206 = scmp.eq.s32.totalorder %s33, 0
      %p207 = por %p205, %p206
      %s209 = sadd.s32 %s208, 1
      %p212 = scmp.eq.s32.totalorder %s27, 1
      %p213 = scmp.ne.s32.totalorder %s208, %s210
      %p214 = scmp.eq.s32.totalorder %s27, 0
      %p215 = por %p213, %p214
      %p216 = scmp.ne.s32.totalorder %s208, %s210
      %p217 = scmp.eq.s32.totalorder %s32, 1
      %p218 = por %p216, %p217
      %p219 = scmp.ne.s32.totalorder %s210, %s211
      %p220 = scmp.eq.s32.totalorder %s32, 0
      %p221 = por %p219, %p220
      %p222 = scmp.ne.s32.totalorder %s210, %s211
      %p223 = scmp.eq.s32.totalorder %s33, 1
      %p224 = por %p222, %p223
      %p226 = scmp.ne.s32.totalorder %s211, %s225
      %p227 = scmp.eq.s32.totalorder %s33, 0
      %p228 = por %p226, %p227
      %s230 = sadd.s32 %s229, 1
      %p233 = scmp.eq.s32.totalorder %s27, 1
      %p234 = scmp.ne.s32.totalorder %s229, %s231
      %p235 = scmp.eq.s32.totalorder %s27, 0
      %p236 = por %p234, %p235
      %p237 = scmp.ne.s32.totalorder %s229, %s231
      %p238 = scmp.eq.s32.totalorder %s32, 1
      %p239 = por %p237, %p238
      %p240 = scmp.ne.s32.totalorder %s231, %s232
      %p241 = scmp.eq.s32.totalorder %s32, 0
      %p242 = por %p240, %p241
      %p243 = scmp.ne.s32.totalorder %s231, %s232
      %p244 = scmp.eq.s32.totalorder %s33, 1
      %p245 = por %p243, %p244
      %p247 = scmp.ne.s32.totalorder %s232, %s246
      %p248 = scmp.eq.s32.totalorder %s33, 0
      %p249 = por %p247, %p248
      %s251 = sadd.s32 %s250, 1
      %p254 = scmp.eq.s32.totalorder %s27, 1
      %p255 = scmp.ne.s32.totalorder %s250, %s252
      %p256 = scmp.eq.s32.totalorder %s27, 0
      %p257 = por %p255, %p256
      %p258 = scmp.ne.s32.totalorder %s250, %s252
      %p259 = scmp.eq.s32.totalorder %s32, 1
      %p260 = por %p258, %p259
      %p261 = scmp.ne.s32.totalorder %s252, %s253
      %p262 = scmp.eq.s32.totalorder %s32, 0
      %p263 = por %p261, %p262
      %p264 = scmp.ne.s32.totalorder %s252, %s253
      %p265 = scmp.eq.s32.totalorder %s33, 1
      %p266 = por %p264, %p265
      %p268 = scmp.ne.s32.totalorder %s253, %s267
      %p269 = scmp.eq.s32.totalorder %s33, 0
      %p270 = por %p268, %p269
      %s272 = sadd.s32 %s271, 1
      %p275 = scmp.eq.s32.totalorder %s27, 1
      %p276 = scmp.ne.s32.totalorder %s271, %s273
      %p277 = scmp.eq.s32.totalorder %s27, 0
      %p278 = por %p276, %p277
      %p279 = scmp.ne.s32.totalorder %s271, %s273
      %p280 = scmp.eq.s32.totalorder %s32, 1
      %p281 = por %p279, %p280
      %p282 = scmp.ne.s32.totalorder %s273, %s274
      %p283 = scmp.eq.s32.totalorder %s32, 0
      %p284 = por %p282, %p283
      %p285 = scmp.ne.s32.totalorder %s273, %s274
      %p286 = scmp.eq.s32.totalorder %s33, 1
      %p287 = por %p285, %p286
      %p289 = scmp.ne.s32.totalorder %s274, %s288
      %p290 = scmp.eq.s32.totalorder %s33, 0
      %p291 = por %p289, %p290
      %s293 = sadd.s32 %s292, 1
      %p296 = scmp.eq.s32.totalorder %s27, 1
      %p297 = scmp.ne.s32.totalorder %s292, %s294
      %p298 = scmp.eq.s32.totalorder %s27, 0
      %p299 = por %p297, %p298
      %p300 = scmp.ne.s32.totalorder %s292, %s294
      %p301 = scmp.eq.s32.totalorder %s32, 1
      %p302 = por %p300, %p301
      %p303 = scmp.ne.s32.totalorder %s294, %s295
      %p304 = scmp.eq.s32.totalorder %s32, 0
      %p305 = por %p303, %p304
      %p306 = scmp.ne.s32.totalorder %s294, %s295
      %p307 = scmp.eq.s32.totalorder %s33, 1
      %p308 = por %p306, %p307
      %p310 = scmp.ne.s32.totalorder %s295, %s309
      %p311 = scmp.eq.s32.totalorder %s33, 0
      %p312 = por %p310, %p311
      %s314 = sadd.s32 %s313, 1
      %p317 = scmp.eq.s32.totalorder %s27, 1
      %p318 = scmp.ne.s32.totalorder %s313, %s315
      %p319 = scmp.eq.s32.totalorder %s27, 0
      %p320 = por %p318, %p319
      %p321 = scmp.ne.s32.totalorder %s313, %s315
      %p322 = scmp.eq.s32.totalorder %s32, 1
      %p323 = por %p321, %p322
      %p324 = scmp.ne.s32.totalorder %s315, %s316
      %p325 = scmp.eq.s32.totalorder %s32, 0
      %p326 = por %p324, %p325
      %p327 = scmp.ne.s32.totalorder %s315, %s316
      %p328 = scmp.eq.s32.totalorder %s33, 1
      %p329 = por %p327, %p328
      %p331 = scmp.ne.s32.totalorder %s316, %s330
      %p332 = scmp.eq.s32.totalorder %s33, 0
      %p333 = por %p331, %p332
      %s335 = sadd.s32 %s334, 1
      %p338 = scmp.eq.s32.totalorder %s27, 1
      %p339 = scmp.ne.s32.totalorder %s334, %s336
      %p340 = scmp.eq.s32.totalorder %s27, 0
      %p341 = por %p339, %p340
      %p342 = scmp.ne.s32.totalorder %s334, %s336
      %p343 = scmp.eq.s32.totalorder %s32, 1
      %p344 = por %p342, %p343
      %p345 = scmp.ne.s32.totalorder %s336, %s337
      %p346 = scmp.eq.s32.totalorder %s32, 0
      %p347 = por %p345, %p346
      %p348 = scmp.ne.s32.totalorder %s336, %s337
      %p349 = scmp.eq.s32.totalorder %s33, 1
      %p350 = por %p348, %p349
      %p352 = scmp.ne.s32.totalorder %s337, %s351
      %p353 = scmp.eq.s32.totalorder %s33, 0
      %p354 = por %p352, %p353
      %s356 = sadd.s32 %s355, 1
      %p359 = scmp.eq.s32.totalorder %s27, 1
      %p360 = scmp.ne.s32.totalorder %s355, %s357
      %p361 = scmp.eq.s32.totalorder %s27, 0
      %p362 = por %p360, %p361
      %p363 = scmp.ne.s32.totalorder %s355, %s357
      %p364 = scmp.eq.s32.totalorder %s32, 1
      %p365 = por %p363, %p364
      %p366 = scmp.ne.s32.totalorder %s357, %s358
      %p367 = scmp.eq.s32.totalorder %s32, 0
      %p368 = por %p366, %p367
      %p369 = scmp.ne.s32.totalorder %s357, %s358
      %p370 = scmp.eq.s32.totalorder %s33, 1
      %p371 = por %p369, %p370
      %p373 = scmp.ne.s32.totalorder %s358, %s372
      %p374 = scmp.eq.s32.totalorder %s33, 0
      %p375 = por %p373, %p374
      %s377 = sadd.s32 %s376, 1
      %p380 = scmp.eq.s32.totalorder %s27, 1
      %p381 = scmp.ne.s32.totalorder %s376, %s378
      %p382 = scmp.eq.s32.totalorder %s27, 0
      %p383 = por %p381, %p382
      %p384 = scmp.ne.s32.totalorder %s376, %s378
      %p385 = scmp.eq.s32.totalorder %s32, 1
      %p386 = por %p384, %p385
      %p387 = scmp.ne.s32.totalorder %s378, %s379
      %p388 = scmp.eq.s32.totalorder %s32, 0
      %p389 = por %p387, %p388
      %p390 = scmp.ne.s32.totalorder %s378, %s379
      %p391 = scmp.eq.s32.totalorder %s33, 1
      %p392 = por %p390, %p391
      %p394 = scmp.ne.s32.totalorder %s379, %s393
      %p395 = scmp.eq.s32.totalorder %s33, 0
      %p396 = por %p394, %p395
      %s398 = sadd.s32 %s397, 1
      %p401 = scmp.eq.s32.totalorder %s27, 1
      %p402 = scmp.ne.s32.totalorder %s397, %s399
      %p403 = scmp.eq.s32.totalorder %s27, 0
      %p404 = por %p402, %p403
      %p405 = scmp.ne.s32.totalorder %s397, %s399
      %p406 = scmp.eq.s32.totalorder %s32, 1
      %p407 = por %p405, %p406
      %p408 = scmp.ne.s32.totalorder %s399, %s400
      %p409 = scmp.eq.s32.totalorder %s32, 0
      %p410 = por %p408, %p409
      %p411 = scmp.ne.s32.totalorder %s399, %s400
      %p412 = scmp.eq.s32.totalorder %s33, 1
      %p413 = por %p411, %p412
      %p415 = scmp.ne.s32.totalorder %s400, %s414
      %p416 = scmp.eq.s32.totalorder %s33, 0
      %p417 = por %p415, %p416
      %s418 = ssub.s32 %s27, %s34
      %p419 = scmp.eq.s32.totalorder %s418, 0
      %s421 = sadd.s32 %s420, 1
      %s422 = scalar_select %p419, %s420, %s421
      %p425 = pneg %p419
      %p426 = scmp.eq.s32.totalorder %s27, 1
      %p427 = por %p425, %p426
      %p428 = scmp.ne.s32.totalorder %s420, %s423
      %p429 = scmp.eq.s32.totalorder %s27, 0
      %p430 = por %p428, %p429
      %p431 = scmp.ne.s32.totalorder %s420, %s423
      %p432 = scmp.eq.s32.totalorder %s32, 1
      %p433 = por %p431, %p432
      %p434 = scmp.ne.s32.totalorder %s423, %s424
      %p435 = scmp.eq.s32.totalorder %s32, 0
      %p436 = por %p434, %p435
      %p437 = scmp.ne.s32.totalorder %s423, %s424
      %p438 = scmp.eq.s32.totalorder %s33, 1
      %p439 = por %p437, %p438
      %p441 = scmp.ne.s32.totalorder %s424, %s440
      %p442 = scmp.eq.s32.totalorder %s33, 0
      %p443 = por %p441, %p442
      %p444 = scmp.le.s32.totalorder 1, %s27
      %p445 = scmp.lt.s32.totalorder %s27, 3
      %p446 = pnand %p444, %p445
      %p447 = pneg %p446
      // Predicated region
      $region9: #{vit_forward.1} parent=5 // pred_check
        _
      $region10: #{vit_forward.1} parent=5 // pred_check_branch
        %449 = sbr.rel (%p446) target = $region12
      $region11: #{vit_forward.1} parent=5 // pred_region
        %s450 = ssub.s32 %s27, 1
        // Predicated region
        $region13: #{vit_forward.1} parent=11 // pred_check
          %p451 = pneg %p74
        $region14: #{vit_forward.1} parent=11 // pred_check_branch
          %453 = sbr.rel (%p451) target = $region16
        $region15: #{vit_forward.1} parent=11 // pred_region
          _
        $region16: #{vit_forward.1} parent=11 // pred_fallthru
          _
        // Predicated region
        $region17: #{vit_forward.1} parent=11 // pred_check
          %p454 = pneg %p95
        $region18: #{vit_forward.1} parent=11 // pred_check_branch
          %456 = sbr.rel (%p454) target = $region20
        $region19: #{vit_forward.1} parent=11 // pred_region
          _
        $region20: #{vit_forward.1} parent=11 // pred_fallthru
          _
        // Predicated region
        $region21: #{vit_forward.1} parent=11 // pred_check
          %p457 = pneg %p116
        $region22: #{vit_forward.1} parent=11 // pred_check_branch
          %459 = sbr.rel (%p457) target = $region24
        $region23: #{vit_forward.1} parent=11 // pred_region
          _
        $region24: #{vit_forward.1} parent=11 // pred_fallthru
          _
        // Predicated region
        $region25: #{vit_forward.1} parent=11 // pred_check
          %p460 = pneg %p137
        $region26: #{vit_forward.1} parent=11 // pred_check_branch
          %462 = sbr.rel (%p460) target = $region28
        $region27: #{vit_forward.1} parent=11 // pred_region
          _
        $region28: #{vit_forward.1} parent=11 // pred_fallthru
          _
        // Predicated region
        $region29: #{vit_forward.1} parent=11 // pred_check
          %p463 = pneg %p158
        $region30: #{vit_forward.1} parent=11 // pred_check_branch
          %465 = sbr.rel (%p463) target = $region32
        $region31: #{vit_forward.1} parent=11 // pred_region
          _
        $region32: #{vit_forward.1} parent=11 // pred_fallthru
          _
        // Predicated region
        $region33: #{vit_forward.1} parent=11 // pred_check
          %p466 = pneg %p179
        $region34: #{vit_forward.1} parent=11 // pred_check_branch
          %468 = sbr.rel (%p466) target = $region36
        $region35: #{vit_forward.1} parent=11 // pred_region
          _
        $region36: #{vit_forward.1} parent=11 // pred_fallthru
          _
        // Predicated region
        $region37: #{vit_forward.1} parent=11 // pred_check
          %p469 = pneg %p200
        $region38: #{vit_forward.1} parent=11 // pred_check_branch
          %471 = sbr.rel (%p469) target = $region40
        $region39: #{vit_forward.1} parent=11 // pred_region
          _
        $region40: #{vit_forward.1} parent=11 // pred_fallthru
          _
        // Predicated region
        $region41: #{vit_forward.1} parent=11 // pred_check
          %p472 = pneg %p221
        $region42: #{vit_forward.1} parent=11 // pred_check_branch
          %474 = sbr.rel (%p472) target = $region44
        $region43: #{vit_forward.1} parent=11 // pred_region
          _
        $region44: #{vit_forward.1} parent=11 // pred_fallthru
          _
        // Predicated region
        $region45: #{vit_forward.1} parent=11 // pred_check
          %p475 = pneg %p242
        $region46: #{vit_forward.1} parent=11 // pred_check_branch
          %477 = sbr.rel (%p475) target = $region48
        $region47: #{vit_forward.1} parent=11 // pred_region
          _
        $region48: #{vit_forward.1} parent=11 // pred_fallthru
          _
        // Predicated region
        $region49: #{vit_forward.1} parent=11 // pred_check
          %p478 = pneg %p263
        $region50: #{vit_forward.1} parent=11 // pred_check_branch
          %480 = sbr.rel (%p478) target = $region52
        $region51: #{vit_forward.1} parent=11 // pred_region
          _
        $region52: #{vit_forward.1} parent=11 // pred_fallthru
          _
        // Predicated region
        $region53: #{vit_forward.1} parent=11 // pred_check
          %p481 = pneg %p284
        $region54: #{vit_forward.1} parent=11 // pred_check_branch
          %483 = sbr.rel (%p481) target = $region56
        $region55: #{vit_forward.1} parent=11 // pred_region
          _
        $region56: #{vit_forward.1} parent=11 // pred_fallthru
          _
        // Predicated region
        $region57: #{vit_forward.1} parent=11 // pred_check
          %p484 = pneg %p305
        $region58: #{vit_forward.1} parent=11 // pred_check_branch
          %486 = sbr.rel (%p484) target = $region60
        $region59: #{vit_forward.1} parent=11 // pred_region
          _
        $region60: #{vit_forward.1} parent=11 // pred_fallthru
          _
        // Predicated region
        $region61: #{vit_forward.1} parent=11 // pred_check
          %p487 = pneg %p326
        $region62: #{vit_forward.1} parent=11 // pred_check_branch
          %489 = sbr.rel (%p487) target = $region64
        $region63: #{vit_forward.1} parent=11 // pred_region
          _
        $region64: #{vit_forward.1} parent=11 // pred_fallthru
          _
        // Predicated region
        $region65: #{vit_forward.1} parent=11 // pred_check
          %p490 = pneg %p347
        $region66: #{vit_forward.1} parent=11 // pred_check_branch
          %492 = sbr.rel (%p490) target = $region68
        $region67: #{vit_forward.1} parent=11 // pred_region
          _
        $region68: #{vit_forward.1} parent=11 // pred_fallthru
          _
        // Predicated region
        $region69: #{vit_forward.1} parent=11 // pred_check
          %p493 = pneg %p368
        $region70: #{vit_forward.1} parent=11 // pred_check_branch
          %495 = sbr.rel (%p493) target = $region72
        $region71: #{vit_forward.1} parent=11 // pred_region
          _
        $region72: #{vit_forward.1} parent=11 // pred_fallthru
          _
        // Predicated region
        $region73: #{vit_forward.1} parent=11 // pred_check
          %p496 = pneg %p389
        $region74: #{vit_forward.1} parent=11 // pred_check_branch
          %498 = sbr.rel (%p496) target = $region76
        $region75: #{vit_forward.1} parent=11 // pred_region
          _
        $region76: #{vit_forward.1} parent=11 // pred_fallthru
          _
        // Predicated region
        $region77: #{vit_forward.1} parent=11 // pred_check
          %p499 = pneg %p410
        $region78: #{vit_forward.1} parent=11 // pred_check_branch
          %501 = sbr.rel (%p499) target = $region80
        $region79: #{vit_forward.1} parent=11 // pred_region
          _
        $region80: #{vit_forward.1} parent=11 // pred_fallthru
          _
      $region12: #{vit_forward.1} parent=5 // pred_fallthru
        _
      %p502 = scmp.lt.s32.totalorder %s27, 2
      // Predicated region
      $region81: #{vit_forward.1} parent=5 // pred_check
        %p503 = pneg %p502
      $region82: #{vit_forward.1} parent=5 // pred_check_branch
        %505 = sbr.rel (%p503) target = $region84
      $region83: #{vit_forward.1} parent=5 // pred_region
        // Predicated region
        $region85: #{vit_forward.1} parent=83 // pred_check
          %p506 = pneg %p47
        $region86: #{vit_forward.1} parent=83 // pred_check_branch
          %508 = sbr.rel (%p506) target = $region88
        $region87: #{vit_forward.1} parent=83 // pred_region
          %p509 = scmp.lt.s32.totalorder %s27, 1
          %s510 = scalar_select %p509, %s27, 1
          %s511 = smul.addr %s510, 3
          %s512 = smul.addr %s511, 8
          %s513 = scalar_lea.vmem %s0, %s512
        $region88: #{vit_forward.1} parent=83 // pred_fallthru
          _
      $region84: #{vit_forward.1} parent=5 // pred_fallthru
        _
      %p514 = scmp.le.s32.totalorder 1, %s27
      %p515 = scmp.lt.s32.totalorder %s27, 3
      %p516 = pnand %p514, %p515
      %p517 = pneg %p516
      // Predicated region
      $region89: #{vit_forward.1} parent=5 // pred_check
        _
      $region90: #{vit_forward.1} parent=5 // pred_check_branch
        %519 = sbr.rel (%p516) target = $region92
      $region91: #{vit_forward.1} parent=5 // pred_region
        %s520 = ssub.s32 %s27, 1
        %p521 = scmp.lt.s32.totalorder %s32, 1
        %s522 = scalar_select %p521, %s32, 1
        %s523 = smul.addr %s522, 3
        %s524 = smul.addr %s523, 8
        %s525 = scalar_lea.vmem %s0, %s524
        %p526 = pneg %p53
        %p527 = pneg %p50
        %p528 = pneg %p74
        %p529 = pneg %p71
        %p530 = pneg %p95
        %p531 = pneg %p92
        %p532 = pneg %p116
        %p533 = pneg %p113
        %p534 = pneg %p137
        %p535 = pneg %p134
        %p536 = pneg %p158
        %p537 = pneg %p155
        %p538 = pneg %p179
        %p539 = pneg %p176
        %p540 = pneg %p200
        %p541 = pneg %p197
        %p542 = pneg %p221
        %p543 = pneg %p218
        %p544 = pneg %p242
        %p545 = pneg %p239
        %p546 = pneg %p263
        %p547 = pneg %p260
        %p548 = pneg %p284
        %p549 = pneg %p281
        %p550 = pneg %p305
        %p551 = pneg %p302
        %p552 = pneg %p326
        %p553 = pneg %p323
        %p554 = pneg %p347
        %p555 = pneg %p344
        %p556 = pneg %p368
        %p557 = pneg %p365
        %p558 = pneg %p389
        %p559 = pneg %p386
        %p560 = pneg %p410
        %p561 = pneg %p407
        %p562 = pneg %p436
        %p563 = pneg %p433
        %s564 = sand.u32 %s423, 1
        %s565 = scalar_lea.sflag [#allocation3], %s564
        %s566 = sand.u32 %s423, 1
        %s567 = scalar_lea.vmem [#allocation2], %s566
        %p568 = scmp.lt.s32.totalorder %s32, 1
        %s569 = scalar_select %p568, %s32, 1
        %s570 = smul.addr %s569, 3
        %s571 = smul.addr %s570, 8
        %s572 = scalar_lea.vmem %s0, %s571
        %v574 = vld [vmem:[%s572] sm:$0xff]
        %v575 = vld [vmem:[%s572 + $0x8] sm:$0xff]
        %v576 = vld [vmem:[%s572 + $0x10] sm:$0xff]
        %v577 = vpack.c.bf16 %v575, %v574
        %v578 = vpack.c.bf16 %v576, %v576
        %v579 = vld [vmem:[%s2] sm:$0xf]
        %v580 = vld [vmem:[%s2 + $0x4] sm:$0xf]
        %v581 = vld [vmem:[%s2 + $0x8] sm:$0xf]
        %v582 = vld [vmem:[%s2 + $0xc] sm:$0xf]
        %v583 = vld [vmem:[%s2 + $0x10] sm:$0xf]
        %v584 = vld [vmem:[%s2 + $0x14] sm:$0xf]
        %v585 = vld [vmem:[%s1] sm:$0xff]
        %v586 = vld [vmem:[%s1 + $0x8] sm:$0xff]
        %v587 = vld [vmem:[%s1 + $0x10] sm:$0xff]
        %v594 = vunpack.c.l.b16 %v579
        %v595 = vunpack.c.l.b16 %v580
        %v596 = vunpack.c.l.b16 %v581
        %v597 = vunpack.c.l.b16 %v582
        %v598 = vunpack.c.l.b16 %v583
        %v599 = vunpack.c.l.b16 %v584
        %v600 = vpack.c.b16 %v595, %v594
        %v601 = vpack.c.b16 %v597, %v596
        %v602 = vpack.c.b16 %v599, %v598
        %vm606 = vcmask 392192
        %v608 = vsel %vm606, %v577, 0
        %v611 = vsel %vm606, %v578, 0
        %613 = vmatprep.subr.bf16.mxu0 0
        %614 = vmatpush1.bf16.msra.mxu0 0
        %615 = vmatprep.subr.bf16.mxu0 0
        %616 = vmatpush1.bf16.msra.mxu0 0
        %617 = vmatprep.subr.bf16.mxu0 0
        %618 = vmatpush1.bf16.msra.mxu0 0
        %619 = vmatprep.subr.bf16.mxu0 0
        %620 = vmatpush1.bf16.msra.mxu0 0
        %621 = vmatprep.subr.bf16.mxu0 0
        %622 = vmatpush1.bf16.msra.mxu0 0
        %623 = vmatprep.subr.bf16.mxu0 0
        %624 = vmatpush1.bf16.msra.mxu0 %v602
        %625 = vmatprep.subr.bf16.mxu0 0
        %626 = vmatpush1.bf16.msra.mxu0 %v601
        %627 = vmatprep.subr.bf16.mxu0 0
        %628 = vmatpush1.bf16.msra.mxu0 %v600
        %629 = vmatprep.subr.bf16.mxu0 0
        %630 = vmatpush2.bf16.msra.mxu0 0
        %631 = vmatprep.subr.bf16.mxu0 0
        %632 = vmatpush2.bf16.msra.mxu0 0
        %633 = vmatprep.subr.bf16.mxu0 0
        %634 = vmatpush2.bf16.msra.mxu0 0
        %635 = vmatprep.subr.bf16.mxu0 0
        %636 = vmatpush2.bf16.msra.mxu0 0
        %637 = vmatprep.subr.bf16.mxu0 0
        %638 = vmatpush2.bf16.msra.mxu0 0
        %639 = vmatprep.subr.bf16.mxu0 0
        %640 = vmatpush2.bf16.msra.mxu0 0
        %641 = vmatprep.subr.bf16.mxu0 0
        %642 = vmatpush2.bf16.msra.mxu0 0
        %643 = vmatprep.subr.bf16.mxu0 0
        %644 = vmatpush2.bf16.msra.mxu0 0
        %645 = vmatprep.mubr.bf16.mxu0 0
        %646 = vmatmul.mubr.bf16.gmra.mxu0 %v608
        %v647 = vpop.f32.mrf.mxu0
        %v648 = vadd.f32 %v585, %v647
        %v649 = vpop.f32.mrf.mxu0
        %v650 = vpop.f32.mrf.mxu0
        %v651 = vadd.f32 %v586, %v650
        %v652 = vpop.f32.mrf.mxu0
        %653 = vmatprep.mubr.bf16.mxu0 0
        %654 = vmatmul.mubr.bf16.gmra.mxu0 %v611
        %v655 = vpop.f32.mrf.mxu0
        %v656 = vadd.f32 %v587, %v655
        %v657 = vpop.f32.mrf.mxu0
        %v658 = vpop.f32.mrf.mxu0
        %v659 = vpop.f32.mrf.mxu0
        %660 = vdwg.mxu0
        %v661 = vlaneseq
        %v662 = vand.u32 %v661, 127
        %vm663 = vcmp.lt.s32.totalorder %v662, 17
        %v664 = vld [vmem:[%s3] sm:$0x1]
        %v665 = vld [vmem:[%s4] sm:$0x1]
        %vm666 = vcmask 523264
        %v667 = vsel %vm666, %v648, 0.0
        %668 = vadd.xlane.f32.xlu0 %v667
        %v669 = vpop.xlane.xlu0 %668
        %v670 = vsel %vm666, %v651, 0.0
        %671 = vadd.xlane.f32.xlu0 %v670
        %v672 = vpop.xlane.xlu0 %671
        %v673 = vsel %vm666, %v656, 0.0
        %674 = vadd.xlane.f32.xlu0 %v673
        %v675 = vpop.xlane.xlu0 %674
        %v676 = vrcp.pop 64.0
        %v677 = vmul.f32 %v669, %v676
        %v678 = vmul.f32 %v672, %v676
        %v679 = vmul.f32 %v675, %v676
        %v680 = vsub.f32 %v648, %v677
        %v681 = vsub.f32 %v651, %v678
        %v682 = vsub.f32 %v656, %v679
        %v683 = vmul.f32 %v680, %v680
        %v684 = vmul.f32 %v681, %v681
        %v685 = vmul.f32 %v682, %v682
        %v686 = vsel %vm666, %v683, 0.0
        %687 = vadd.xlane.f32.xlu0 %v686
        %v688 = vpop.xlane.xlu0 %687
        %v689 = vsel %vm666, %v684, 0.0
        %690 = vadd.xlane.f32.xlu0 %v689
        %v691 = vpop.xlane.xlu0 %690
        %v692 = vsel %vm666, %v685, 0.0
        %693 = vadd.xlane.f32.xlu0 %v692
        %v694 = vpop.xlane.xlu0 %693
        %v695 = vmul.f32 %v688, %v676
        %v696 = vmul.f32 %v691, %v676
        %v697 = vmul.f32 %v694, %v676
        %v698 = vadd.f32 %v695, 1e-05
        %v699 = vadd.f32 %v696, 1e-05
        %v700 = vadd.f32 %v697, 1e-05
        %v701 = vrsqrt.pop %v698
        %v702 = vrsqrt.pop %v699
        %v703 = vrsqrt.pop %v700
        %v704 = vmul.f32 %v680, %v701
        %v705 = vmul.f32 %v681, %v702
        %v706 = vmul.f32 %v682, %v703
        %v708 = vlaneseq
        %v709 = vshrl.u32 %v708, 7
        %v710 = vsub.s32 0, %v709
        %v711 = vrot.slane %v664, %v710
        %v713 = vmul.f32 %v704, %v711
        %v714 = vmul.f32 %v705, %v711
        %v715 = vmul.f32 %v706, %v711
        %v717 = vlaneseq
        %v718 = vshrl.u32 %v717, 7
        %v719 = vsub.s32 0, %v718
        %v720 = vrot.slane %v665, %v719
        %v722 = vadd.f32 %v713, %v720
        %v723 = vadd.f32 %v714, %v720
        %v724 = vadd.f32 %v715, %v720
        %v725 = vpack.c.bf16 %v723, %v722
        %v726 = vpack.c.bf16 %v724, %v724
        %v727 = vld [vmem:[%s5] sm:$0xf]
        %v728 = vld [vmem:[%s5 + $0x4] sm:$0xf]
        %v729 = vld [vmem:[%s5 + $0x8] sm:$0xf]
        %v730 = vld [vmem:[%s5 + $0xc] sm:$0xf]
        %v731 = vld [vmem:[%s5 + $0x10] sm:$0xf]
        %v732 = vld [vmem:[%s5 + $0x14] sm:$0xf]
        %v733 = vld [vmem:[%s5 + $0x18] sm:$0xf]
        %v734 = vld [vmem:[%s5 + $0x1c] sm:$0xf]
        %v735 = vld [vmem:[%s5 + $0x20] sm:$0xf]
        %v736 = vld [vmem:[%s5 + $0x24] sm:$0xf]
        %v737 = vld [vmem:[%s5 + $0x28] sm:$0xf]
        %v738 = vld [vmem:[%s5 + $0x2c] sm:$0xf]
        %v739 = vld [vmem:[%s5 + $0x30] sm:$0xf]
        %v740 = vld [vmem:[%s5 + $0x34] sm:$0xf]
        %v741 = vld [vmem:[%s5 + $0x38] sm:$0xf]
        %v742 = vld [vmem:[%s5 + $0x3c] sm:$0xf]
        %v743 = vld [vmem:[%s5 + $0x40] sm:$0xf]
        %v744 = vld [vmem:[%s5 + $0x44] sm:$0xf]
        %v745 = vld [vmem:[%s5 + $0x48] sm:$0xf]
        %v746 = vld [vmem:[%s5 + $0x4c] sm:$0xf]
        %v747 = vld [vmem:[%s5 + $0x50] sm:$0xf]
        %v748 = vld [vmem:[%s5 + $0x54] sm:$0xf]
        %v749 = vld [vmem:[%s5 + $0x58] sm:$0xf]
        %v750 = vld [vmem:[%s5 + $0x5c] sm:$0xf]
        %v751 = vld [vmem:[%s5 + $0x60] sm:$0xf]
        %v752 = vld [vmem:[%s5 + $0x64] sm:$0xf]
        %v753 = vld [vmem:[%s5 + $0x68] sm:$0xf]
        %v754 = vld [vmem:[%s5 + $0x6c] sm:$0xf]
        %v755 = vld [vmem:[%s5 + $0x70] sm:$0xf]
        %v756 = vld [vmem:[%s5 + $0x74] sm:$0xf]
        %v757 = vld [vmem:[%s5 + $0x78] sm:$0xf]
        %v758 = vld [vmem:[%s5 + $0x7c] sm:$0xf]
        %v759 = vld [vmem:[%s5 + $0x80] sm:$0xf]
        %v760 = vld [vmem:[%s5 + $0x84] sm:$0xf]
        %v761 = vld [vmem:[%s5 + $0x88] sm:$0xf]
        %v762 = vld [vmem:[%s5 + $0x8c] sm:$0xf]
        %v763 = vld [vmem:[%s5 + $0x90] sm:$0xf]
        %v764 = vld [vmem:[%s5 + $0x94] sm:$0xf]
        %v765 = vld [vmem:[%s5 + $0x98] sm:$0xf]
        %v766 = vld [vmem:[%s5 + $0x9c] sm:$0xf]
        %v767 = vld [vmem:[%s5 + $0xa0] sm:$0xf]
        %v768 = vld [vmem:[%s5 + $0xa4] sm:$0xf]
        %v769 = vld [vmem:[%s5 + $0xa8] sm:$0xf]
        %v770 = vld [vmem:[%s5 + $0xac] sm:$0xf]
        %v771 = vld [vmem:[%s5 + $0xb0] sm:$0xf]
        %v772 = vld [vmem:[%s5 + $0xb4] sm:$0xf]
        %v773 = vld [vmem:[%s5 + $0xb8] sm:$0xf]
        %v774 = vld [vmem:[%s5 + $0xbc] sm:$0xf]
        %v783 = vunpack.c.l.b16 %v727
        %v784 = vunpack.c.l.b16 %v728
        %v785 = vunpack.c.l.b16 %v729
        %v786 = vunpack.c.l.b16 %v730
        %v787 = vunpack.c.l.b16 %v731
        %v788 = vunpack.c.l.b16 %v732
        %v789 = vunpack.c.l.b16 %v733
        %v790 = vunpack.c.l.b16 %v734
        %v791 = vpack.c.b16 %v784, %v783
        %v792 = vpack.c.b16 %v786, %v785
        %v793 = vpack.c.b16 %v788, %v787
        %v794 = vpack.c.b16 %v790, %v789
        %v800 = vsel %vm666, %v725, 0
        %v803 = vsel %vm666, %v726, 0
        %805 = vmatprep.subr.bf16.mxu0 0
        %806 = vmatpush1.bf16.msra.mxu0 0
        %807 = vmatprep.subr.bf16.mxu0 0
        %808 = vmatpush1.bf16.msra.mxu0 0
        %809 = vmatprep.subr.bf16.mxu0 0
        %810 = vmatpush1.bf16.msra.mxu0 0
        %811 = vmatprep.subr.bf16.mxu0 0
        %812 = vmatpush1.bf16.msra.mxu0 0
        %813 = vmatprep.subr.bf16.mxu0 0
        %814 = vmatpush1.bf16.msra.mxu0 %v794
        %815 = vmatprep.subr.bf16.mxu0 0
        %816 = vmatpush1.bf16.msra.mxu0 %v793
        %817 = vmatprep.subr.bf16.mxu0 0
        %818 = vmatpush1.bf16.msra.mxu0 %v792
        %819 = vmatprep.subr.bf16.mxu0 0
        %820 = vmatpush1.bf16.msra.mxu0 %v791
        %821 = vmatprep.subr.bf16.mxu0 0
        %822 = vmatpush2.bf16.msra.mxu0 0
        %823 = vmatprep.subr.bf16.mxu0 0
        %824 = vmatpush2.bf16.msra.mxu0 0
        %825 = vmatprep.subr.bf16.mxu0 0
        %826 = vmatpush2.bf16.msra.mxu0 0
        %827 = vmatprep.subr.bf16.mxu0 0
        %828 = vmatpush2.bf16.msra.mxu0 0
        %829 = vmatprep.subr.bf16.mxu0 0
        %830 = vmatpush2.bf16.msra.mxu0 0
        %831 = vmatprep.subr.bf16.mxu0 0
        %832 = vmatpush2.bf16.msra.mxu0 0
        %833 = vmatprep.subr.bf16.mxu0 0
        %834 = vmatpush2.bf16.msra.mxu0 0
        %835 = vmatprep.subr.bf16.mxu0 0
        %836 = vmatpush2.bf16.msra.mxu0 0
        %837 = vmatprep.mubr.bf16.mxu0 0
        %838 = vmatmul.mubr.bf16.gmra.mxu0 %v800
        %v839 = vpop.f32.mrf.mxu0
        %v840 = vadd.f32 0.0, %v839
        %v841 = vpop.f32.mrf.mxu0
        %v842 = vpop.f32.mrf.mxu0
        %v843 = vadd.f32 0.0, %v842
        %v844 = vpop.f32.mrf.mxu0
        %845 = vmatprep.mubr.bf16.mxu0 0
        %846 = vmatmul.mubr.bf16.gmra.mxu0 %v803
        %v847 = vpop.f32.mrf.mxu0
        %v848 = vadd.f32 0.0, %v847
        %v849 = vpop.f32.mrf.mxu0
        %v850 = vpop.f32.mrf.mxu0
        %v851 = vpop.f32.mrf.mxu0
        %852 = vdwg.mxu0
        %v861 = vunpack.c.l.b16 %v735
        %v862 = vunpack.c.l.b16 %v736
        %v863 = vunpack.c.l.b16 %v737
        %v864 = vunpack.c.l.b16 %v738
        %v865 = vunpack.c.l.b16 %v739
        %v866 = vunpack.c.l.b16 %v740
        %v867 = vunpack.c.l.b16 %v741
        %v868 = vunpack.c.l.b16 %v742
        %v869 = vpack.c.b16 %v862, %v861
        %v870 = vpack.c.b16 %v864, %v863
        %v871 = vpack.c.b16 %v866, %v865
        %v872 = vpack.c.b16 %v868, %v867
        %877 = vmatprep.subr.bf16.mxu0 0
        %878 = vmatpush1.bf16.msra.mxu0 0
        %879 = vmatprep.subr.bf16.mxu0 0
        %880 = vmatpush1.bf16.msra.mxu0 0
        %881 = vmatprep.subr.bf16.mxu0 0
        %882 = vmatpush1.bf16.msra.mxu0 0
        %883 = vmatprep.subr.bf16.mxu0 0
        %884 = vmatpush1.bf16.msra.mxu0 0
        %885 = vmatprep.subr.bf16.mxu0 0
        %886 = vmatpush1.bf16.msra.mxu0 %v872
        %887 = vmatprep.subr.bf16.mxu0 0
        %888 = vmatpush1.bf16.msra.mxu0 %v871
        %889 = vmatprep.subr.bf16.mxu0 0
        %890 = vmatpush1.bf16.msra.mxu0 %v870
        %891 = vmatprep.subr.bf16.mxu0 0
        %892 = vmatpush1.bf16.msra.mxu0 %v869
        %893 = vmatprep.subr.bf16.mxu0 0
        %894 = vmatpush2.bf16.msra.mxu0 0
        %895 = vmatprep.subr.bf16.mxu0 0
        %896 = vmatpush2.bf16.msra.mxu0 0
        %897 = vmatprep.subr.bf16.mxu0 0
        %898 = vmatpush2.bf16.msra.mxu0 0
        %899 = vmatprep.subr.bf16.mxu0 0
        %900 = vmatpush2.bf16.msra.mxu0 0
        %901 = vmatprep.subr.bf16.mxu0 0
        %902 = vmatpush2.bf16.msra.mxu0 0
        %903 = vmatprep.subr.bf16.mxu0 0
        %904 = vmatpush2.bf16.msra.mxu0 0
        %905 = vmatprep.subr.bf16.mxu0 0
        %906 = vmatpush2.bf16.msra.mxu0 0
        %907 = vmatprep.subr.bf16.mxu0 0
        %908 = vmatpush2.bf16.msra.mxu0 0
        %909 = vmatprep.mubr.bf16.mxu0 0
        %910 = vmatmul.mubr.bf16.gmra.mxu0 %v800
        %v911 = vpop.f32.mrf.mxu0
        %v912 = vadd.f32 0.0, %v911
        %v913 = vpop.f32.mrf.mxu0
        %v914 = vpop.f32.mrf.mxu0
        %v915 = vadd.f32 0.0, %v914
        %v916 = vpop.f32.mrf.mxu0
        %917 = vmatprep.mubr.bf16.mxu0 0
        %918 = vmatmul.mubr.bf16.gmra.mxu0 %v803
        %v919 = vpop.f32.mrf.mxu0
        %v920 = vadd.f32 0.0, %v919
        %v921 = vpop.f32.mrf.mxu0
        %v922 = vpop.f32.mrf.mxu0
        %v923 = vpop.f32.mrf.mxu0
        %924 = vdwg.mxu0
        %v933 = vunpack.c.l.b16 %v743
        %v934 = vunpack.c.l.b16 %v744
        %v935 = vunpack.c.l.b16 %v745
        %v936 = vunpack.c.l.b16 %v746
        %v937 = vunpack.c.l.b16 %v747
        %v938 = vunpack.c.l.b16 %v748
        %v939 = vunpack.c.l.b16 %v749
        %v940 = vunpack.c.l.b16 %v750
        %v941 = vpack.c.b16 %v934, %v933
        %v942 = vpack.c.b16 %v936, %v935
        %v943 = vpack.c.b16 %v938, %v937
        %v944 = vpack.c.b16 %v940, %v939
        %949 = vmatprep.subr.bf16.mxu0 0
        %950 = vmatpush1.bf16.msra.mxu0 0
        %951 = vmatprep.subr.bf16.mxu0 0
        %952 = vmatpush1.bf16.msra.mxu0 0
        %953 = vmatprep.subr.bf16.mxu0 0
        %954 = vmatpush1.bf16.msra.mxu0 0
        %955 = vmatprep.subr.bf16.mxu0 0
        %956 = vmatpush1.bf16.msra.mxu0 0
        %957 = vmatprep.subr.bf16.mxu0 0
        %958 = vmatpush1.bf16.msra.mxu0 %v944
        %959 = vmatprep.subr.bf16.mxu0 0
        %960 = vmatpush1.bf16.msra.mxu0 %v943
        %961 = vmatprep.subr.bf16.mxu0 0
        %962 = vmatpush1.bf16.msra.mxu0 %v942
        %963 = vmatprep.subr.bf16.mxu0 0
        %964 = vmatpush1.bf16.msra.mxu0 %v941
        %965 = vmatprep.subr.bf16.mxu0 0
        %966 = vmatpush2.bf16.msra.mxu0 0
        %967 = vmatprep.subr.bf16.mxu0 0
        %968 = vmatpush2.bf16.msra.mxu0 0
        %969 = vmatprep.subr.bf16.mxu0 0
        %970 = vmatpush2.bf16.msra.mxu0 0
        %971 = vmatprep.subr.bf16.mxu0 0
        %972 = vmatpush2.bf16.msra.mxu0 0
        %973 = vmatprep.subr.bf16.mxu0 0
        %974 = vmatpush2.bf16.msra.mxu0 0
        %975 = vmatprep.subr.bf16.mxu0 0
        %976 = vmatpush2.bf16.msra.mxu0 0
        %977 = vmatprep.subr.bf16.mxu0 0
        %978 = vmatpush2.bf16.msra.mxu0 0
        %979 = vmatprep.subr.bf16.mxu0 0
        %980 = vmatpush2.bf16.msra.mxu0 0
        %981 = vmatprep.mubr.bf16.mxu0 0
        %982 = vmatmul.mubr.bf16.gmra.mxu0 %v800
        %v983 = vpop.f32.mrf.mxu0
        %v984 = vadd.f32 0.0, %v983
        %v985 = vpop.f32.mrf.mxu0
        %v986 = vpop.f32.mrf.mxu0
        %v987 = vadd.f32 0.0, %v986
        %v988 = vpop.f32.mrf.mxu0
        %989 = vmatprep.mubr.bf16.mxu0 0
        %990 = vmatmul.mubr.bf16.gmra.mxu0 %v803
        %v991 = vpop.f32.mrf.mxu0
        %v992 = vadd.f32 0.0, %v991
        %v993 = vpop.f32.mrf.mxu0
        %v994 = vpop.f32.mrf.mxu0
        %v995 = vpop.f32.mrf.mxu0
        %996 = vdwg.mxu0
        %v1005 = vunpack.c.l.b16 %v751
        %v1006 = vunpack.c.l.b16 %v752
        %v1007 = vunpack.c.l.b16 %v753
        %v1008 = vunpack.c.l.b16 %v754
        %v1009 = vunpack.c.l.b16 %v755
        %v1010 = vunpack.c.l.b16 %v756
        %v1011 = vunpack.c.l.b16 %v757
        %v1012 = vunpack.c.l.b16 %v758
        %v1013 = vpack.c.b16 %v1006, %v1005
        %v1014 = vpack.c.b16 %v1008, %v1007
        %v1015 = vpack.c.b16 %v1010, %v1009
        %v1016 = vpack.c.b16 %v1012, %v1011
        %1021 = vmatprep.subr.bf16.mxu0 0
        %1022 = vmatpush1.bf16.msra.mxu0 0
        %1023 = vmatprep.subr.bf16.mxu0 0
        %1024 = vmatpush1.bf16.msra.mxu0 0
        %1025 = vmatprep.subr.bf16.mxu0 0
        %1026 = vmatpush1.bf16.msra.mxu0 0
        %1027 = vmatprep.subr.bf16.mxu0 0
        %1028 = vmatpush1.bf16.msra.mxu0 0
        %1029 = vmatprep.subr.bf16.mxu0 0
        %1030 = vmatpush1.bf16.msra.mxu0 %v1016
        %1031 = vmatprep.subr.bf16.mxu0 0
        %1032 = vmatpush1.bf16.msra.mxu0 %v1015
        %1033 = vmatprep.subr.bf16.mxu0 0
        %1034 = vmatpush1.bf16.msra.mxu0 %v1014
        %1035 = vmatprep.subr.bf16.mxu0 0
        %1036 = vmatpush1.bf16.msra.mxu0 %v1013
        %1037 = vmatprep.subr.bf16.mxu0 0
        %1038 = vmatpush2.bf16.msra.mxu0 0
        %1039 = vmatprep.subr.bf16.mxu0 0
        %1040 = vmatpush2.bf16.msra.mxu0 0
        %1041 = vmatprep.subr.bf16.mxu0 0
        %1042 = vmatpush2.bf16.msra.mxu0 0
        %1043 = vmatprep.subr.bf16.mxu0 0
        %1044 = vmatpush2.bf16.msra.mxu0 0
        %1045 = vmatprep.subr.bf16.mxu0 0
        %1046 = vmatpush2.bf16.msra.mxu0 0
        %1047 = vmatprep.subr.bf16.mxu0 0
        %1048 = vmatpush2.bf16.msra.mxu0 0
        %1049 = vmatprep.subr.bf16.mxu0 0
        %1050 = vmatpush2.bf16.msra.mxu0 0
        %1051 = vmatprep.subr.bf16.mxu0 0
        %1052 = vmatpush2.bf16.msra.mxu0 0
        %1053 = vmatprep.mubr.bf16.mxu0 0
        %1054 = vmatmul.mubr.bf16.gmra.mxu0 %v800
        %v1055 = vpop.f32.mrf.mxu0
        %v1056 = vadd.f32 0.0, %v1055
        %v1057 = vpop.f32.mrf.mxu0
        %v1058 = vpop.f32.mrf.mxu0
        %v1059 = vadd.f32 0.0, %v1058
        %v1060 = vpop.f32.mrf.mxu0
        %1061 = vmatprep.mubr.bf16.mxu0 0
        %1062 = vmatmul.mubr.bf16.gmra.mxu0 %v803
        %v1063 = vpop.f32.mrf.mxu0
        %v1064 = vadd.f32 0.0, %v1063
        %v1065 = vpop.f32.mrf.mxu0
        %v1066 = vpop.f32.mrf.mxu0
        %v1067 = vpop.f32.mrf.mxu0
        %1068 = vdwg.mxu0
        %v1077 = vunpack.c.l.b16 %v759
        %v1078 = vunpack.c.l.b16 %v760
        %v1079 = vunpack.c.l.b16 %v761
        %v1080 = vunpack.c.l.b16 %v762
        %v1081 = vunpack.c.l.b16 %v763
        %v1082 = vunpack.c.l.b16 %v764
        %v1083 = vunpack.c.l.b16 %v765
        %v1084 = vunpack.c.l.b16 %v766
        %v1085 = vpack.c.b16 %v1078, %v1077
        %v1086 = vpack.c.b16 %v1080, %v1079
        %v1087 = vpack.c.b16 %v1082, %v1081
        %v1088 = vpack.c.b16 %v1084, %v1083
        %1093 = vmatprep.subr.bf16.mxu0 0
        %1094 = vmatpush1.bf16.msra.mxu0 0
        %1095 = vmatprep.subr.bf16.mxu0 0
        %1096 = vmatpush1.bf16.msra.mxu0 0
        %1097 = vmatprep.subr.bf16.mxu0 0
        %1098 = vmatpush1.bf16.msra.mxu0 0
        %1099 = vmatprep.subr.bf16.mxu0 0
        %1100 = vmatpush1.bf16.msra.mxu0 0
        %1101 = vmatprep.subr.bf16.mxu0 0
        %1102 = vmatpush1.bf16.msra.mxu0 %v1088
        %1103 = vmatprep.subr.bf16.mxu0 0
        %1104 = vmatpush1.bf16.msra.mxu0 %v1087
        %1105 = vmatprep.subr.bf16.mxu0 0
        %1106 = vmatpush1.bf16.msra.mxu0 %v1086
        %1107 = vmatprep.subr.bf16.mxu0 0
        %1108 = vmatpush1.bf16.msra.mxu0 %v1085
        %1109 = vmatprep.subr.bf16.mxu0 0
        %1110 = vmatpush2.bf16.msra.mxu0 0
        %1111 = vmatprep.subr.bf16.mxu0 0
        %1112 = vmatpush2.bf16.msra.mxu0 0
        %1113 = vmatprep.subr.bf16.mxu0 0
        %1114 = vmatpush2.bf16.msra.mxu0 0
        %1115 = vmatprep.subr.bf16.mxu0 0
        %1116 = vmatpush2.bf16.msra.mxu0 0
        %1117 = vmatprep.subr.bf16.mxu0 0
        %1118 = vmatpush2.bf16.msra.mxu0 0
        %1119 = vmatprep.subr.bf16.mxu0 0
        %1120 = vmatpush2.bf16.msra.mxu0 0
        %1121 = vmatprep.subr.bf16.mxu0 0
        %1122 = vmatpush2.bf16.msra.mxu0 0
        %1123 = vmatprep.subr.bf16.mxu0 0
        %1124 = vmatpush2.bf16.msra.mxu0 0
        %1125 = vmatprep.mubr.bf16.mxu0 0
        %1126 = vmatmul.mubr.bf16.gmra.mxu0 %v800
        %v1127 = vpop.f32.mrf.mxu0
        %v1128 = vadd.f32 0.0, %v1127
        %v1129 = vpop.f32.mrf.mxu0
        %v1130 = vpop.f32.mrf.mxu0
        %v1131 = vadd.f32 0.0, %v1130
        %v1132 = vpop.f32.mrf.mxu0
        %1133 = vmatprep.mubr.bf16.mxu0 0
        %1134 = vmatmul.mubr.bf16.gmra.mxu0 %v803
        %v1135 = vpop.f32.mrf.mxu0
        %v1136 = vadd.f32 0.0, %v1135
        %v1137 = vpop.f32.mrf.mxu0
        %v1138 = vpop.f32.mrf.mxu0
        %v1139 = vpop.f32.mrf.mxu0
        %1140 = vdwg.mxu0
        %v1149 = vunpack.c.l.b16 %v767
        %v1150 = vunpack.c.l.b16 %v768
        %v1151 = vunpack.c.l.b16 %v769
        %v1152 = vunpack.c.l.b16 %v770
        %v1153 = vunpack.c.l.b16 %v771
        %v1154 = vunpack.c.l.b16 %v772
        %v1155 = vunpack.c.l.b16 %v773
        %v1156 = vunpack.c.l.b16 %v774
        %v1157 = vpack.c.b16 %v1150, %v1149
        %v1158 = vpack.c.b16 %v1152, %v1151
        %v1159 = vpack.c.b16 %v1154, %v1153
        %v1160 = vpack.c.b16 %v1156, %v1155
        %1165 = vmatprep.subr.bf16.mxu0 0
        %1166 = vmatpush1.bf16.msra.mxu0 0
        %1167 = vmatprep.subr.bf16.mxu0 0
        %1168 = vmatpush1.bf16.msra.mxu0 0
        %1169 = vmatprep.subr.bf16.mxu0 0
        %1170 = vmatpush1.bf16.msra.mxu0 0
        %1171 = vmatprep.subr.bf16.mxu0 0
        %1172 = vmatpush1.bf16.msra.mxu0 0
        %1173 = vmatprep.subr.bf16.mxu0 0
        %1174 = vmatpush1.bf16.msra.mxu0 %v1160
        %1175 = vmatprep.subr.bf16.mxu0 0
        %1176 = vmatpush1.bf16.msra.mxu0 %v1159
        %1177 = vmatprep.subr.bf16.mxu0 0
        %1178 = vmatpush1.bf16.msra.mxu0 %v1158
        %1179 = vmatprep.subr.bf16.mxu0 0
        %1180 = vmatpush1.bf16.msra.mxu0 %v1157
        %1181 = vmatprep.subr.bf16.mxu0 0
        %1182 = vmatpush2.bf16.msra.mxu0 0
        %1183 = vmatprep.subr.bf16.mxu0 0
        %1184 = vmatpush2.bf16.msra.mxu0 0
        %1185 = vmatprep.subr.bf16.mxu0 0
        %1186 = vmatpush2.bf16.msra.mxu0 0
        %1187 = vmatprep.subr.bf16.mxu0 0
        %1188 = vmatpush2.bf16.msra.mxu0 0
        %1189 = vmatprep.subr.bf16.mxu0 0
        %1190 = vmatpush2.bf16.msra.mxu0 0
        %1191 = vmatprep.subr.bf16.mxu0 0
        %1192 = vmatpush2.bf16.msra.mxu0 0
        %1193 = vmatprep.subr.bf16.mxu0 0
        %1194 = vmatpush2.bf16.msra.mxu0 0
        %1195 = vmatprep.subr.bf16.mxu0 0
        %1196 = vmatpush2.bf16.msra.mxu0 0
        %1197 = vmatprep.mubr.bf16.mxu0 0
        %1198 = vmatmul.mubr.bf16.gmra.mxu0 %v800
        %v1199 = vpop.f32.mrf.mxu0
        %v1200 = vadd.f32 0.0, %v1199
        %v1201 = vpop.f32.mrf.mxu0
        %v1202 = vpop.f32.mrf.mxu0
        %v1203 = vadd.f32 0.0, %v1202
        %v1204 = vpop.f32.mrf.mxu0
        %1205 = vmatprep.mubr.bf16.mxu0 0
        %1206 = vmatmul.mubr.bf16.gmra.mxu0 %v803
        %v1207 = vpop.f32.mrf.mxu0
        %v1208 = vadd.f32 0.0, %v1207
        %v1209 = vpop.f32.mrf.mxu0
        %v1210 = vpop.f32.mrf.mxu0
        %v1211 = vpop.f32.mrf.mxu0
        %1212 = vdwg.mxu0
        %v1213 = vmul.f32 %v840, 0.25
        %v1214 = vmul.f32 %v843, 0.25
        %v1215 = vmul.f32 %v848, 0.25
        %v1216 = vmul.f32 %v912, 0.25
        %v1217 = vmul.f32 %v915, 0.25
        %v1218 = vmul.f32 %v920, 0.25
        %v1219 = vpack.c.bf16 %v1214, %v1213
        %v1220 = vpack.c.bf16 %v1215, %v1215
        %v1221 = vpack.c.bf16 %v1217, %v1216
        %v1222 = vpack.c.bf16 %v1218, %v1218
        %v1223 = vpack.c.bf16 %v987, %v984
        %v1224 = vpack.c.bf16 %v992, %v992
        %v1225 = vpack.c.bf16 %v1059, %v1056
        %v1226 = vpack.c.bf16 %v1064, %v1064
        %v1227 = vpack.c.bf16 %v1131, %v1128
        %v1228 = vpack.c.bf16 %v1136, %v1136
        %v1229 = vpack.c.bf16 %v1203, %v1200
        %v1230 = vpack.c.bf16 %v1208, %v1208
        %vm1231 = vcmask 130048
        %v1233 = vsel %vm1231, %v1219, 0
        %v1236 = vsel %vm1231, %v1220, 0
        %v1239 = vsel %vm1231, %v1223, 0
        %v1242 = vsel %vm1231, %v1224, 0
        %1244 = vmatprep.subr.bf16.mxu0 0
        %1245 = vmatpush1.bf16.xpose.msra.mxu0 0
        %1246 = vmatprep.subr.bf16.mxu0 0
        %1247 = vmatpush1.bf16.xpose.msra.mxu0 0
        %1248 = vmatprep.subr.bf16.mxu0 0
        %1249 = vmatpush1.bf16.xpose.msra.mxu0 0
        %1250 = vmatprep.subr.bf16.mxu0 0
        %1251 = vmatpush1.bf16.xpose.msra.mxu0 0
        %1252 = vmatprep.subr.bf16.mxu0 0
        %1253 = vmatpush1.bf16.xpose.msra.mxu0 0
        %1254 = vmatprep.subr.bf16.mxu0 0
        %1255 = vmatpush1.bf16.xpose.msra.mxu0 0
        %1256 = vmatprep.subr.bf16.mxu0 0
        %1257 = vmatpush1.bf16.xpose.msra.mxu0 %v1242
        %1258 = vmatprep.subr.bf16.mxu0 0
        %1259 = vmatpush1.bf16.xpose.msra.mxu0 %v1239
        %1260 = vmatprep.subr.bf16.mxu0 0
        %1261 = vmatpush2.bf16.xpose.msra.mxu0 0
        %1262 = vmatprep.subr.bf16.mxu0 0
        %1263 = vmatpush2.bf16.xpose.msra.mxu0 0
        %1264 = vmatprep.subr.bf16.mxu0 0
        %1265 = vmatpush2.bf16.xpose.msra.mxu0 0
        %1266 = vmatprep.subr.bf16.mxu0 0
        %1267 = vmatpush2.bf16.xpose.msra.mxu0 0
        %1268 = vmatprep.subr.bf16.mxu0 0
        %1269 = vmatpush2.bf16.xpose.msra.mxu0 0
        %1270 = vmatprep.subr.bf16.mxu0 0
        %1271 = vmatpush2.bf16.xpose.msra.mxu0 0
        %1272 = vmatprep.subr.bf16.mxu0 0
        %1273 = vmatpush2.bf16.xpose.msra.mxu0 0
        %1274 = vmatprep.subr.bf16.mxu0 0
        %1275 = vmatpush2.bf16.xpose.msra.mxu0 0
        %1276 = vmatprep.mubr.bf16.mxu0 0
        %1277 = vmatmul.mubr.bf16.gmra.mxu0 %v1233
        %v1278 = vpop.f32.mrf.mxu0
        %v1279 = vadd.f32 0.0, %v1278
        %v1280 = vpop.f32.mrf.mxu0
        %v1281 = vpop.f32.mrf.mxu0
        %v1282 = vadd.f32 0.0, %v1281
        %v1283 = vpop.f32.mrf.mxu0
        %1284 = vmatprep.mubr.bf16.mxu0 0
        %1285 = vmatmul.mubr.bf16.gmra.mxu0 %v1236
        %v1286 = vpop.f32.mrf.mxu0
        %v1287 = vadd.f32 0.0, %v1286
        %v1288 = vpop.f32.mrf.mxu0
        %v1289 = vpop.f32.mrf.mxu0
        %v1290 = vpop.f32.mrf.mxu0
        %1291 = vdwg.mxu0
        %v1293 = vsel %vm1231, %v1221, 0
        %v1296 = vsel %vm1231, %v1222, 0
        %v1299 = vsel %vm1231, %v1225, 0
        %v1302 = vsel %vm1231, %v1226, 0
        %1304 = vmatprep.subr.bf16.mxu0 0
        %1305 = vmatpush1.bf16.xpose.msra.mxu0 0
        %1306 = vmatprep.subr.bf16.mxu0 0
        %1307 = vmatpush1.bf16.xpose.msra.mxu0 0
        %1308 = vmatprep.subr.bf16.mxu0 0
        %1309 = vmatpush1.bf16.xpose.msra.mxu0 0
        %1310 = vmatprep.subr.bf16.mxu0 0
        %1311 = vmatpush1.bf16.xpose.msra.mxu0 0
        %1312 = vmatprep.subr.bf16.mxu0 0
        %1313 = vmatpush1.bf16.xpose.msra.mxu0 0
        %1314 = vmatprep.subr.bf16.mxu0 0
        %1315 = vmatpush1.bf16.xpose.msra.mxu0 0
        %1316 = vmatprep.subr.bf16.mxu0 0
        %1317 = vmatpush1.bf16.xpose.msra.mxu0 %v1302
        %1318 = vmatprep.subr.bf16.mxu0 0
        %1319 = vmatpush1.bf16.xpose.msra.mxu0 %v1299
        %1320 = vmatprep.subr.bf16.mxu0 0
        %1321 = vmatpush2.bf16.xpose.msra.mxu0 0
        %1322 = vmatprep.subr.bf16.mxu0 0
        %1323 = vmatpush2.bf16.xpose.msra.mxu0 0
        %1324 = vmatprep.subr.bf16.mxu0 0
        %1325 = vmatpush2.bf16.xpose.msra.mxu0 0
        %1326 = vmatprep.subr.bf16.mxu0 0
        %1327 = vmatpush2.bf16.xpose.msra.mxu0 0
        %1328 = vmatprep.subr.bf16.mxu0 0
        %1329 = vmatpush2.bf16.xpose.msra.mxu0 0
        %1330 = vmatprep.subr.bf16.mxu0 0
        %1331 = vmatpush2.bf16.xpose.msra.mxu0 0
        %1332 = vmatprep.subr.bf16.mxu0 0
        %1333 = vmatpush2.bf16.xpose.msra.mxu0 0
        %1334 = vmatprep.subr.bf16.mxu0 0
        %1335 = vmatpush2.bf16.xpose.msra.mxu0 0
        %1336 = vmatprep.mubr.bf16.mxu0 0
        %1337 = vmatmul.mubr.bf16.gmra.mxu0 %v1293
        %v1338 = vpop.f32.mrf.mxu0
        %v1339 = vadd.f32 0.0, %v1338
        %v1340 = vpop.f32.mrf.mxu0
        %v1341 = vpop.f32.mrf.mxu0
        %v1342 = vadd.f32 0.0, %v1341
        %v1343 = vpop.f32.mrf.mxu0
        %1344 = vmatprep.mubr.bf16.mxu0 0
        %1345 = vmatmul.mubr.bf16.gmra.mxu0 %v1296
        %v1346 = vpop.f32.mrf.mxu0
        %v1347 = vadd.f32 0.0, %v1346
        %v1348 = vpop.f32.mrf.mxu0
        %v1349 = vpop.f32.mrf.mxu0
        %v1350 = vpop.f32.mrf.mxu0
        %1351 = vdwg.mxu0
        %v1352 = vsel %vm663, %v1279, -1e+30
        %v1353 = vsel %vm663, %v1282, -1e+30
        %v1354 = vsel %vm663, %v1287, -1e+30
        %v1355 = vsel %vm663, %v1339, -1e+30
        %v1356 = vsel %vm663, %v1342, -1e+30
        %v1357 = vsel %vm663, %v1347, -1e+30
        %vm1358 = vcmask 195584
        %v1359 = vsel %vm1358, %v1352, -inf
        %1360 = vmax.xlane.f32.xlu0 %v1359
        %v1361 = vpop.xlane.xlu0 %1360
        %v1362 = vsel %vm1358, %v1353, -inf
        %1363 = vmax.xlane.f32.xlu0 %v1362
        %v1364 = vpop.xlane.xlu0 %1363
        %v1365 = vsel %vm1358, %v1354, -inf
        %1366 = vmax.xlane.f32.xlu0 %v1365
        %v1367 = vpop.xlane.xlu0 %1366
        %v1368 = vsel %vm1358, %v1355, -inf
        %1369 = vmax.xlane.f32.xlu0 %v1368
        %v1370 = vpop.xlane.xlu0 %1369
        %v1371 = vsel %vm1358, %v1356, -inf
        %1372 = vmax.xlane.f32.xlu0 %v1371
        %v1373 = vpop.xlane.xlu0 %1372
        %v1374 = vsel %vm1358, %v1357, -inf
        %1375 = vmax.xlane.f32.xlu0 %v1374
        %v1376 = vpop.xlane.xlu0 %1375
        %v1377 = vsub.f32 %v1352, %v1361
        %v1378 = vsub.f32 %v1353, %v1364
        %v1379 = vsub.f32 %v1354, %v1367
        %v1380 = vsub.f32 %v1355, %v1370
        %v1381 = vsub.f32 %v1356, %v1373
        %v1382 = vsub.f32 %v1357, %v1376
        %v1383 = vmul.f32 %v1377, 1.442695
        %v1384 = vpow.pop %v1383
        %v1385 = vmul.f32 %v1378, 1.442695
        %v1386 = vpow.pop %v1385
        %v1387 = vmul.f32 %v1379, 1.442695
        %v1388 = vpow.pop %v1387
        %v1389 = vmul.f32 %v1380, 1.442695
        %v1390 = vpow.pop %v1389
        %v1391 = vmul.f32 %v1381, 1.442695
        %v1392 = vpow.pop %v1391
        %v1393 = vmul.f32 %v1382, 1.442695
        %v1394 = vpow.pop %v1393
        %v1395 = vsel %vm1358, %v1384, 0.0
        %1396 = vadd.xlane.f32.xlu0 %v1395
        %v1397 = vpop.xlane.xlu0 %1396
        %v1398 = vsel %vm1358, %v1386, 0.0
        %1399 = vadd.xlane.f32.xlu0 %v1398
        %v1400 = vpop.xlane.xlu0 %1399
        %v1401 = vsel %vm1358, %v1388, 0.0
        %1402 = vadd.xlane.f32.xlu0 %v1401
        %v1403 = vpop.xlane.xlu0 %1402
        %v1404 = vsel %vm1358, %v1390, 0.0
        %1405 = vadd.xlane.f32.xlu0 %v1404
        %v1406 = vpop.xlane.xlu0 %1405
        %v1407 = vsel %vm1358, %v1392, 0.0
        %1408 = vadd.xlane.f32.xlu0 %v1407
        %v1409 = vpop.xlane.xlu0 %1408
        %v1410 = vsel %vm1358, %v1394, 0.0
        %1411 = vadd.xlane.f32.xlu0 %v1410
        %v1412 = vpop.xlane.xlu0 %1411
        %v1413 = vrcp.pop %v1397
        %v1414 = vrcp.pop %v1400
        %v1415 = vrcp.pop %v1403
        %v1416 = vrcp.pop %v1406
        %v1417 = vrcp.pop %v1409
        %v1418 = vrcp.pop %v1412
        %v1419 = vmul.f32 %v1384, %v1413
        %v1420 = vmul.f32 %v1386, %v1414
        %v1421 = vmul.f32 %v1388, %v1415
        %v1422 = vmul.f32 %v1390, %v1416
        %v1423 = vmul.f32 %v1392, %v1417
        %v1424 = vmul.f32 %v1394, %v1418
        %v1425 = vpack.c.bf16 %v1420, %v1419
        %v1426 = vpack.c.bf16 %v1421, %v1421
        %v1427 = vpack.c.bf16 %v1423, %v1422
        %v1428 = vpack.c.bf16 %v1424, %v1424
        %v1430 = vsel %vm1358, %v1425, 0
        %v1433 = vsel %vm1358, %v1426, 0
        %vm1435 = vcmask 1043456
        %v1437 = vsel %vm1435, %v1228, 0
        %1439 = vmatprep.subr.bf16.mxu0 0
        %1440 = vmatpush1.bf16.msra.mxu0 0
        %1441 = vmatprep.subr.bf16.mxu0 0
        %1442 = vmatpush1.bf16.msra.mxu0 0
        %1443 = vmatprep.subr.bf16.mxu0 0
        %1444 = vmatpush1.bf16.msra.mxu0 0
        %1445 = vmatprep.subr.bf16.mxu0 0
        %1446 = vmatpush1.bf16.msra.mxu0 0
        %1447 = vmatprep.subr.bf16.mxu0 0
        %1448 = vmatpush1.bf16.msra.mxu0 0
        %1449 = vmatprep.subr.bf16.mxu0 0
        %1450 = vmatpush1.bf16.msra.mxu0 0
        %1451 = vmatprep.subr.bf16.mxu0 0
        %1452 = vmatpush1.bf16.msra.mxu0 %v1437
        %1453 = vmatprep.subr.bf16.mxu0 0
        %1454 = vmatpush1.bf16.msra.mxu0 %v1227
        %1455 = vmatprep.subr.bf16.mxu0 0
        %1456 = vmatpush2.bf16.msra.mxu0 0
        %1457 = vmatprep.subr.bf16.mxu0 0
        %1458 = vmatpush2.bf16.msra.mxu0 0
        %1459 = vmatprep.subr.bf16.mxu0 0
        %1460 = vmatpush2.bf16.msra.mxu0 0
        %1461 = vmatprep.subr.bf16.mxu0 0
        %1462 = vmatpush2.bf16.msra.mxu0 0
        %1463 = vmatprep.subr.bf16.mxu0 0
        %1464 = vmatpush2.bf16.msra.mxu0 0
        %1465 = vmatprep.subr.bf16.mxu0 0
        %1466 = vmatpush2.bf16.msra.mxu0 0
        %1467 = vmatprep.subr.bf16.mxu0 0
        %1468 = vmatpush2.bf16.msra.mxu0 0
        %1469 = vmatprep.subr.bf16.mxu0 0
        %1470 = vmatpush2.bf16.msra.mxu0 0
        %1471 = vmatprep.mubr.bf16.mxu0 0
        %1472 = vmatmul.mubr.bf16.gmra.mxu0 %v1430
        %v1473 = vpop.f32.mrf.mxu0
        %v1474 = vadd.f32 0.0, %v1473
        %v1475 = vpop.f32.mrf.mxu0
        %v1476 = vpop.f32.mrf.mxu0
        %v1477 = vadd.f32 0.0, %v1476
        %v1478 = vpop.f32.mrf.mxu0
        %1479 = vmatprep.mubr.bf16.mxu0 0
        %1480 = vmatmul.mubr.bf16.gmra.mxu0 %v1433
        %v1481 = vpop.f32.mrf.mxu0
        %v1482 = vadd.f32 0.0, %v1481
        %v1483 = vpop.f32.mrf.mxu0
        %v1484 = vpop.f32.mrf.mxu0
        %v1485 = vpop.f32.mrf.mxu0
        %1486 = vdwg.mxu0
        %v1488 = vsel %vm1358, %v1427, 0
        %v1491 = vsel %vm1358, %v1428, 0
        %v1494 = vsel %vm1435, %v1230, 0
        %1496 = vmatprep.subr.bf16.mxu0 0
        %1497 = vmatpush1.bf16.msra.mxu0 0
        %1498 = vmatprep.subr.bf16.mxu0 0
        %1499 = vmatpush1.bf16.msra.mxu0 0
        %1500 = vmatprep.subr.bf16.mxu0 0
        %1501 = vmatpush1.bf16.msra.mxu0 0
        %1502 = vmatprep.subr.bf16.mxu0 0
        %1503 = vmatpush1.bf16.msra.mxu0 0
        %1504 = vmatprep.subr.bf16.mxu0 0
        %1505 = vmatpush1.bf16.msra.mxu0 0
        %1506 = vmatprep.subr.bf16.mxu0 0
        %1507 = vmatpush1.bf16.msra.mxu0 0
        %1508 = vmatprep.subr.bf16.mxu0 0
        %1509 = vmatpush1.bf16.msra.mxu0 %v1494
        %1510 = vmatprep.subr.bf16.mxu0 0
        %1511 = vmatpush1.bf16.msra.mxu0 %v1229
        %1512 = vmatprep.subr.bf16.mxu0 0
        %1513 = vmatpush2.bf16.msra.mxu0 0
        %1514 = vmatprep.subr.bf16.mxu0 0
        %1515 = vmatpush2.bf16.msra.mxu0 0
        %1516 = vmatprep.subr.bf16.mxu0 0
        %1517 = vmatpush2.bf16.msra.mxu0 0
        %1518 = vmatprep.subr.bf16.mxu0 0
        %1519 = vmatpush2.bf16.msra.mxu0 0
        %1520 = vmatprep.subr.bf16.mxu0 0
        %1521 = vmatpush2.bf16.msra.mxu0 0
        %1522 = vmatprep.subr.bf16.mxu0 0
        %1523 = vmatpush2.bf16.msra.mxu0 0
        %1524 = vmatprep.subr.bf16.mxu0 0
        %1525 = vmatpush2.bf16.msra.mxu0 0
        %1526 = vmatprep.subr.bf16.mxu0 0
        %1527 = vmatpush2.bf16.msra.mxu0 0
        %1528 = vmatprep.mubr.bf16.mxu0 0
        %1529 = vmatmul.mubr.bf16.gmra.mxu0 %v1488
        %v1530 = vpop.f32.mrf.mxu0
        %v1531 = vadd.f32 0.0, %v1530
        %v1532 = vpop.f32.mrf.mxu0
        %v1533 = vpop.f32.mrf.mxu0
        %v1534 = vadd.f32 0.0, %v1533
        %v1535 = vpop.f32.mrf.mxu0
        %1536 = vmatprep.mubr.bf16.mxu0 0
        %1537 = vmatmul.mubr.bf16.gmra.mxu0 %v1491
        %v1538 = vpop.f32.mrf.mxu0
        %v1539 = vadd.f32 0.0, %v1538
        %v1540 = vpop.f32.mrf.mxu0
        %v1541 = vpop.f32.mrf.mxu0
        %v1542 = vpop.f32.mrf.mxu0
        %1543 = vdwg.mxu0
        %v1544 = vpack.c.bf16 %v1477, %v1474
        %v1545 = vpack.c.bf16 %v1482, %v1482
        %v1546 = vpack.c.bf16 %v1534, %v1531
        %v1547 = vpack.c.bf16 %v1539, %v1539
        %v1548 = vld [vmem:[%s6] sm:$0xf]
        %v1549 = vld [vmem:[%s6 + $0x4] sm:$0xf]
        %v1550 = vld [vmem:[%s6 + $0x8] sm:$0xf]
        %v1551 = vld [vmem:[%s6 + $0xc] sm:$0xf]
        %v1554 = vunpack.c.l.b16 %v1548
        %v1555 = vunpack.c.l.b16 %v1549
        %v1556 = vpack.c.b16 %v1555, %v1554
        %v1559 = vsel %vm1231, %v1544, 0
        %v1562 = vsel %vm1231, %v1545, 0
        %1564 = vmatprep.subr.bf16.mxu0 0
        %1565 = vmatpush1.bf16.msra.mxu0 0
        %1566 = vmatprep.subr.bf16.mxu0 0
        %1567 = vmatpush1.bf16.msra.mxu0 0
        %1568 = vmatprep.subr.bf16.mxu0 0
        %1569 = vmatpush1.bf16.msra.mxu0 0
        %1570 = vmatprep.subr.bf16.mxu0 0
        %1571 = vmatpush1.bf16.msra.mxu0 0
        %1572 = vmatprep.subr.bf16.mxu0 0
        %1573 = vmatpush1.bf16.msra.mxu0 0
        %1574 = vmatprep.subr.bf16.mxu0 0
        %1575 = vmatpush1.bf16.msra.mxu0 0
        %1576 = vmatprep.subr.bf16.mxu0 0
        %1577 = vmatpush1.bf16.msra.mxu0 0
        %1578 = vmatprep.subr.bf16.mxu0 0
        %1579 = vmatpush1.bf16.msra.mxu0 %v1556
        %1580 = vmatprep.subr.bf16.mxu0 0
        %1581 = vmatpush2.bf16.msra.mxu0 0
        %1582 = vmatprep.subr.bf16.mxu0 0
        %1583 = vmatpush2.bf16.msra.mxu0 0
        %1584 = vmatprep.subr.bf16.mxu0 0
        %1585 = vmatpush2.bf16.msra.mxu0 0
        %1586 = vmatprep.subr.bf16.mxu0 0
        %1587 = vmatpush2.bf16.msra.mxu0 0
        %1588 = vmatprep.subr.bf16.mxu0 0
        %1589 = vmatpush2.bf16.msra.mxu0 0
        %1590 = vmatprep.subr.bf16.mxu0 0
        %1591 = vmatpush2.bf16.msra.mxu0 0
        %1592 = vmatprep.subr.bf16.mxu0 0
        %1593 = vmatpush2.bf16.msra.mxu0 0
        %1594 = vmatprep.subr.bf16.mxu0 0
        %1595 = vmatpush2.bf16.msra.mxu0 0
        %1596 = vmatprep.mubr.bf16.mxu0 0
        %1597 = vmatmul.mubr.bf16.gmra.mxu0 %v1559
        %v1598 = vpop.f32.mrf.mxu0
        %v1599 = vadd.f32 0.0, %v1598
        %v1600 = vpop.f32.mrf.mxu0
        %v1601 = vpop.f32.mrf.mxu0
        %v1602 = vadd.f32 0.0, %v1601
        %v1603 = vpop.f32.mrf.mxu0
        %1604 = vmatprep.mubr.bf16.mxu0 0
        %1605 = vmatmul.mubr.bf16.gmra.mxu0 %v1562
        %v1606 = vpop.f32.mrf.mxu0
        %v1607 = vadd.f32 0.0, %v1606
        %v1608 = vpop.f32.mrf.mxu0
        %v1609 = vpop.f32.mrf.mxu0
        %v1610 = vpop.f32.mrf.mxu0
        %1611 = vdwg.mxu0
        %v1614 = vunpack.c.l.b16 %v1550
        %v1615 = vunpack.c.l.b16 %v1551
        %v1616 = vpack.c.b16 %v1615, %v1614
        %v1619 = vsel %vm1231, %v1546, 0
        %v1622 = vsel %vm1231, %v1547, 0
        %1624 = vmatprep.subr.bf16.mxu0 0
        %1625 = vmatpush1.bf16.msra.mxu0 0
        %1626 = vmatprep.subr.bf16.mxu0 0
        %1627 = vmatpush1.bf16.msra.mxu0 0
        %1628 = vmatprep.subr.bf16.mxu0 0
        %1629 = vmatpush1.bf16.msra.mxu0 0
        %1630 = vmatprep.subr.bf16.mxu0 0
        %1631 = vmatpush1.bf16.msra.mxu0 0
        %1632 = vmatprep.subr.bf16.mxu0 0
        %1633 = vmatpush1.bf16.msra.mxu0 0
        %1634 = vmatprep.subr.bf16.mxu0 0
        %1635 = vmatpush1.bf16.msra.mxu0 0
        %1636 = vmatprep.subr.bf16.mxu0 0
        %1637 = vmatpush1.bf16.msra.mxu0 0
        %1638 = vmatprep.subr.bf16.mxu0 0
        %1639 = vmatpush1.bf16.msra.mxu0 %v1616
        %1640 = vmatprep.subr.bf16.mxu0 0
        %1641 = vmatpush2.bf16.msra.mxu0 0
        %1642 = vmatprep.subr.bf16.mxu0 0
        %1643 = vmatpush2.bf16.msra.mxu0 0
        %1644 = vmatprep.subr.bf16.mxu0 0
        %1645 = vmatpush2.bf16.msra.mxu0 0
        %1646 = vmatprep.subr.bf16.mxu0 0
        %1647 = vmatpush2.bf16.msra.mxu0 0
        %1648 = vmatprep.subr.bf16.mxu0 0
        %1649 = vmatpush2.bf16.msra.mxu0 0
        %1650 = vmatprep.subr.bf16.mxu0 0
        %1651 = vmatpush2.bf16.msra.mxu0 0
        %1652 = vmatprep.subr.bf16.mxu0 0
        %1653 = vmatpush2.bf16.msra.mxu0 0
        %1654 = vmatprep.subr.bf16.mxu0 0
        %1655 = vmatpush2.bf16.msra.mxu0 0
        %1656 = vmatprep.mubr.bf16.mxu0 0
        %1657 = vmatmul.mubr.bf16.gmra.mxu0 %v1619
        %v1658 = vpop.f32.mrf.mxu0
        %v1659 = vadd.f32 0.0, %v1658
        %v1660 = vpop.f32.mrf.mxu0
        %v1661 = vpop.f32.mrf.mxu0
        %v1662 = vadd.f32 0.0, %v1661
        %v1663 = vpop.f32.mrf.mxu0
        %1664 = vmatprep.mubr.bf16.mxu0 0
        %1665 = vmatmul.mubr.bf16.gmra.mxu0 %v1622
        %v1666 = vpop.f32.mrf.mxu0
        %v1667 = vadd.f32 0.0, %v1666
        %v1668 = vpop.f32.mrf.mxu0
        %v1669 = vpop.f32.mrf.mxu0
        %v1670 = vpop.f32.mrf.mxu0
        %1671 = vdwg.mxu0
        %v1672 = vadd.f32 %v1599, %v1659
        %v1673 = vadd.f32 %v1602, %v1662
        %v1674 = vadd.f32 %v1607, %v1667
        %v1675 = vadd.f32 %v648, %v1672
        %v1676 = vadd.f32 %v651, %v1673
        %v1677 = vadd.f32 %v656, %v1674
        %v1678 = vld [vmem:[%s7] sm:$0x1]
        %v1680 = vlaneseq
        %v1681 = vshrl.u32 %v1680, 7
        %v1682 = vsub.s32 0, %v1681
        %v1683 = vrot.slane %v1678, %v1682
        %v1685 = vadd.f32 %v1675, %v1683
        %v1686 = vadd.f32 %v1676, %v1683
        %v1687 = vadd.f32 %v1677, %v1683
        %v1688 = vld [vmem:[%s8] sm:$0x1]
        %v1689 = vld [vmem:[%s9] sm:$0x1]
        %v1690 = vsel %vm666, %v1685, 0.0
        %1691 = vadd.xlane.f32.xlu0 %v1690
        %v1692 = vpop.xlane.xlu0 %1691
        %v1693 = vsel %vm666, %v1686, 0.0
        %1694 = vadd.xlane.f32.xlu0 %v1693
        %v1695 = vpop.xlane.xlu0 %1694
        %v1696 = vsel %vm666, %v1687, 0.0
        %1697 = vadd.xlane.f32.xlu0 %v1696
        %v1698 = vpop.xlane.xlu0 %1697
        %v1699 = vmul.f32 %v1692, %v676
        %v1700 = vmul.f32 %v1695, %v676
        %v1701 = vmul.f32 %v1698, %v676
        %v1702 = vsub.f32 %v1685, %v1699
        %v1703 = vsub.f32 %v1686, %v1700
        %v1704 = vsub.f32 %v1687, %v1701
        %v1705 = vmul.f32 %v1702, %v1702
        %v1706 = vmul.f32 %v1703, %v1703
        %v1707 = vmul.f32 %v1704, %v1704
        %v1708 = vsel %vm666, %v1705, 0.0
        %1709 = vadd.xlane.f32.xlu0 %v1708
        %v1710 = vpop.xlane.xlu0 %1709
        %v1711 = vsel %vm666, %v1706, 0.0
        %1712 = vadd.xlane.f32.xlu0 %v1711
        %v1713 = vpop.xlane.xlu0 %1712
        %v1714 = vsel %vm666, %v1707, 0.0
        %1715 = vadd.xlane.f32.xlu0 %v1714
        %v1716 = vpop.xlane.xlu0 %1715
        %v1717 = vmul.f32 %v1710, %v676
        %v1718 = vmul.f32 %v1713, %v676
        %v1719 = vmul.f32 %v1716, %v676
        %v1720 = vadd.f32 %v1717, 1e-05
        %v1721 = vadd.f32 %v1718, 1e-05
        %v1722 = vadd.f32 %v1719, 1e-05
        %v1723 = vrsqrt.pop %v1720
        %v1724 = vrsqrt.pop %v1721
        %v1725 = vrsqrt.pop %v1722
        %v1726 = vmul.f32 %v1702, %v1723
        %v1727 = vmul.f32 %v1703, %v1724
        %v1728 = vmul.f32 %v1704, %v1725
        %v1730 = vlaneseq
        %v1731 = vshrl.u32 %v1730, 7
        %v1732 = vsub.s32 0, %v1731
        %v1733 = vrot.slane %v1688, %v1732
        %v1735 = vmul.f32 %v1726, %v1733
        %v1736 = vmul.f32 %v1727, %v1733
        %v1737 = vmul.f32 %v1728, %v1733
        %v1739 = vlaneseq
        %v1740 = vshrl.u32 %v1739, 7
        %v1741 = vsub.s32 0, %v1740
        %v1742 = vrot.slane %v1689, %v1741
        %v1744 = vadd.f32 %v1735, %v1742
        %v1745 = vadd.f32 %v1736, %v1742
        %v1746 = vadd.f32 %v1737, %v1742
        %v1747 = vpack.c.bf16 %v1745, %v1744
        %v1748 = vpack.c.bf16 %v1746, %v1746
        %v1749 = vld [vmem:[%s10] sm:$0xf]
        %v1750 = vld [vmem:[%s10 + $0x4] sm:$0xf]
        %v1751 = vld [vmem:[%s10 + $0x8] sm:$0xf]
        %v1752 = vld [vmem:[%s10 + $0xc] sm:$0xf]
        %v1753 = vld [vmem:[%s10 + $0x10] sm:$0xf]
        %v1754 = vld [vmem:[%s10 + $0x14] sm:$0xf]
        %v1755 = vld [vmem:[%s10 + $0x18] sm:$0xf]
        %v1756 = vld [vmem:[%s10 + $0x1c] sm:$0xf]
        %v1757 = vld [vmem:[%s11] sm:$0x1]
        %v1759 = vlaneseq
        %v1760 = vshrl.u32 %v1759, 7
        %v1761 = vsub.s32 0, %v1760
        %v1762 = vrot.slane %v1757, %v1761
        %v1772 = vunpack.c.l.b16 %v1749
        %v1773 = vunpack.c.l.b16 %v1750
        %v1774 = vunpack.c.l.b16 %v1751
        %v1775 = vunpack.c.l.b16 %v1752
        %v1776 = vunpack.c.l.b16 %v1753
        %v1777 = vunpack.c.l.b16 %v1754
        %v1778 = vunpack.c.l.b16 %v1755
        %v1779 = vunpack.c.l.b16 %v1756
        %v1780 = vpack.c.b16 %v1773, %v1772
        %v1781 = vpack.c.b16 %v1775, %v1774
        %v1782 = vpack.c.b16 %v1777, %v1776
        %v1783 = vpack.c.b16 %v1779, %v1778
        %v1789 = vsel %vm666, %v1747, 0
        %v1792 = vsel %vm666, %v1748, 0
        %1794 = vmatprep.subr.bf16.mxu0 0
        %1795 = vmatpush1.bf16.msra.mxu0 0
        %1796 = vmatprep.subr.bf16.mxu0 0
        %1797 = vmatpush1.bf16.msra.mxu0 0
        %1798 = vmatprep.subr.bf16.mxu0 0
        %1799 = vmatpush1.bf16.msra.mxu0 0
        %1800 = vmatprep.subr.bf16.mxu0 0
        %1801 = vmatpush1.bf16.msra.mxu0 0
        %1802 = vmatprep.subr.bf16.mxu0 0
        %1803 = vmatpush1.bf16.msra.mxu0 %v1783
        %1804 = vmatprep.subr.bf16.mxu0 0
        %1805 = vmatpush1.bf16.msra.mxu0 %v1782
        %1806 = vmatprep.subr.bf16.mxu0 0
        %1807 = vmatpush1.bf16.msra.mxu0 %v1781
        %1808 = vmatprep.subr.bf16.mxu0 0
        %1809 = vmatpush1.bf16.msra.mxu0 %v1780
        %1810 = vmatprep.subr.bf16.mxu0 0
        %1811 = vmatpush2.bf16.msra.mxu0 0
        %1812 = vmatprep.subr.bf16.mxu0 0
        %1813 = vmatpush2.bf16.msra.mxu0 0
        %1814 = vmatprep.subr.bf16.mxu0 0
        %1815 = vmatpush2.bf16.msra.mxu0 0
        %1816 = vmatprep.subr.bf16.mxu0 0
        %1817 = vmatpush2.bf16.msra.mxu0 0
        %1818 = vmatprep.subr.bf16.mxu0 0
        %1819 = vmatpush2.bf16.msra.mxu0 0
        %1820 = vmatprep.subr.bf16.mxu0 0
        %1821 = vmatpush2.bf16.msra.mxu0 0
        %1822 = vmatprep.subr.bf16.mxu0 0
        %1823 = vmatpush2.bf16.msra.mxu0 0
        %1824 = vmatprep.subr.bf16.mxu0 0
        %1825 = vmatpush2.bf16.msra.mxu0 0
        %1826 = vmatprep.mubr.bf16.mxu0 0
        %1827 = vmatmul.mubr.bf16.gmra.mxu0 %v1789
        %v1828 = vpop.f32.mrf.mxu0
        %v1829 = vadd.f32 %v1762, %v1828
        %v1830 = vpop.f32.mrf.mxu0
        %v1831 = vpop.f32.mrf.mxu0
        %v1832 = vadd.f32 %v1762, %v1831
        %v1833 = vpop.f32.mrf.mxu0
        %1834 = vmatprep.mubr.bf16.mxu0 0
        %1835 = vmatmul.mubr.bf16.gmra.mxu0 %v1792
        %v1836 = vpop.f32.mrf.mxu0
        %v1837 = vadd.f32 %v1762, %v1836
        %v1838 = vpop.f32.mrf.mxu0
        %v1839 = vpop.f32.mrf.mxu0
        %v1840 = vpop.f32.mrf.mxu0
        %1841 = vdwg.mxu0
        %v1842 = vmul.f32 %v1829, 0.5
        %v1843 = vmul.f32 %v1832, 0.5
        %v1844 = vmul.f32 %v1837, 0.5
        %v1845 = vmul.f32 %v1829, 0.70710677
        %v1846 = vmul.f32 %v1832, 0.70710677
        %v1847 = vmul.f32 %v1837, 0.70710677
        %v1848 = verf.f32.pop %v1845
        %v1849 = verf.f32.pop %v1846
        %v1850 = verf.f32.pop %v1847
        %v1851 = vadd.f32 %v1848, 1.0
        %v1852 = vadd.f32 %v1849, 1.0
        %v1853 = vadd.f32 %v1850, 1.0
        %v1854 = vmul.f32 %v1842, %v1851
        %v1855 = vmul.f32 %v1843, %v1852
        %v1856 = vmul.f32 %v1844, %v1853
        %v1857 = vpack.c.bf16 %v1855, %v1854
        %v1858 = vpack.c.bf16 %v1856, %v1856
        %v1859 = vld [vmem:[%s12] sm:$0xf]
        %v1860 = vld [vmem:[%s12 + $0x4] sm:$0xf]
        %v1861 = vld [vmem:[%s12 + $0x8] sm:$0xf]
        %v1862 = vld [vmem:[%s12 + $0xc] sm:$0xf]
        %v1863 = vld [vmem:[%s12 + $0x10] sm:$0xf]
        %v1864 = vld [vmem:[%s12 + $0x14] sm:$0xf]
        %v1865 = vld [vmem:[%s12 + $0x18] sm:$0xf]
        %v1866 = vld [vmem:[%s12 + $0x1c] sm:$0xf]
        %v1867 = vld [vmem:[%s12 + $0x20] sm:$0xf]
        %v1868 = vld [vmem:[%s12 + $0x24] sm:$0xf]
        %v1869 = vld [vmem:[%s12 + $0x28] sm:$0xf]
        %v1870 = vld [vmem:[%s12 + $0x2c] sm:$0xf]
        %v1871 = vld [vmem:[%s12 + $0x30] sm:$0xf]
        %v1872 = vld [vmem:[%s12 + $0x34] sm:$0xf]
        %v1873 = vld [vmem:[%s12 + $0x38] sm:$0xf]
        %v1874 = vld [vmem:[%s12 + $0x3c] sm:$0xf]
        %v1891 = vunpack.c.l.b16 %v1859
        %v1892 = vunpack.c.l.b16 %v1860
        %v1893 = vunpack.c.l.b16 %v1861
        %v1894 = vunpack.c.l.b16 %v1862
        %v1895 = vunpack.c.l.b16 %v1863
        %v1896 = vunpack.c.l.b16 %v1864
        %v1897 = vunpack.c.l.b16 %v1865
        %v1898 = vunpack.c.l.b16 %v1866
        %v1899 = vunpack.c.l.b16 %v1867
        %v1900 = vunpack.c.l.b16 %v1868
        %v1901 = vunpack.c.l.b16 %v1869
        %v1902 = vunpack.c.l.b16 %v1870
        %v1903 = vunpack.c.l.b16 %v1871
        %v1904 = vunpack.c.l.b16 %v1872
        %v1905 = vunpack.c.l.b16 %v1873
        %v1906 = vunpack.c.l.b16 %v1874
        %v1907 = vpack.c.b16 %v1892, %v1891
        %v1908 = vpack.c.b16 %v1894, %v1893
        %v1909 = vpack.c.b16 %v1896, %v1895
        %v1910 = vpack.c.b16 %v1898, %v1897
        %v1911 = vpack.c.b16 %v1900, %v1899
        %v1912 = vpack.c.b16 %v1902, %v1901
        %v1913 = vpack.c.b16 %v1904, %v1903
        %v1914 = vpack.c.b16 %v1906, %v1905
        %1923 = vmatprep.subr.bf16.mxu0 0
        %1924 = vmatpush1.bf16.msra.mxu0 %v1914
        %1925 = vmatprep.subr.bf16.mxu0 0
        %1926 = vmatpush1.bf16.msra.mxu0 %v1913
        %1927 = vmatprep.subr.bf16.mxu0 0
        %1928 = vmatpush1.bf16.msra.mxu0 %v1912
        %1929 = vmatprep.subr.bf16.mxu0 0
        %1930 = vmatpush1.bf16.msra.mxu0 %v1911
        %1931 = vmatprep.subr.bf16.mxu0 0
        %1932 = vmatpush1.bf16.msra.mxu0 %v1910
        %1933 = vmatprep.subr.bf16.mxu0 0
        %1934 = vmatpush1.bf16.msra.mxu0 %v1909
        %1935 = vmatprep.subr.bf16.mxu0 0
        %1936 = vmatpush1.bf16.msra.mxu0 %v1908
        %1937 = vmatprep.subr.bf16.mxu0 0
        %1938 = vmatpush1.bf16.msra.mxu0 %v1907
        %1939 = vmatprep.subr.bf16.mxu0 0
        %1940 = vmatpush2.bf16.msra.mxu0 0
        %1941 = vmatprep.subr.bf16.mxu0 0
        %1942 = vmatpush2.bf16.msra.mxu0 0
        %1943 = vmatprep.subr.bf16.mxu0 0
        %1944 = vmatpush2.bf16.msra.mxu0 0
        %1945 = vmatprep.subr.bf16.mxu0 0
        %1946 = vmatpush2.bf16.msra.mxu0 0
        %1947 = vmatprep.subr.bf16.mxu0 0
        %1948 = vmatpush2.bf16.msra.mxu0 0
        %1949 = vmatprep.subr.bf16.mxu0 0
        %1950 = vmatpush2.bf16.msra.mxu0 0
        %1951 = vmatprep.subr.bf16.mxu0 0
        %1952 = vmatpush2.bf16.msra.mxu0 0
        %1953 = vmatprep.subr.bf16.mxu0 0
        %1954 = vmatpush2.bf16.msra.mxu0 0
        %1955 = vmatprep.mubr.bf16.mxu0 0
        %1956 = vmatmul.mubr.bf16.gmra.mxu0 %v1857
        %v1957 = vpop.f32.mrf.mxu0
        %v1958 = vadd.f32 0.0, %v1957
        %v1959 = vpop.f32.mrf.mxu0
        %v1960 = vpop.f32.mrf.mxu0
        %v1961 = vadd.f32 0.0, %v1960
        %v1962 = vpop.f32.mrf.mxu0
        %1963 = vmatprep.mubr.bf16.mxu0 0
        %1964 = vmatmul.mubr.bf16.gmra.mxu0 %v1858
        %v1965 = vpop.f32.mrf.mxu0
        %v1966 = vadd.f32 0.0, %v1965
        %v1967 = vpop.f32.mrf.mxu0
        %v1968 = vpop.f32.mrf.mxu0
        %v1969 = vpop.f32.mrf.mxu0
        %1970 = vdwg.mxu0
        %v1971 = vadd.f32 %v1685, %v1958
        %v1972 = vadd.f32 %v1686, %v1961
        %v1973 = vadd.f32 %v1687, %v1966
        %v1974 = vld [vmem:[%s13] sm:$0x1]
        %v1976 = vlaneseq
        %v1977 = vshrl.u32 %v1976, 7
        %v1978 = vsub.s32 0, %v1977
        %v1979 = vrot.slane %v1974, %v1978
        %v1981 = vadd.f32 %v1971, %v1979
        %v1982 = vadd.f32 %v1972, %v1979
        %v1983 = vadd.f32 %v1973, %v1979
        %s1984 = scalar_lea.vmem %s3, 1
        %v1985 = vld [vmem:[%s1984] sm:$0x1]
        %s1986 = scalar_lea.vmem %s4, 1
        %v1987 = vld [vmem:[%s1986] sm:$0x1]
        %v1988 = vsel %vm666, %v1981, 0.0
        %1989 = vadd.xlane.f32.xlu0 %v1988
        %v1990 = vpop.xlane.xlu0 %1989
        %v1991 = vsel %vm666, %v1982, 0.0
        %1992 = vadd.xlane.f32.xlu0 %v1991
        %v1993 = vpop.xlane.xlu0 %1992
        %v1994 = vsel %vm666, %v1983, 0.0
        %1995 = vadd.xlane.f32.xlu0 %v1994
        %v1996 = vpop.xlane.xlu0 %1995
        %v1997 = vmul.f32 %v1990, %v676
        %v1998 = vmul.f32 %v1993, %v676
        %v1999 = vmul.f32 %v1996, %v676
        %v2000 = vsub.f32 %v1981, %v1997
        %v2001 = vsub.f32 %v1982, %v1998
        %v2002 = vsub.f32 %v1983, %v1999
        %v2003 = vmul.f32 %v2000, %v2000
        %v2004 = vmul.f32 %v2001, %v2001
        %v2005 = vmul.f32 %v2002, %v2002
        %v2006 = vsel %vm666, %v2003, 0.0
        %2007 = vadd.xlane.f32.xlu0 %v2006
        %v2008 = vpop.xlane.xlu0 %2007
        %v2009 = vsel %vm666, %v2004, 0.0
        %2010 = vadd.xlane.f32.xlu0 %v2009
        %v2011 = vpop.xlane.xlu0 %2010
        %v2012 = vsel %vm666, %v2005, 0.0
        %2013 = vadd.xlane.f32.xlu0 %v2012
        %v2014 = vpop.xlane.xlu0 %2013
        %v2015 = vmul.f32 %v2008, %v676
        %v2016 = vmul.f32 %v2011, %v676
        %v2017 = vmul.f32 %v2014, %v676
        %v2018 = vadd.f32 %v2015, 1e-05
        %v2019 = vadd.f32 %v2016, 1e-05
        %v2020 = vadd.f32 %v2017, 1e-05
        %v2021 = vrsqrt.pop %v2018
        %v2022 = vrsqrt.pop %v2019
        %v2023 = vrsqrt.pop %v2020
        %v2024 = vmul.f32 %v2000, %v2021
        %v2025 = vmul.f32 %v2001, %v2022
        %v2026 = vmul.f32 %v2002, %v2023
        %v2028 = vlaneseq
        %v2029 = vshrl.u32 %v2028, 7
        %v2030 = vsub.s32 0, %v2029
        %v2031 = vrot.slane %v1985, %v2030
        %v2033 = vmul.f32 %v2024, %v2031
        %v2034 = vmul.f32 %v2025, %v2031
        %v2035 = vmul.f32 %v2026, %v2031
        %v2037 = vlaneseq
        %v2038 = vshrl.u32 %v2037, 7
        %v2039 = vsub.s32 0, %v2038
        %v2040 = vrot.slane %v1987, %v2039
        %v2042 = vadd.f32 %v2033, %v2040
        %v2043 = vadd.f32 %v2034, %v2040
        %v2044 = vadd.f32 %v2035, %v2040
        %v2045 = vpack.c.bf16 %v2043, %v2042
        %v2046 = vpack.c.bf16 %v2044, %v2044
        %s2047 = scalar_lea.vmem %s5, 192
        %v2048 = vld [vmem:[%s2047] sm:$0xf]
        %v2049 = vld [vmem:[%s2047 + $0x4] sm:$0xf]
        %v2050 = vld [vmem:[%s2047 + $0x8] sm:$0xf]
        %v2051 = vld [vmem:[%s2047 + $0xc] sm:$0xf]
        %v2052 = vld [vmem:[%s2047 + $0x10] sm:$0xf]
        %v2053 = vld [vmem:[%s2047 + $0x14] sm:$0xf]
        %v2054 = vld [vmem:[%s2047 + $0x18] sm:$0xf]
        %v2055 = vld [vmem:[%s2047 + $0x1c] sm:$0xf]
        %v2056 = vld [vmem:[%s2047 + $0x20] sm:$0xf]
        %v2057 = vld [vmem:[%s2047 + $0x24] sm:$0xf]
        %v2058 = vld [vmem:[%s2047 + $0x28] sm:$0xf]
        %v2059 = vld [vmem:[%s2047 + $0x2c] sm:$0xf]
        %v2060 = vld [vmem:[%s2047 + $0x30] sm:$0xf]
        %v2061 = vld [vmem:[%s2047 + $0x34] sm:$0xf]
        %v2062 = vld [vmem:[%s2047 + $0x38] sm:$0xf]
        %v2063 = vld [vmem:[%s2047 + $0x3c] sm:$0xf]
        %v2064 = vld [vmem:[%s2047 + $0x40] sm:$0xf]
        %v2065 = vld [vmem:[%s2047 + $0x44] sm:$0xf]
        %v2066 = vld [vmem:[%s2047 + $0x48] sm:$0xf]
        %v2067 = vld [vmem:[%s2047 + $0x4c] sm:$0xf]
        %v2068 = vld [vmem:[%s2047 + $0x50] sm:$0xf]
        %v2069 = vld [vmem:[%s2047 + $0x54] sm:$0xf]
        %v2070 = vld [vmem:[%s2047 + $0x58] sm:$0xf]
        %v2071 = vld [vmem:[%s2047 + $0x5c] sm:$0xf]
        %v2072 = vld [vmem:[%s2047 + $0x60] sm:$0xf]
        %v2073 = vld [vmem:[%s2047 + $0x64] sm:$0xf]
        %v2074 = vld [vmem:[%s2047 + $0x68] sm:$0xf]
        %v2075 = vld [vmem:[%s2047 + $0x6c] sm:$0xf]
        %v2076 = vld [vmem:[%s2047 + $0x70] sm:$0xf]
        %v2077 = vld [vmem:[%s2047 + $0x74] sm:$0xf]
        %v2078 = vld [vmem:[%s2047 + $0x78] sm:$0xf]
        %v2079 = vld [vmem:[%s2047 + $0x7c] sm:$0xf]
        %v2080 = vld [vmem:[%s2047 + $0x80] sm:$0xf]
        %v2081 = vld [vmem:[%s2047 + $0x84] sm:$0xf]
        %v2082 = vld [vmem:[%s2047 + $0x88] sm:$0xf]
        %v2083 = vld [vmem:[%s2047 + $0x8c] sm:$0xf]
        %v2084 = vld [vmem:[%s2047 + $0x90] sm:$0xf]
        %v2085 = vld [vmem:[%s2047 + $0x94] sm:$0xf]
        %v2086 = vld [vmem:[%s2047 + $0x98] sm:$0xf]
        %v2087 = vld [vmem:[%s2047 + $0x9c] sm:$0xf]
        %v2088 = vld [vmem:[%s2047 + $0xa0] sm:$0xf]
        %v2089 = vld [vmem:[%s2047 + $0xa4] sm:$0xf]
        %v2090 = vld [vmem:[%s2047 + $0xa8] sm:$0xf]
        %v2091 = vld [vmem:[%s2047 + $0xac] sm:$0xf]
        %v2092 = vld [vmem:[%s2047 + $0xb0] sm:$0xf]
        %v2093 = vld [vmem:[%s2047 + $0xb4] sm:$0xf]
        %v2094 = vld [vmem:[%s2047 + $0xb8] sm:$0xf]
        %v2095 = vld [vmem:[%s2047 + $0xbc] sm:$0xf]
        %v2104 = vunpack.c.l.b16 %v2048
        %v2105 = vunpack.c.l.b16 %v2049
        %v2106 = vunpack.c.l.b16 %v2050
        %v2107 = vunpack.c.l.b16 %v2051
        %v2108 = vunpack.c.l.b16 %v2052
        %v2109 = vunpack.c.l.b16 %v2053
        %v2110 = vunpack.c.l.b16 %v2054
        %v2111 = vunpack.c.l.b16 %v2055
        %v2112 = vpack.c.b16 %v2105, %v2104
        %v2113 = vpack.c.b16 %v2107, %v2106
        %v2114 = vpack.c.b16 %v2109, %v2108
        %v2115 = vpack.c.b16 %v2111, %v2110
        %v2121 = vsel %vm666, %v2045, 0
        %v2124 = vsel %vm666, %v2046, 0
        %2126 = vmatprep.subr.bf16.mxu0 0
        %2127 = vmatpush1.bf16.msra.mxu0 0
        %2128 = vmatprep.subr.bf16.mxu0 0
        %2129 = vmatpush1.bf16.msra.mxu0 0
        %2130 = vmatprep.subr.bf16.mxu0 0
        %2131 = vmatpush1.bf16.msra.mxu0 0
        %2132 = vmatprep.subr.bf16.mxu0 0
        %2133 = vmatpush1.bf16.msra.mxu0 0
        %2134 = vmatprep.subr.bf16.mxu0 0
        %2135 = vmatpush1.bf16.msra.mxu0 %v2115
        %2136 = vmatprep.subr.bf16.mxu0 0
        %2137 = vmatpush1.bf16.msra.mxu0 %v2114
        %2138 = vmatprep.subr.bf16.mxu0 0
        %2139 = vmatpush1.bf16.msra.mxu0 %v2113
        %2140 = vmatprep.subr.bf16.mxu0 0
        %2141 = vmatpush1.bf16.msra.mxu0 %v2112
        %2142 = vmatprep.subr.bf16.mxu0 0
        %2143 = vmatpush2.bf16.msra.mxu0 0
        %2144 = vmatprep.subr.bf16.mxu0 0
        %2145 = vmatpush2.bf16.msra.mxu0 0
        %2146 = vmatprep.subr.bf16.mxu0 0
        %2147 = vmatpush2.bf16.msra.mxu0 0
        %2148 = vmatprep.subr.bf16.mxu0 0
        %2149 = vmatpush2.bf16.msra.mxu0 0
        %2150 = vmatprep.subr.bf16.mxu0 0
        %2151 = vmatpush2.bf16.msra.mxu0 0
        %2152 = vmatprep.subr.bf16.mxu0 0
        %2153 = vmatpush2.bf16.msra.mxu0 0
        %2154 = vmatprep.subr.bf16.mxu0 0
        %2155 = vmatpush2.bf16.msra.mxu0 0
        %2156 = vmatprep.subr.bf16.mxu0 0
        %2157 = vmatpush2.bf16.msra.mxu0 0
        %2158 = vmatprep.mubr.bf16.mxu0 0
        %2159 = vmatmul.mubr.bf16.gmra.mxu0 %v2121
        %v2160 = vpop.f32.mrf.mxu0
        %v2161 = vadd.f32 0.0, %v2160
        %v2162 = vpop.f32.mrf.mxu0
        %v2163 = vpop.f32.mrf.mxu0
        %v2164 = vadd.f32 0.0, %v2163
        %v2165 = vpop.f32.mrf.mxu0
        %2166 = vmatprep.mubr.bf16.mxu0 0
        %2167 = vmatmul.mubr.bf16.gmra.mxu0 %v2124
        %v2168 = vpop.f32.mrf.mxu0
        %v2169 = vadd.f32 0.0, %v2168
        %v2170 = vpop.f32.mrf.mxu0
        %v2171 = vpop.f32.mrf.mxu0
        %v2172 = vpop.f32.mrf.mxu0
        %2173 = vdwg.mxu0
        %v2182 = vunpack.c.l.b16 %v2056
        %v2183 = vunpack.c.l.b16 %v2057
        %v2184 = vunpack.c.l.b16 %v2058
        %v2185 = vunpack.c.l.b16 %v2059
        %v2186 = vunpack.c.l.b16 %v2060
        %v2187 = vunpack.c.l.b16 %v2061
        %v2188 = vunpack.c.l.b16 %v2062
        %v2189 = vunpack.c.l.b16 %v2063
        %v2190 = vpack.c.b16 %v2183, %v2182
        %v2191 = vpack.c.b16 %v2185, %v2184
        %v2192 = vpack.c.b16 %v2187, %v2186
        %v2193 = vpack.c.b16 %v2189, %v2188
        %2198 = vmatprep.subr.bf16.mxu0 0
        %2199 = vmatpush1.bf16.msra.mxu0 0
        %2200 = vmatprep.subr.bf16.mxu0 0
        %2201 = vmatpush1.bf16.msra.mxu0 0
        %2202 = vmatprep.subr.bf16.mxu0 0
        %2203 = vmatpush1.bf16.msra.mxu0 0
        %2204 = vmatprep.subr.bf16.mxu0 0
        %2205 = vmatpush1.bf16.msra.mxu0 0
        %2206 = vmatprep.subr.bf16.mxu0 0
        %2207 = vmatpush1.bf16.msra.mxu0 %v2193
        %2208 = vmatprep.subr.bf16.mxu0 0
        %2209 = vmatpush1.bf16.msra.mxu0 %v2192
        %2210 = vmatprep.subr.bf16.mxu0 0
        %2211 = vmatpush1.bf16.msra.mxu0 %v2191
        %2212 = vmatprep.subr.bf16.mxu0 0
        %2213 = vmatpush1.bf16.msra.mxu0 %v2190
        %2214 = vmatprep.subr.bf16.mxu0 0
        %2215 = vmatpush2.bf16.msra.mxu0 0
        %2216 = vmatprep.subr.bf16.mxu0 0
        %2217 = vmatpush2.bf16.msra.mxu0 0
        %2218 = vmatprep.subr.bf16.mxu0 0
        %2219 = vmatpush2.bf16.msra.mxu0 0
        %2220 = vmatprep.subr.bf16.mxu0 0
        %2221 = vmatpush2.bf16.msra.mxu0 0
        %2222 = vmatprep.subr.bf16.mxu0 0
        %2223 = vmatpush2.bf16.msra.mxu0 0
        %2224 = vmatprep.subr.bf16.mxu0 0
        %2225 = vmatpush2.bf16.msra.mxu0 0
        %2226 = vmatprep.subr.bf16.mxu0 0
        %2227 = vmatpush2.bf16.msra.mxu0 0
        %2228 = vmatprep.subr.bf16.mxu0 0
        %2229 = vmatpush2.bf16.msra.mxu0 0
        %2230 = vmatprep.mubr.bf16.mxu0 0
        %2231 = vmatmul.mubr.bf16.gmra.mxu0 %v2121
        %v2232 = vpop.f32.mrf.mxu0
        %v2233 = vadd.f32 0.0, %v2232
        %v2234 = vpop.f32.mrf.mxu0
        %v2235 = vpop.f32.mrf.mxu0
        %v2236 = vadd.f32 0.0, %v2235
        %v2237 = vpop.f32.mrf.mxu0
        %2238 = vmatprep.mubr.bf16.mxu0 0
        %2239 = vmatmul.mubr.bf16.gmra.mxu0 %v2124
        %v2240 = vpop.f32.mrf.mxu0
        %v2241 = vadd.f32 0.0, %v2240
        %v2242 = vpop.f32.mrf.mxu0
        %v2243 = vpop.f32.mrf.mxu0
        %v2244 = vpop.f32.mrf.mxu0
        %2245 = vdwg.mxu0
        %v2254 = vunpack.c.l.b16 %v2064
        %v2255 = vunpack.c.l.b16 %v2065
        %v2256 = vunpack.c.l.b16 %v2066
        %v2257 = vunpack.c.l.b16 %v2067
        %v2258 = vunpack.c.l.b16 %v2068
        %v2259 = vunpack.c.l.b16 %v2069
        %v2260 = vunpack.c.l.b16 %v2070
        %v2261 = vunpack.c.l.b16 %v2071
        %v2262 = vpack.c.b16 %v2255, %v2254
        %v2263 = vpack.c.b16 %v2257, %v2256
        %v2264 = vpack.c.b16 %v2259, %v2258
        %v2265 = vpack.c.b16 %v2261, %v2260
        %2270 = vmatprep.subr.bf16.mxu0 0
        %2271 = vmatpush1.bf16.msra.mxu0 0
        %2272 = vmatprep.subr.bf16.mxu0 0
        %2273 = vmatpush1.bf16.msra.mxu0 0
        %2274 = vmatprep.subr.bf16.mxu0 0
        %2275 = vmatpush1.bf16.msra.mxu0 0
        %2276 = vmatprep.subr.bf16.mxu0 0
        %2277 = vmatpush1.bf16.msra.mxu0 0
        %2278 = vmatprep.subr.bf16.mxu0 0
        %2279 = vmatpush1.bf16.msra.mxu0 %v2265
        %2280 = vmatprep.subr.bf16.mxu0 0
        %2281 = vmatpush1.bf16.msra.mxu0 %v2264
        %2282 = vmatprep.subr.bf16.mxu0 0
        %2283 = vmatpush1.bf16.msra.mxu0 %v2263
        %2284 = vmatprep.subr.bf16.mxu0 0
        %2285 = vmatpush1.bf16.msra.mxu0 %v2262
        %2286 = vmatprep.subr.bf16.mxu0 0
        %2287 = vmatpush2.bf16.msra.mxu0 0
        %2288 = vmatprep.subr.bf16.mxu0 0
        %2289 = vmatpush2.bf16.msra.mxu0 0
        %2290 = vmatprep.subr.bf16.mxu0 0
        %2291 = vmatpush2.bf16.msra.mxu0 0
        %2292 = vmatprep.subr.bf16.mxu0 0
        %2293 = vmatpush2.bf16.msra.mxu0 0
        %2294 = vmatprep.subr.bf16.mxu0 0
        %2295 = vmatpush2.bf16.msra.mxu0 0
        %2296 = vmatprep.subr.bf16.mxu0 0
        %2297 = vmatpush2.bf16.msra.mxu0 0
        %2298 = vmatprep.subr.bf16.mxu0 0
        %2299 = vmatpush2.bf16.msra.mxu0 0
        %2300 = vmatprep.subr.bf16.mxu0 0
        %2301 = vmatpush2.bf16.msra.mxu0 0
        %2302 = vmatprep.mubr.bf16.mxu0 0
        %2303 = vmatmul.mubr.bf16.gmra.mxu0 %v2121
        %v2304 = vpop.f32.mrf.mxu0
        %v2305 = vadd.f32 0.0, %v2304
        %v2306 = vpop.f32.mrf.mxu0
        %v2307 = vpop.f32.mrf.mxu0
        %v2308 = vadd.f32 0.0, %v2307
        %v2309 = vpop.f32.mrf.mxu0
        %2310 = vmatprep.mubr.bf16.mxu0 0
        %2311 = vmatmul.mubr.bf16.gmra.mxu0 %v2124
        %v2312 = vpop.f32.mrf.mxu0
        %v2313 = vadd.f32 0.0, %v2312
        %v2314 = vpop.f32.mrf.mxu0
        %v2315 = vpop.f32.mrf.mxu0
        %v2316 = vpop.f32.mrf.mxu0
        %2317 = vdwg.mxu0
        %v2326 = vunpack.c.l.b16 %v2072
        %v2327 = vunpack.c.l.b16 %v2073
        %v2328 = vunpack.c.l.b16 %v2074
        %v2329 = vunpack.c.l.b16 %v2075
        %v2330 = vunpack.c.l.b16 %v2076
        %v2331 = vunpack.c.l.b16 %v2077
        %v2332 = vunpack.c.l.b16 %v2078
        %v2333 = vunpack.c.l.b16 %v2079
        %v2334 = vpack.c.b16 %v2327, %v2326
        %v2335 = vpack.c.b16 %v2329, %v2328
        %v2336 = vpack.c.b16 %v2331, %v2330
        %v2337 = vpack.c.b16 %v2333, %v2332
        %2342 = vmatprep.subr.bf16.mxu0 0
        %2343 = vmatpush1.bf16.msra.mxu0 0
        %2344 = vmatprep.subr.bf16.mxu0 0
        %2345 = vmatpush1.bf16.msra.mxu0 0
        %2346 = vmatprep.subr.bf16.mxu0 0
        %2347 = vmatpush1.bf16.msra.mxu0 0
        %2348 = vmatprep.subr.bf16.mxu0 0
        %2349 = vmatpush1.bf16.msra.mxu0 0
        %2350 = vmatprep.subr.bf16.mxu0 0
        %2351 = vmatpush1.bf16.msra.mxu0 %v2337
        %2352 = vmatprep.subr.bf16.mxu0 0
        %2353 = vmatpush1.bf16.msra.mxu0 %v2336
        %2354 = vmatprep.subr.bf16.mxu0 0
        %2355 = vmatpush1.bf16.msra.mxu0 %v2335
        %2356 = vmatprep.subr.bf16.mxu0 0
        %2357 = vmatpush1.bf16.msra.mxu0 %v2334
        %2358 = vmatprep.subr.bf16.mxu0 0
        %2359 = vmatpush2.bf16.msra.mxu0 0
        %2360 = vmatprep.subr.bf16.mxu0 0
        %2361 = vmatpush2.bf16.msra.mxu0 0
        %2362 = vmatprep.subr.bf16.mxu0 0
        %2363 = vmatpush2.bf16.msra.mxu0 0
        %2364 = vmatprep.subr.bf16.mxu0 0
        %2365 = vmatpush2.bf16.msra.mxu0 0
        %2366 = vmatprep.subr.bf16.mxu0 0
        %2367 = vmatpush2.bf16.msra.mxu0 0
        %2368 = vmatprep.subr.bf16.mxu0 0
        %2369 = vmatpush2.bf16.msra.mxu0 0
        %2370 = vmatprep.subr.bf16.mxu0 0
        %2371 = vmatpush2.bf16.msra.mxu0 0
        %2372 = vmatprep.subr.bf16.mxu0 0
        %2373 = vmatpush2.bf16.msra.mxu0 0
        %2374 = vmatprep.mubr.bf16.mxu0 0
        %2375 = vmatmul.mubr.bf16.gmra.mxu0 %v2121
        %v2376 = vpop.f32.mrf.mxu0
        %v2377 = vadd.f32 0.0, %v2376
        %v2378 = vpop.f32.mrf.mxu0
        %v2379 = vpop.f32.mrf.mxu0
        %v2380 = vadd.f32 0.0, %v2379
        %v2381 = vpop.f32.mrf.mxu0
        %2382 = vmatprep.mubr.bf16.mxu0 0
        %2383 = vmatmul.mubr.bf16.gmra.mxu0 %v2124
        %v2384 = vpop.f32.mrf.mxu0
        %v2385 = vadd.f32 0.0, %v2384
        %v2386 = vpop.f32.mrf.mxu0
        %v2387 = vpop.f32.mrf.mxu0
        %v2388 = vpop.f32.mrf.mxu0
        %2389 = vdwg.mxu0
        %v2398 = vunpack.c.l.b16 %v2080
        %v2399 = vunpack.c.l.b16 %v2081
        %v2400 = vunpack.c.l.b16 %v2082
        %v2401 = vunpack.c.l.b16 %v2083
        %v2402 = vunpack.c.l.b16 %v2084
        %v2403 = vunpack.c.l.b16 %v2085
        %v2404 = vunpack.c.l.b16 %v2086
        %v2405 = vunpack.c.l.b16 %v2087
        %v2406 = vpack.c.b16 %v2399, %v2398
        %v2407 = vpack.c.b16 %v2401, %v2400
        %v2408 = vpack.c.b16 %v2403, %v2402
        %v2409 = vpack.c.b16 %v2405, %v2404
        %2414 = vmatprep.subr.bf16.mxu0 0
        %2415 = vmatpush1.bf16.msra.mxu0 0
        %2416 = vmatprep.subr.bf16.mxu0 0
        %2417 = vmatpush1.bf16.msra.mxu0 0
        %2418 = vmatprep.subr.bf16.mxu0 0
        %2419 = vmatpush1.bf16.msra.mxu0 0
        %2420 = vmatprep.subr.bf16.mxu0 0
        %2421 = vmatpush1.bf16.msra.mxu0 0
        %2422 = vmatprep.subr.bf16.mxu0 0
        %2423 = vmatpush1.bf16.msra.mxu0 %v2409
        %2424 = vmatprep.subr.bf16.mxu0 0
        %2425 = vmatpush1.bf16.msra.mxu0 %v2408
        %2426 = vmatprep.subr.bf16.mxu0 0
        %2427 = vmatpush1.bf16.msra.mxu0 %v2407
        %2428 = vmatprep.subr.bf16.mxu0 0
        %2429 = vmatpush1.bf16.msra.mxu0 %v2406
        %2430 = vmatprep.subr.bf16.mxu0 0
        %2431 = vmatpush2.bf16.msra.mxu0 0
        %2432 = vmatprep.subr.bf16.mxu0 0
        %2433 = vmatpush2.bf16.msra.mxu0 0
        %2434 = vmatprep.subr.bf16.mxu0 0
        %2435 = vmatpush2.bf16.msra.mxu0 0
        %2436 = vmatprep.subr.bf16.mxu0 0
        %2437 = vmatpush2.bf16.msra.mxu0 0
        %2438 = vmatprep.subr.bf16.mxu0 0
        %2439 = vmatpush2.bf16.msra.mxu0 0
        %2440 = vmatprep.subr.bf16.mxu0 0
        %2441 = vmatpush2.bf16.msra.mxu0 0
        %2442 = vmatprep.subr.bf16.mxu0 0
        %2443 = vmatpush2.bf16.msra.mxu0 0
        %2444 = vmatprep.subr.bf16.mxu0 0
        %2445 = vmatpush2.bf16.msra.mxu0 0
        %2446 = vmatprep.mubr.bf16.mxu0 0
        %2447 = vmatmul.mubr.bf16.gmra.mxu0 %v2121
        %v2448 = vpop.f32.mrf.mxu0
        %v2449 = vadd.f32 0.0, %v2448
        %v2450 = vpop.f32.mrf.mxu0
        %v2451 = vpop.f32.mrf.mxu0
        %v2452 = vadd.f32 0.0, %v2451
        %v2453 = vpop.f32.mrf.mxu0
        %2454 = vmatprep.mubr.bf16.mxu0 0
        %2455 = vmatmul.mubr.bf16.gmra.mxu0 %v2124
        %v2456 = vpop.f32.mrf.mxu0
        %v2457 = vadd.f32 0.0, %v2456
        %v2458 = vpop.f32.mrf.mxu0
        %v2459 = vpop.f32.mrf.mxu0
        %v2460 = vpop.f32.mrf.mxu0
        %2461 = vdwg.mxu0
        %v2470 = vunpack.c.l.b16 %v2088
        %v2471 = vunpack.c.l.b16 %v2089
        %v2472 = vunpack.c.l.b16 %v2090
        %v2473 = vunpack.c.l.b16 %v2091
        %v2474 = vunpack.c.l.b16 %v2092
        %v2475 = vunpack.c.l.b16 %v2093
        %v2476 = vunpack.c.l.b16 %v2094
        %v2477 = vunpack.c.l.b16 %v2095
        %v2478 = vpack.c.b16 %v2471, %v2470
        %v2479 = vpack.c.b16 %v2473, %v2472
        %v2480 = vpack.c.b16 %v2475, %v2474
        %v2481 = vpack.c.b16 %v2477, %v2476
        %2486 = vmatprep.subr.bf16.mxu0 0
        %2487 = vmatpush1.bf16.msra.mxu0 0
        %2488 = vmatprep.subr.bf16.mxu0 0
        %2489 = vmatpush1.bf16.msra.mxu0 0
        %2490 = vmatprep.subr.bf16.mxu0 0
        %2491 = vmatpush1.bf16.msra.mxu0 0
        %2492 = vmatprep.subr.bf16.mxu0 0
        %2493 = vmatpush1.bf16.msra.mxu0 0
        %2494 = vmatprep.subr.bf16.mxu0 0
        %2495 = vmatpush1.bf16.msra.mxu0 %v2481
        %2496 = vmatprep.subr.bf16.mxu0 0
        %2497 = vmatpush1.bf16.msra.mxu0 %v2480
        %2498 = vmatprep.subr.bf16.mxu0 0
        %2499 = vmatpush1.bf16.msra.mxu0 %v2479
        %2500 = vmatprep.subr.bf16.mxu0 0
        %2501 = vmatpush1.bf16.msra.mxu0 %v2478
        %2502 = vmatprep.subr.bf16.mxu0 0
        %2503 = vmatpush2.bf16.msra.mxu0 0
        %2504 = vmatprep.subr.bf16.mxu0 0
        %2505 = vmatpush2.bf16.msra.mxu0 0
        %2506 = vmatprep.subr.bf16.mxu0 0
        %2507 = vmatpush2.bf16.msra.mxu0 0
        %2508 = vmatprep.subr.bf16.mxu0 0
        %2509 = vmatpush2.bf16.msra.mxu0 0
        %2510 = vmatprep.subr.bf16.mxu0 0
        %2511 = vmatpush2.bf16.msra.mxu0 0
        %2512 = vmatprep.subr.bf16.mxu0 0
        %2513 = vmatpush2.bf16.msra.mxu0 0
        %2514 = vmatprep.subr.bf16.mxu0 0
        %2515 = vmatpush2.bf16.msra.mxu0 0
        %2516 = vmatprep.subr.bf16.mxu0 0
        %2517 = vmatpush2.bf16.msra.mxu0 0
        %2518 = vmatprep.mubr.bf16.mxu0 0
        %2519 = vmatmul.mubr.bf16.gmra.mxu0 %v2121
        %v2520 = vpop.f32.mrf.mxu0
        %v2521 = vadd.f32 0.0, %v2520
        %v2522 = vpop.f32.mrf.mxu0
        %v2523 = vpop.f32.mrf.mxu0
        %v2524 = vadd.f32 0.0, %v2523
        %v2525 = vpop.f32.mrf.mxu0
        %2526 = vmatprep.mubr.bf16.mxu0 0
        %2527 = vmatmul.mubr.bf16.gmra.mxu0 %v2124
        %v2528 = vpop.f32.mrf.mxu0
        %v2529 = vadd.f32 0.0, %v2528
        %v2530 = vpop.f32.mrf.mxu0
        %v2531 = vpop.f32.mrf.mxu0
        %v2532 = vpop.f32.mrf.mxu0
        %2533 = vdwg.mxu0
        %v2534 = vmul.f32 %v2161, 0.25
        %v2535 = vmul.f32 %v2164, 0.25
        %v2536 = vmul.f32 %v2169, 0.25
        %v2537 = vmul.f32 %v2233, 0.25
        %v2538 = vmul.f32 %v2236, 0.25
        %v2539 = vmul.f32 %v2241, 0.25
        %v2540 = vpack.c.bf16 %v2535, %v2534
        %v2541 = vpack.c.bf16 %v2536, %v2536
        %v2542 = vpack.c.bf16 %v2538, %v2537
        %v2543 = vpack.c.bf16 %v2539, %v2539
        %v2544 = vpack.c.bf16 %v2308, %v2305
        %v2545 = vpack.c.bf16 %v2313, %v2313
        %v2546 = vpack.c.bf16 %v2380, %v2377
        %v2547 = vpack.c.bf16 %v2385, %v2385
        %v2548 = vpack.c.bf16 %v2452, %v2449
        %v2549 = vpack.c.bf16 %v2457, %v2457
        %v2550 = vpack.c.bf16 %v2524, %v2521
        %v2551 = vpack.c.bf16 %v2529, %v2529
        %v2553 = vsel %vm1231, %v2540, 0
        %v2556 = vsel %vm1231, %v2541, 0
        %v2559 = vsel %vm1231, %v2544, 0
        %v2562 = vsel %vm1231, %v2545, 0
        %2564 = vmatprep.subr.bf16.mxu0 0
        %2565 = vmatpush1.bf16.xpose.msra.mxu0 0
        %2566 = vmatprep.subr.bf16.mxu0 0
        %2567 = vmatpush1.bf16.xpose.msra.mxu0 0
        %2568 = vmatprep.subr.bf16.mxu0 0
        %2569 = vmatpush1.bf16.xpose.msra.mxu0 0
        %2570 = vmatprep.subr.bf16.mxu0 0
        %2571 = vmatpush1.bf16.xpose.msra.mxu0 0
        %2572 = vmatprep.subr.bf16.mxu0 0
        %2573 = vmatpush1.bf16.xpose.msra.mxu0 0
        %2574 = vmatprep.subr.bf16.mxu0 0
        %2575 = vmatpush1.bf16.xpose.msra.mxu0 0
        %2576 = vmatprep.subr.bf16.mxu0 0
        %2577 = vmatpush1.bf16.xpose.msra.mxu0 %v2562
        %2578 = vmatprep.subr.bf16.mxu0 0
        %2579 = vmatpush1.bf16.xpose.msra.mxu0 %v2559
        %2580 = vmatprep.subr.bf16.mxu0 0
        %2581 = vmatpush2.bf16.xpose.msra.mxu0 0
        %2582 = vmatprep.subr.bf16.mxu0 0
        %2583 = vmatpush2.bf16.xpose.msra.mxu0 0
        %2584 = vmatprep.subr.bf16.mxu0 0
        %2585 = vmatpush2.bf16.xpose.msra.mxu0 0
        %2586 = vmatprep.subr.bf16.mxu0 0
        %2587 = vmatpush2.bf16.xpose.msra.mxu0 0
        %2588 = vmatprep.subr.bf16.mxu0 0
        %2589 = vmatpush2.bf16.xpose.msra.mxu0 0
        %2590 = vmatprep.subr.bf16.mxu0 0
        %2591 = vmatpush2.bf16.xpose.msra.mxu0 0
        %2592 = vmatprep.subr.bf16.mxu0 0
        %2593 = vmatpush2.bf16.xpose.msra.mxu0 0
        %2594 = vmatprep.subr.bf16.mxu0 0
        %2595 = vmatpush2.bf16.xpose.msra.mxu0 0
        %2596 = vmatprep.mubr.bf16.mxu0 0
        %2597 = vmatmul.mubr.bf16.gmra.mxu0 %v2553
        %v2598 = vpop.f32.mrf.mxu0
        %v2599 = vadd.f32 0.0, %v2598
        %v2600 = vpop.f32.mrf.mxu0
        %v2601 = vpop.f32.mrf.mxu0
        %v2602 = vadd.f32 0.0, %v2601
        %v2603 = vpop.f32.mrf.mxu0
        %2604 = vmatprep.mubr.bf16.mxu0 0
        %2605 = vmatmul.mubr.bf16.gmra.mxu0 %v2556
        %v2606 = vpop.f32.mrf.mxu0
        %v2607 = vadd.f32 0.0, %v2606
        %v2608 = vpop.f32.mrf.mxu0
        %v2609 = vpop.f32.mrf.mxu0
        %v2610 = vpop.f32.mrf.mxu0
        %2611 = vdwg.mxu0
        %v2613 = vsel %vm1231, %v2542, 0
        %v2616 = vsel %vm1231, %v2543, 0
        %v2619 = vsel %vm1231, %v2546, 0
        %v2622 = vsel %vm1231, %v2547, 0
        %2624 = vmatprep.subr.bf16.mxu0 0
        %2625 = vmatpush1.bf16.xpose.msra.mxu0 0
        %2626 = vmatprep.subr.bf16.mxu0 0
        %2627 = vmatpush1.bf16.xpose.msra.mxu0 0
        %2628 = vmatprep.subr.bf16.mxu0 0
        %2629 = vmatpush1.bf16.xpose.msra.mxu0 0
        %2630 = vmatprep.subr.bf16.mxu0 0
        %2631 = vmatpush1.bf16.xpose.msra.mxu0 0
        %2632 = vmatprep.subr.bf16.mxu0 0
        %2633 = vmatpush1.bf16.xpose.msra.mxu0 0
        %2634 = vmatprep.subr.bf16.mxu0 0
        %2635 = vmatpush1.bf16.xpose.msra.mxu0 0
        %2636 = vmatprep.subr.bf16.mxu0 0
        %2637 = vmatpush1.bf16.xpose.msra.mxu0 %v2622
        %2638 = vmatprep.subr.bf16.mxu0 0
        %2639 = vmatpush1.bf16.xpose.msra.mxu0 %v2619
        %2640 = vmatprep.subr.bf16.mxu0 0
        %2641 = vmatpush2.bf16.xpose.msra.mxu0 0
        %2642 = vmatprep.subr.bf16.mxu0 0
        %2643 = vmatpush2.bf16.xpose.msra.mxu0 0
        %2644 = vmatprep.subr.bf16.mxu0 0
        %2645 = vmatpush2.bf16.xpose.msra.mxu0 0
        %2646 = vmatprep.subr.bf16.mxu0 0
        %2647 = vmatpush2.bf16.xpose.msra.mxu0 0
        %2648 = vmatprep.subr.bf16.mxu0 0
        %2649 = vmatpush2.bf16.xpose.msra.mxu0 0
        %2650 = vmatprep.subr.bf16.mxu0 0
        %2651 = vmatpush2.bf16.xpose.msra.mxu0 0
        %2652 = vmatprep.subr.bf16.mxu0 0
        %2653 = vmatpush2.bf16.xpose.msra.mxu0 0
        %2654 = vmatprep.subr.bf16.mxu0 0
        %2655 = vmatpush2.bf16.xpose.msra.mxu0 0
        %2656 = vmatprep.mubr.bf16.mxu0 0
        %2657 = vmatmul.mubr.bf16.gmra.mxu0 %v2613
        %v2658 = vpop.f32.mrf.mxu0
        %v2659 = vadd.f32 0.0, %v2658
        %v2660 = vpop.f32.mrf.mxu0
        %v2661 = vpop.f32.mrf.mxu0
        %v2662 = vadd.f32 0.0, %v2661
        %v2663 = vpop.f32.mrf.mxu0
        %2664 = vmatprep.mubr.bf16.mxu0 0
        %2665 = vmatmul.mubr.bf16.gmra.mxu0 %v2616
        %v2666 = vpop.f32.mrf.mxu0
        %v2667 = vadd.f32 0.0, %v2666
        %v2668 = vpop.f32.mrf.mxu0
        %v2669 = vpop.f32.mrf.mxu0
        %v2670 = vpop.f32.mrf.mxu0
        %2671 = vdwg.mxu0
        %v2672 = vsel %vm663, %v2599, -1e+30
        %v2673 = vsel %vm663, %v2602, -1e+30
        %v2674 = vsel %vm663, %v2607, -1e+30
        %v2675 = vsel %vm663, %v2659, -1e+30
        %v2676 = vsel %vm663, %v2662, -1e+30
        %v2677 = vsel %vm663, %v2667, -1e+30
        %v2678 = vsel %vm1358, %v2672, -inf
        %2679 = vmax.xlane.f32.xlu0 %v2678
        %v2680 = vpop.xlane.xlu0 %2679
        %v2681 = vsel %vm1358, %v2673, -inf
        %2682 = vmax.xlane.f32.xlu0 %v2681
        %v2683 = vpop.xlane.xlu0 %2682
        %v2684 = vsel %vm1358, %v2674, -inf
        %2685 = vmax.xlane.f32.xlu0 %v2684
        %v2686 = vpop.xlane.xlu0 %2685
        %v2687 = vsel %vm1358, %v2675, -inf
        %2688 = vmax.xlane.f32.xlu0 %v2687
        %v2689 = vpop.xlane.xlu0 %2688
        %v2690 = vsel %vm1358, %v2676, -inf
        %2691 = vmax.xlane.f32.xlu0 %v2690
        %v2692 = vpop.xlane.xlu0 %2691
        %v2693 = vsel %vm1358, %v2677, -inf
        %2694 = vmax.xlane.f32.xlu0 %v2693
        %v2695 = vpop.xlane.xlu0 %2694
        %v2696 = vsub.f32 %v2672, %v2680
        %v2697 = vsub.f32 %v2673, %v2683
        %v2698 = vsub.f32 %v2674, %v2686
        %v2699 = vsub.f32 %v2675, %v2689
        %v2700 = vsub.f32 %v2676, %v2692
        %v2701 = vsub.f32 %v2677, %v2695
        %v2702 = vmul.f32 %v2696, 1.442695
        %v2703 = vpow.pop %v2702
        %v2704 = vmul.f32 %v2697, 1.442695
        %v2705 = vpow.pop %v2704
        %v2706 = vmul.f32 %v2698, 1.442695
        %v2707 = vpow.pop %v2706
        %v2708 = vmul.f32 %v2699, 1.442695
        %v2709 = vpow.pop %v2708
        %v2710 = vmul.f32 %v2700, 1.442695
        %v2711 = vpow.pop %v2710
        %v2712 = vmul.f32 %v2701, 1.442695
        %v2713 = vpow.pop %v2712
        %v2714 = vsel %vm1358, %v2703, 0.0
        %2715 = vadd.xlane.f32.xlu0 %v2714
        %v2716 = vpop.xlane.xlu0 %2715
        %v2717 = vsel %vm1358, %v2705, 0.0
        %2718 = vadd.xlane.f32.xlu0 %v2717
        %v2719 = vpop.xlane.xlu0 %2718
        %v2720 = vsel %vm1358, %v2707, 0.0
        %2721 = vadd.xlane.f32.xlu0 %v2720
        %v2722 = vpop.xlane.xlu0 %2721
        %v2723 = vsel %vm1358, %v2709, 0.0
        %2724 = vadd.xlane.f32.xlu0 %v2723
        %v2725 = vpop.xlane.xlu0 %2724
        %v2726 = vsel %vm1358, %v2711, 0.0
        %2727 = vadd.xlane.f32.xlu0 %v2726
        %v2728 = vpop.xlane.xlu0 %2727
        %v2729 = vsel %vm1358, %v2713, 0.0
        %2730 = vadd.xlane.f32.xlu0 %v2729
        %v2731 = vpop.xlane.xlu0 %2730
        %v2732 = vrcp.pop %v2716
        %v2733 = vrcp.pop %v2719
        %v2734 = vrcp.pop %v2722
        %v2735 = vrcp.pop %v2725
        %v2736 = vrcp.pop %v2728
        %v2737 = vrcp.pop %v2731
        %v2738 = vmul.f32 %v2703, %v2732
        %v2739 = vmul.f32 %v2705, %v2733
        %v2740 = vmul.f32 %v2707, %v2734
        %v2741 = vmul.f32 %v2709, %v2735
        %v2742 = vmul.f32 %v2711, %v2736
        %v2743 = vmul.f32 %v2713, %v2737
        %v2744 = vpack.c.bf16 %v2739, %v2738
        %v2745 = vpack.c.bf16 %v2740, %v2740
        %v2746 = vpack.c.bf16 %v2742, %v2741
        %v2747 = vpack.c.bf16 %v2743, %v2743
        %v2749 = vsel %vm1358, %v2744, 0
        %v2752 = vsel %vm1358, %v2745, 0
        %v2755 = vsel %vm1435, %v2549, 0
        %2757 = vmatprep.subr.bf16.mxu0 0
        %2758 = vmatpush1.bf16.msra.mxu0 0
        %2759 = vmatprep.subr.bf16.mxu0 0
        %2760 = vmatpush1.bf16.msra.mxu0 0
        %2761 = vmatprep.subr.bf16.mxu0 0
        %2762 = vmatpush1.bf16.msra.mxu0 0
        %2763 = vmatprep.subr.bf16.mxu0 0
        %2764 = vmatpush1.bf16.msra.mxu0 0
        %2765 = vmatprep.subr.bf16.mxu0 0
        %2766 = vmatpush1.bf16.msra.mxu0 0
        %2767 = vmatprep.subr.bf16.mxu0 0
        %2768 = vmatpush1.bf16.msra.mxu0 0
        %2769 = vmatprep.subr.bf16.mxu0 0
        %2770 = vmatpush1.bf16.msra.mxu0 %v2755
        %2771 = vmatprep.subr.bf16.mxu0 0
        %2772 = vmatpush1.bf16.msra.mxu0 %v2548
        %2773 = vmatprep.subr.bf16.mxu0 0
        %2774 = vmatpush2.bf16.msra.mxu0 0
        %2775 = vmatprep.subr.bf16.mxu0 0
        %2776 = vmatpush2.bf16.msra.mxu0 0
        %2777 = vmatprep.subr.bf16.mxu0 0
        %2778 = vmatpush2.bf16.msra.mxu0 0
        %2779 = vmatprep.subr.bf16.mxu0 0
        %2780 = vmatpush2.bf16.msra.mxu0 0
        %2781 = vmatprep.subr.bf16.mxu0 0
        %2782 = vmatpush2.bf16.msra.mxu0 0
        %2783 = vmatprep.subr.bf16.mxu0 0
        %2784 = vmatpush2.bf16.msra.mxu0 0
        %2785 = vmatprep.subr.bf16.mxu0 0
        %2786 = vmatpush2.bf16.msra.mxu0 0
        %2787 = vmatprep.subr.bf16.mxu0 0
        %2788 = vmatpush2.bf16.msra.mxu0 0
        %2789 = vmatprep.mubr.bf16.mxu0 0
        %2790 = vmatmul.mubr.bf16.gmra.mxu0 %v2749
        %v2791 = vpop.f32.mrf.mxu0
        %v2792 = vadd.f32 0.0, %v2791
        %v2793 = vpop.f32.mrf.mxu0
        %v2794 = vpop.f32.mrf.mxu0
        %v2795 = vadd.f32 0.0, %v2794
        %v2796 = vpop.f32.mrf.mxu0
        %2797 = vmatprep.mubr.bf16.mxu0 0
        %2798 = vmatmul.mubr.bf16.gmra.mxu0 %v2752
        %v2799 = vpop.f32.mrf.mxu0
        %v2800 = vadd.f32 0.0, %v2799
        %v2801 = vpop.f32.mrf.mxu0
        %v2802 = vpop.f32.mrf.mxu0
        %v2803 = vpop.f32.mrf.mxu0
        %2804 = vdwg.mxu0
        %v2806 = vsel %vm1358, %v2746, 0
        %v2809 = vsel %vm1358, %v2747, 0
        %v2812 = vsel %vm1435, %v2551, 0
        %2814 = vmatprep.subr.bf16.mxu0 0
        %2815 = vmatpush1.bf16.msra.mxu0 0
        %2816 = vmatprep.subr.bf16.mxu0 0
        %2817 = vmatpush1.bf16.msra.mxu0 0
        %2818 = vmatprep.subr.bf16.mxu0 0
        %2819 = vmatpush1.bf16.msra.mxu0 0
        %2820 = vmatprep.subr.bf16.mxu0 0
        %2821 = vmatpush1.bf16.msra.mxu0 0
        %2822 = vmatprep.subr.bf16.mxu0 0
        %2823 = vmatpush1.bf16.msra.mxu0 0
        %2824 = vmatprep.subr.bf16.mxu0 0
        %2825 = vmatpush1.bf16.msra.mxu0 0
        %2826 = vmatprep.subr.bf16.mxu0 0
        %2827 = vmatpush1.bf16.msra.mxu0 %v2812
        %2828 = vmatprep.subr.bf16.mxu0 0
        %2829 = vmatpush1.bf16.msra.mxu0 %v2550
        %2830 = vmatprep.subr.bf16.mxu0 0
        %2831 = vmatpush2.bf16.msra.mxu0 0
        %2832 = vmatprep.subr.bf16.mxu0 0
        %2833 = vmatpush2.bf16.msra.mxu0 0
        %2834 = vmatprep.subr.bf16.mxu0 0
        %2835 = vmatpush2.bf16.msra.mxu0 0
        %2836 = vmatprep.subr.bf16.mxu0 0
        %2837 = vmatpush2.bf16.msra.mxu0 0
        %2838 = vmatprep.subr.bf16.mxu0 0
        %2839 = vmatpush2.bf16.msra.mxu0 0
        %2840 = vmatprep.subr.bf16.mxu0 0
        %2841 = vmatpush2.bf16.msra.mxu0 0
        %2842 = vmatprep.subr.bf16.mxu0 0
        %2843 = vmatpush2.bf16.msra.mxu0 0
        %2844 = vmatprep.subr.bf16.mxu0 0
        %2845 = vmatpush2.bf16.msra.mxu0 0
        %2846 = vmatprep.mubr.bf16.mxu0 0
        %2847 = vmatmul.mubr.bf16.gmra.mxu0 %v2806
        %v2848 = vpop.f32.mrf.mxu0
        %v2849 = vadd.f32 0.0, %v2848
        %v2850 = vpop.f32.mrf.mxu0
        %v2851 = vpop.f32.mrf.mxu0
        %v2852 = vadd.f32 0.0, %v2851
        %v2853 = vpop.f32.mrf.mxu0
        %2854 = vmatprep.mubr.bf16.mxu0 0
        %2855 = vmatmul.mubr.bf16.gmra.mxu0 %v2809
        %v2856 = vpop.f32.mrf.mxu0
        %v2857 = vadd.f32 0.0, %v2856
        %v2858 = vpop.f32.mrf.mxu0
        %v2859 = vpop.f32.mrf.mxu0
        %v2860 = vpop.f32.mrf.mxu0
        %2861 = vdwg.mxu0
        %v2862 = vpack.c.bf16 %v2795, %v2792
        %v2863 = vpack.c.bf16 %v2800, %v2800
        %v2864 = vpack.c.bf16 %v2852, %v2849
        %v2865 = vpack.c.bf16 %v2857, %v2857
        %s2866 = scalar_lea.vmem %s6, 16
        %v2867 = vld [vmem:[%s2866] sm:$0xf]
        %v2868 = vld [vmem:[%s2866 + $0x4] sm:$0xf]
        %v2869 = vld [vmem:[%s2866 + $0x8] sm:$0xf]
        %v2870 = vld [vmem:[%s2866 + $0xc] sm:$0xf]
        %v2873 = vunpack.c.l.b16 %v2867
        %v2874 = vunpack.c.l.b16 %v2868
        %v2875 = vpack.c.b16 %v2874, %v2873
        %v2878 = vsel %vm1231, %v2862, 0
        %v2881 = vsel %vm1231, %v2863, 0
        %2883 = vmatprep.subr.bf16.mxu0 0
        %2884 = vmatpush1.bf16.msra.mxu0 0
        %2885 = vmatprep.subr.bf16.mxu0 0
        %2886 = vmatpush1.bf16.msra.mxu0 0
        %2887 = vmatprep.subr.bf16.mxu0 0
        %2888 = vmatpush1.bf16.msra.mxu0 0
        %2889 = vmatprep.subr.bf16.mxu0 0
        %2890 = vmatpush1.bf16.msra.mxu0 0
        %2891 = vmatprep.subr.bf16.mxu0 0
        %2892 = vmatpush1.bf16.msra.mxu0 0
        %2893 = vmatprep.subr.bf16.mxu0 0
        %2894 = vmatpush1.bf16.msra.mxu0 0
        %2895 = vmatprep.subr.bf16.mxu0 0
        %2896 = vmatpush1.bf16.msra.mxu0 0
        %2897 = vmatprep.subr.bf16.mxu0 0
        %2898 = vmatpush1.bf16.msra.mxu0 %v2875
        %2899 = vmatprep.subr.bf16.mxu0 0
        %2900 = vmatpush2.bf16.msra.mxu0 0
        %2901 = vmatprep.subr.bf16.mxu0 0
        %2902 = vmatpush2.bf16.msra.mxu0 0
        %2903 = vmatprep.subr.bf16.mxu0 0
        %2904 = vmatpush2.bf16.msra.mxu0 0
        %2905 = vmatprep.subr.bf16.mxu0 0
        %2906 = vmatpush2.bf16.msra.mxu0 0
        %2907 = vmatprep.subr.bf16.mxu0 0
        %2908 = vmatpush2.bf16.msra.mxu0 0
        %2909 = vmatprep.subr.bf16.mxu0 0
        %2910 = vmatpush2.bf16.msra.mxu0 0
        %2911 = vmatprep.subr.bf16.mxu0 0
        %2912 = vmatpush2.bf16.msra.mxu0 0
        %2913 = vmatprep.subr.bf16.mxu0 0
        %2914 = vmatpush2.bf16.msra.mxu0 0
        %2915 = vmatprep.mubr.bf16.mxu0 0
        %2916 = vmatmul.mubr.bf16.gmra.mxu0 %v2878
        %v2917 = vpop.f32.mrf.mxu0
        %v2918 = vadd.f32 0.0, %v2917
        %v2919 = vpop.f32.mrf.mxu0
        %v2920 = vpop.f32.mrf.mxu0
        %v2921 = vadd.f32 0.0, %v2920
        %v2922 = vpop.f32.mrf.mxu0
        %2923 = vmatprep.mubr.bf16.mxu0 0
        %2924 = vmatmul.mubr.bf16.gmra.mxu0 %v2881
        %v2925 = vpop.f32.mrf.mxu0
        %v2926 = vadd.f32 0.0, %v2925
        %v2927 = vpop.f32.mrf.mxu0
        %v2928 = vpop.f32.mrf.mxu0
        %v2929 = vpop.f32.mrf.mxu0
        %2930 = vdwg.mxu0
        %v2933 = vunpack.c.l.b16 %v2869
        %v2934 = vunpack.c.l.b16 %v2870
        %v2935 = vpack.c.b16 %v2934, %v2933
        %v2938 = vsel %vm1231, %v2864, 0
        %v2941 = vsel %vm1231, %v2865, 0
        %2943 = vmatprep.subr.bf16.mxu0 0
        %2944 = vmatpush1.bf16.msra.mxu0 0
        %2945 = vmatprep.subr.bf16.mxu0 0
        %2946 = vmatpush1.bf16.msra.mxu0 0
        %2947 = vmatprep.subr.bf16.mxu0 0
        %2948 = vmatpush1.bf16.msra.mxu0 0
        %2949 = vmatprep.subr.bf16.mxu0 0
        %2950 = vmatpush1.bf16.msra.mxu0 0
        %2951 = vmatprep.subr.bf16.mxu0 0
        %2952 = vmatpush1.bf16.msra.mxu0 0
        %2953 = vmatprep.subr.bf16.mxu0 0
        %2954 = vmatpush1.bf16.msra.mxu0 0
        %2955 = vmatprep.subr.bf16.mxu0 0
        %2956 = vmatpush1.bf16.msra.mxu0 0
        %2957 = vmatprep.subr.bf16.mxu0 0
        %2958 = vmatpush1.bf16.msra.mxu0 %v2935
        %2959 = vmatprep.subr.bf16.mxu0 0
        %2960 = vmatpush2.bf16.msra.mxu0 0
        %2961 = vmatprep.subr.bf16.mxu0 0
        %2962 = vmatpush2.bf16.msra.mxu0 0
        %2963 = vmatprep.subr.bf16.mxu0 0
        %2964 = vmatpush2.bf16.msra.mxu0 0
        %2965 = vmatprep.subr.bf16.mxu0 0
        %2966 = vmatpush2.bf16.msra.mxu0 0
        %2967 = vmatprep.subr.bf16.mxu0 0
        %2968 = vmatpush2.bf16.msra.mxu0 0
        %2969 = vmatprep.subr.bf16.mxu0 0
        %2970 = vmatpush2.bf16.msra.mxu0 0
        %2971 = vmatprep.subr.bf16.mxu0 0
        %2972 = vmatpush2.bf16.msra.mxu0 0
        %2973 = vmatprep.subr.bf16.mxu0 0
        %2974 = vmatpush2.bf16.msra.mxu0 0
        %2975 = vmatprep.mubr.bf16.mxu0 0
        %2976 = vmatmul.mubr.bf16.gmra.mxu0 %v2938
        %v2977 = vpop.f32.mrf.mxu0
        %v2978 = vadd.f32 0.0, %v2977
        %v2979 = vpop.f32.mrf.mxu0
        %v2980 = vpop.f32.mrf.mxu0
        %v2981 = vadd.f32 0.0, %v2980
        %v2982 = vpop.f32.mrf.mxu0
        %2983 = vmatprep.mubr.bf16.mxu0 0
        %2984 = vmatmul.mubr.bf16.gmra.mxu0 %v2941
        %v2985 = vpop.f32.mrf.mxu0
        %v2986 = vadd.f32 0.0, %v2985
        %v2987 = vpop.f32.mrf.mxu0
        %v2988 = vpop.f32.mrf.mxu0
        %v2989 = vpop.f32.mrf.mxu0
        %2990 = vdwg.mxu0
        %v2991 = vadd.f32 %v2918, %v2978
        %v2992 = vadd.f32 %v2921, %v2981
        %v2993 = vadd.f32 %v2926, %v2986
        %v2994 = vadd.f32 %v1981, %v2991
        %v2995 = vadd.f32 %v1982, %v2992
        %v2996 = vadd.f32 %v1983, %v2993
        %s2997 = scalar_lea.vmem %s7, 1
        %v2998 = vld [vmem:[%s2997] sm:$0x1]
        %v3000 = vlaneseq
        %v3001 = vshrl.u32 %v3000, 7
        %v3002 = vsub.s32 0, %v3001
        %v3003 = vrot.slane %v2998, %v3002
        %v3005 = vadd.f32 %v2994, %v3003
        %v3006 = vadd.f32 %v2995, %v3003
        %v3007 = vadd.f32 %v2996, %v3003
        %s3008 = scalar_lea.vmem %s8, 1
        %v3009 = vld [vmem:[%s3008] sm:$0x1]
        %s3010 = scalar_lea.vmem %s9, 1
        %v3011 = vld [vmem:[%s3010] sm:$0x1]
        %v3012 = vsel %vm666, %v3005, 0.0
        %3013 = vadd.xlane.f32.xlu0 %v3012
        %v3014 = vpop.xlane.xlu0 %3013
        %v3015 = vsel %vm666, %v3006, 0.0
        %3016 = vadd.xlane.f32.xlu0 %v3015
        %v3017 = vpop.xlane.xlu0 %3016
        %v3018 = vsel %vm666, %v3007, 0.0
        %3019 = vadd.xlane.f32.xlu0 %v3018
        %v3020 = vpop.xlane.xlu0 %3019
        %v3021 = vmul.f32 %v3014, %v676
        %v3022 = vmul.f32 %v3017, %v676
        %v3023 = vmul.f32 %v3020, %v676
        %v3024 = vsub.f32 %v3005, %v3021
        %v3025 = vsub.f32 %v3006, %v3022
        %v3026 = vsub.f32 %v3007, %v3023
        %v3027 = vmul.f32 %v3024, %v3024
        %v3028 = vmul.f32 %v3025, %v3025
        %v3029 = vmul.f32 %v3026, %v3026
        %v3030 = vsel %vm666, %v3027, 0.0
        %3031 = vadd.xlane.f32.xlu0 %v3030
        %v3032 = vpop.xlane.xlu0 %3031
        %v3033 = vsel %vm666, %v3028, 0.0
        %3034 = vadd.xlane.f32.xlu0 %v3033
        %v3035 = vpop.xlane.xlu0 %3034
        %v3036 = vsel %vm666, %v3029, 0.0
        %3037 = vadd.xlane.f32.xlu0 %v3036
        %v3038 = vpop.xlane.xlu0 %3037
        %v3039 = vmul.f32 %v3032, %v676
        %v3040 = vmul.f32 %v3035, %v676
        %v3041 = vmul.f32 %v3038, %v676
        %v3042 = vadd.f32 %v3039, 1e-05
        %v3043 = vadd.f32 %v3040, 1e-05
        %v3044 = vadd.f32 %v3041, 1e-05
        %v3045 = vrsqrt.pop %v3042
        %v3046 = vrsqrt.pop %v3043
        %v3047 = vrsqrt.pop %v3044
        %v3048 = vmul.f32 %v3024, %v3045
        %v3049 = vmul.f32 %v3025, %v3046
        %v3050 = vmul.f32 %v3026, %v3047
        %v3052 = vlaneseq
        %v3053 = vshrl.u32 %v3052, 7
        %v3054 = vsub.s32 0, %v3053
        %v3055 = vrot.slane %v3009, %v3054
        %v3057 = vmul.f32 %v3048, %v3055
        %v3058 = vmul.f32 %v3049, %v3055
        %v3059 = vmul.f32 %v3050, %v3055
        %v3061 = vlaneseq
        %v3062 = vshrl.u32 %v3061, 7
        %v3063 = vsub.s32 0, %v3062
        %v3064 = vrot.slane %v3011, %v3063
        %v3066 = vadd.f32 %v3057, %v3064
        %v3067 = vadd.f32 %v3058, %v3064
        %v3068 = vadd.f32 %v3059, %v3064
        %v3069 = vpack.c.bf16 %v3067, %v3066
        %v3070 = vpack.c.bf16 %v3068, %v3068
        %s3071 = scalar_lea.vmem %s10, 32
        %v3072 = vld [vmem:[%s3071] sm:$0xf]
        %v3073 = vld [vmem:[%s3071 + $0x4] sm:$0xf]
        %v3074 = vld [vmem:[%s3071 + $0x8] sm:$0xf]
        %v3075 = vld [vmem:[%s3071 + $0xc] sm:$0xf]
        %v3076 = vld [vmem:[%s3071 + $0x10] sm:$0xf]
        %v3077 = vld [vmem:[%s3071 + $0x14] sm:$0xf]
        %v3078 = vld [vmem:[%s3071 + $0x18] sm:$0xf]
        %v3079 = vld [vmem:[%s3071 + $0x1c] sm:$0xf]
        %s3080 = scalar_lea.vmem %s11, 1
        %v3081 = vld [vmem:[%s3080] sm:$0x1]
        %v3083 = vlaneseq
        %v3084 = vshrl.u32 %v3083, 7
        %v3085 = vsub.s32 0, %v3084
        %v3086 = vrot.slane %v3081, %v3085
        %v3096 = vunpack.c.l.b16 %v3072
        %v3097 = vunpack.c.l.b16 %v3073
        %v3098 = vunpack.c.l.b16 %v3074
        %v3099 = vunpack.c.l.b16 %v3075
        %v3100 = vunpack.c.l.b16 %v3076
        %v3101 = vunpack.c.l.b16 %v3077
        %v3102 = vunpack.c.l.b16 %v3078
        %v3103 = vunpack.c.l.b16 %v3079
        %v3104 = vpack.c.b16 %v3097, %v3096
        %v3105 = vpack.c.b16 %v3099, %v3098
        %v3106 = vpack.c.b16 %v3101, %v3100
        %v3107 = vpack.c.b16 %v3103, %v3102
        %v3113 = vsel %vm666, %v3069, 0
        %v3116 = vsel %vm666, %v3070, 0
        %3118 = vmatprep.subr.bf16.mxu0 0
        %3119 = vmatpush1.bf16.msra.mxu0 0
        %3120 = vmatprep.subr.bf16.mxu0 0
        %3121 = vmatpush1.bf16.msra.mxu0 0
        %3122 = vmatprep.subr.bf16.mxu0 0
        %3123 = vmatpush1.bf16.msra.mxu0 0
        %3124 = vmatprep.subr.bf16.mxu0 0
        %3125 = vmatpush1.bf16.msra.mxu0 0
        %3126 = vmatprep.subr.bf16.mxu0 0
        %3127 = vmatpush1.bf16.msra.mxu0 %v3107
        %3128 = vmatprep.subr.bf16.mxu0 0
        %3129 = vmatpush1.bf16.msra.mxu0 %v3106
        %3130 = vmatprep.subr.bf16.mxu0 0
        %3131 = vmatpush1.bf16.msra.mxu0 %v3105
        %3132 = vmatprep.subr.bf16.mxu0 0
        %3133 = vmatpush1.bf16.msra.mxu0 %v3104
        %3134 = vmatprep.subr.bf16.mxu0 0
        %3135 = vmatpush2.bf16.msra.mxu0 0
        %3136 = vmatprep.subr.bf16.mxu0 0
        %3137 = vmatpush2.bf16.msra.mxu0 0
        %3138 = vmatprep.subr.bf16.mxu0 0
        %3139 = vmatpush2.bf16.msra.mxu0 0
        %3140 = vmatprep.subr.bf16.mxu0 0
        %3141 = vmatpush2.bf16.msra.mxu0 0
        %3142 = vmatprep.subr.bf16.mxu0 0
        %3143 = vmatpush2.bf16.msra.mxu0 0
        %3144 = vmatprep.subr.bf16.mxu0 0
        %3145 = vmatpush2.bf16.msra.mxu0 0
        %3146 = vmatprep.subr.bf16.mxu0 0
        %3147 = vmatpush2.bf16.msra.mxu0 0
        %3148 = vmatprep.subr.bf16.mxu0 0
        %3149 = vmatpush2.bf16.msra.mxu0 0
        %3150 = vmatprep.mubr.bf16.mxu0 0
        %3151 = vmatmul.mubr.bf16.gmra.mxu0 %v3113
        %v3152 = vpop.f32.mrf.mxu0
        %v3153 = vadd.f32 %v3086, %v3152
        %v3154 = vpop.f32.mrf.mxu0
        %v3155 = vpop.f32.mrf.mxu0
        %v3156 = vadd.f32 %v3086, %v3155
        %v3157 = vpop.f32.mrf.mxu0
        %3158 = vmatprep.mubr.bf16.mxu0 0
        %3159 = vmatmul.mubr.bf16.gmra.mxu0 %v3116
        %v3160 = vpop.f32.mrf.mxu0
        %v3161 = vadd.f32 %v3086, %v3160
        %v3162 = vpop.f32.mrf.mxu0
        %v3163 = vpop.f32.mrf.mxu0
        %v3164 = vpop.f32.mrf.mxu0
        %3165 = vdwg.mxu0
        %v3166 = vmul.f32 %v3153, 0.5
        %v3167 = vmul.f32 %v3156, 0.5
        %v3168 = vmul.f32 %v3161, 0.5
        %v3169 = vmul.f32 %v3153, 0.70710677
        %v3170 = vmul.f32 %v3156, 0.70710677
        %v3171 = vmul.f32 %v3161, 0.70710677
        %v3172 = verf.f32.pop %v3169
        %v3173 = verf.f32.pop %v3170
        %v3174 = verf.f32.pop %v3171
        %v3175 = vadd.f32 %v3172, 1.0
        %v3176 = vadd.f32 %v3173, 1.0
        %v3177 = vadd.f32 %v3174, 1.0
        %v3178 = vmul.f32 %v3166, %v3175
        %v3179 = vmul.f32 %v3167, %v3176
        %v3180 = vmul.f32 %v3168, %v3177
        %v3181 = vpack.c.bf16 %v3179, %v3178
        %v3182 = vpack.c.bf16 %v3180, %v3180
        %s3183 = scalar_lea.vmem %s12, 64
        %v3184 = vld [vmem:[%s3183] sm:$0xf]
        %v3185 = vld [vmem:[%s3183 + $0x4] sm:$0xf]
        %v3186 = vld [vmem:[%s3183 + $0x8] sm:$0xf]
        %v3187 = vld [vmem:[%s3183 + $0xc] sm:$0xf]
        %v3188 = vld [vmem:[%s3183 + $0x10] sm:$0xf]
        %v3189 = vld [vmem:[%s3183 + $0x14] sm:$0xf]
        %v3190 = vld [vmem:[%s3183 + $0x18] sm:$0xf]
        %v3191 = vld [vmem:[%s3183 + $0x1c] sm:$0xf]
        %v3192 = vld [vmem:[%s3183 + $0x20] sm:$0xf]
        %v3193 = vld [vmem:[%s3183 + $0x24] sm:$0xf]
        %v3194 = vld [vmem:[%s3183 + $0x28] sm:$0xf]
        %v3195 = vld [vmem:[%s3183 + $0x2c] sm:$0xf]
        %v3196 = vld [vmem:[%s3183 + $0x30] sm:$0xf]
        %v3197 = vld [vmem:[%s3183 + $0x34] sm:$0xf]
        %v3198 = vld [vmem:[%s3183 + $0x38] sm:$0xf]
        %v3199 = vld [vmem:[%s3183 + $0x3c] sm:$0xf]
        %v3216 = vunpack.c.l.b16 %v3184
        %v3217 = vunpack.c.l.b16 %v3185
        %v3218 = vunpack.c.l.b16 %v3186
        %v3219 = vunpack.c.l.b16 %v3187
        %v3220 = vunpack.c.l.b16 %v3188
        %v3221 = vunpack.c.l.b16 %v3189
        %v3222 = vunpack.c.l.b16 %v3190
        %v3223 = vunpack.c.l.b16 %v3191
        %v3224 = vunpack.c.l.b16 %v3192
        %v3225 = vunpack.c.l.b16 %v3193
        %v3226 = vunpack.c.l.b16 %v3194
        %v3227 = vunpack.c.l.b16 %v3195
        %v3228 = vunpack.c.l.b16 %v3196
        %v3229 = vunpack.c.l.b16 %v3197
        %v3230 = vunpack.c.l.b16 %v3198
        %v3231 = vunpack.c.l.b16 %v3199
        %v3232 = vpack.c.b16 %v3217, %v3216
        %v3233 = vpack.c.b16 %v3219, %v3218
        %v3234 = vpack.c.b16 %v3221, %v3220
        %v3235 = vpack.c.b16 %v3223, %v3222
        %v3236 = vpack.c.b16 %v3225, %v3224
        %v3237 = vpack.c.b16 %v3227, %v3226
        %v3238 = vpack.c.b16 %v3229, %v3228
        %v3239 = vpack.c.b16 %v3231, %v3230
        %3248 = vmatprep.subr.bf16.mxu0 0
        %3249 = vmatpush1.bf16.msra.mxu0 %v3239
        %3250 = vmatprep.subr.bf16.mxu0 0
        %3251 = vmatpush1.bf16.msra.mxu0 %v3238
        %3252 = vmatprep.subr.bf16.mxu0 0
        %3253 = vmatpush1.bf16.msra.mxu0 %v3237
        %3254 = vmatprep.subr.bf16.mxu0 0
        %3255 = vmatpush1.bf16.msra.mxu0 %v3236
        %3256 = vmatprep.subr.bf16.mxu0 0
        %3257 = vmatpush1.bf16.msra.mxu0 %v3235
        %3258 = vmatprep.subr.bf16.mxu0 0
        %3259 = vmatpush1.bf16.msra.mxu0 %v3234
        %3260 = vmatprep.subr.bf16.mxu0 0
        %3261 = vmatpush1.bf16.msra.mxu0 %v3233
        %3262 = vmatprep.subr.bf16.mxu0 0
        %3263 = vmatpush1.bf16.msra.mxu0 %v3232
        %3264 = vmatprep.subr.bf16.mxu0 0
        %3265 = vmatpush2.bf16.msra.mxu0 0
        %3266 = vmatprep.subr.bf16.mxu0 0
        %3267 = vmatpush2.bf16.msra.mxu0 0
        %3268 = vmatprep.subr.bf16.mxu0 0
        %3269 = vmatpush2.bf16.msra.mxu0 0
        %3270 = vmatprep.subr.bf16.mxu0 0
        %3271 = vmatpush2.bf16.msra.mxu0 0
        %3272 = vmatprep.subr.bf16.mxu0 0
        %3273 = vmatpush2.bf16.msra.mxu0 0
        %3274 = vmatprep.subr.bf16.mxu0 0
        %3275 = vmatpush2.bf16.msra.mxu0 0
        %3276 = vmatprep.subr.bf16.mxu0 0
        %3277 = vmatpush2.bf16.msra.mxu0 0
        %3278 = vmatprep.subr.bf16.mxu0 0
        %3279 = vmatpush2.bf16.msra.mxu0 0
        %3280 = vmatprep.mubr.bf16.mxu0 0
        %3281 = vmatmul.mubr.bf16.gmra.mxu0 %v3181
        %v3282 = vpop.f32.mrf.mxu0
        %v3283 = vadd.f32 0.0, %v3282
        %v3284 = vpop.f32.mrf.mxu0
        %v3285 = vpop.f32.mrf.mxu0
        %v3286 = vpop.f32.mrf.mxu0
        %3287 = vmatprep.mubr.bf16.mxu0 0
        %3288 = vmatmul.mubr.bf16.gmra.mxu0 %v3182
        %v3289 = vpop.f32.mrf.mxu0
        %v3290 = vpop.f32.mrf.mxu0
        %v3291 = vpop.f32.mrf.mxu0
        %v3292 = vpop.f32.mrf.mxu0
        %3293 = vdwg.mxu0
        %v3294 = vadd.f32 %v3005, %v3283
        %s3295 = scalar_lea.vmem %s13, 1
        %v3296 = vld [vmem:[%s3295] sm:$0x1]
        %v3298 = vlaneseq
        %v3299 = vshrl.u32 %v3298, 7
        %v3300 = vsub.s32 0, %v3299
        %v3301 = vrot.slane %v3296, %v3300
        %v3303 = vadd.f32 %v3294, %v3301
        %v3304 = vld [vmem:[%s14] sm:$0x1]
        %v3305 = vld [vmem:[%s15] sm:$0x1]
        %vm3306 = vcmask 516096
        %v3307 = vsel %vm3306, %v3303, 0.0
        %3308 = vadd.xlane.f32.xlu0 %v3307
        %v3309 = vpop.xlane.xlu0 %3308
        %v3310 = vmul.f32 %v3309, %v676
        %v3311 = vsub.f32 %v3303, %v3310
        %v3312 = vmul.f32 %v3311, %v3311
        %v3313 = vsel %vm3306, %v3312, 0.0
        %3314 = vadd.xlane.f32.xlu0 %v3313
        %v3315 = vpop.xlane.xlu0 %3314
        %v3316 = vmul.f32 %v3315, %v676
        %v3317 = vadd.f32 %v3316, 1e-05
        %v3318 = vrsqrt.pop %v3317
        %v3319 = vmul.f32 %v3311, %v3318
        %v3320 = vmul.f32 %v3319, %v3304
        %v3321 = vadd.f32 %v3320, %v3305
        %v3322 = vpack.c.bf16 %v3321, %v3321
        %v3323 = vld [vmem:[%s16] sm:$0xf]
        %v3324 = vld [vmem:[%s16 + $0x4] sm:$0xf]
        %v3325 = vld [vmem:[%s16 + $0x8] sm:$0xf]
        %v3326 = vld [vmem:[%s16 + $0xc] sm:$0xf]
        %v3327 = vld [vmem:[%s16 + $0x10] sm:$0xf]
        %v3328 = vld [vmem:[%s16 + $0x14] sm:$0xf]
        %v3329 = vld [vmem:[%s16 + $0x18] sm:$0xf]
        %v3330 = vld [vmem:[%s16 + $0x1c] sm:$0xf]
        %v3331 = vld [vmem:[%s17] sm:$0x1]
        %v3340 = vunpack.c.l.b16 %v3323
        %v3341 = vunpack.c.l.b16 %v3324
        %v3342 = vunpack.c.l.b16 %v3325
        %v3343 = vunpack.c.l.b16 %v3326
        %v3344 = vunpack.c.l.b16 %v3327
        %v3345 = vunpack.c.l.b16 %v3328
        %v3346 = vunpack.c.l.b16 %v3329
        %v3347 = vunpack.c.l.b16 %v3330
        %v3348 = vpack.c.b16 %v3341, %v3340
        %v3349 = vpack.c.b16 %v3343, %v3342
        %v3350 = vpack.c.b16 %v3345, %v3344
        %v3351 = vpack.c.b16 %v3347, %v3346
        %v3357 = vsel %vm666, %v3322, 0
        %3359 = vmatprep.subr.bf16.mxu0 0
        %3360 = vmatpush1.bf16.msra.mxu0 0
        %3361 = vmatprep.subr.bf16.mxu0 0
        %3362 = vmatpush1.bf16.msra.mxu0 0
        %3363 = vmatprep.subr.bf16.mxu0 0
        %3364 = vmatpush1.bf16.msra.mxu0 0
        %3365 = vmatprep.subr.bf16.mxu0 0
        %3366 = vmatpush1.bf16.msra.mxu0 0
        %3367 = vmatprep.subr.bf16.mxu0 0
        %3368 = vmatpush1.bf16.msra.mxu0 %v3351
        %3369 = vmatprep.subr.bf16.mxu0 0
        %3370 = vmatpush1.bf16.msra.mxu0 %v3350
        %3371 = vmatprep.subr.bf16.mxu0 0
        %3372 = vmatpush1.bf16.msra.mxu0 %v3349
        %3373 = vmatprep.subr.bf16.mxu0 0
        %3374 = vmatpush1.bf16.msra.mxu0 %v3348
        %3375 = vmatprep.subr.bf16.mxu0 0
        %3376 = vmatpush2.bf16.msra.mxu0 0
        %3377 = vmatprep.subr.bf16.mxu0 0
        %3378 = vmatpush2.bf16.msra.mxu0 0
        %3379 = vmatprep.subr.bf16.mxu0 0
        %3380 = vmatpush2.bf16.msra.mxu0 0
        %3381 = vmatprep.subr.bf16.mxu0 0
        %3382 = vmatpush2.bf16.msra.mxu0 0
        %3383 = vmatprep.subr.bf16.mxu0 0
        %3384 = vmatpush2.bf16.msra.mxu0 0
        %3385 = vmatprep.subr.bf16.mxu0 0
        %3386 = vmatpush2.bf16.msra.mxu0 0
        %3387 = vmatprep.subr.bf16.mxu0 0
        %3388 = vmatpush2.bf16.msra.mxu0 0
        %3389 = vmatprep.subr.bf16.mxu0 0
        %3390 = vmatpush2.bf16.msra.mxu0 0
        %3391 = vmatprep.mubr.bf16.mxu0 0
        %3392 = vmatmul.mubr.bf16.gmra.mxu0 %v3357
        %v3393 = vpop.f32.mrf.mxu0
        %v3394 = vadd.f32 %v3331, %v3393
        %v3395 = vpop.f32.mrf.mxu0
        %v3396 = vpop.f32.mrf.mxu0
        %v3397 = vpop.f32.mrf.mxu0
        %3398 = vdwg.mxu0
        %3399 = vst [vmem:[%s567] sm:$0x1] %v3394
        %s3400 = sand.u32 %s423, 1
        %s3401 = scalar_lea.sflag [#allocation3], %s3400
        %s3402 = sand.u32 %s423, 1
        %s3403 = scalar_lea.vmem [#allocation2], %s3402
        // Predicated region
        $region93: #{vit_forward.1} parent=91 // pred_check
          %p3404 = pneg %p433
        $region94: #{vit_forward.1} parent=91 // pred_check_branch
          %3406 = sbr.rel (%p3404) target = $region96
        $region95: #{vit_forward.1} parent=91 // pred_region
          %s3408 = ssub.s32 16, 16
          %3409 = vsyncadd %s3401, %s3408
          %s3410 = smul.addr %s32, 16
          %s3411 = scalar_lea.hbm %s18, %s3410
          %s3413 = sshll.u32 %s3403, 4
          %s3414 = int_to_ptr.vmem [resolvable:$true] %s3413
          %3416 = dma.vmem_to_hbm [thread:$0]  %s3414, 16, %s3411, %s3401
        $region96: #{vit_forward.1} parent=91 // pred_fallthru
          _
      $region92: #{vit_forward.1} parent=5 // pred_fallthru
        _
      %p3417 = scmp.le.s32.totalorder 2, %s27
      // Predicated region
      $region97: #{vit_forward.1} parent=5 // pred_check
        %p3418 = pneg %p3417
      $region98: #{vit_forward.1} parent=5 // pred_check_branch
        %3420 = sbr.rel (%p3418) target = $region100
      $region99: #{vit_forward.1} parent=5 // pred_region
        %s3421 = ssub.s32 %s27, 2
        // Predicated region
        $region101: #{vit_forward.1} parent=99 // pred_check
          %p3422 = pneg %p439
        $region102: #{vit_forward.1} parent=99 // pred_check_branch
          %3424 = sbr.rel (%p3422) target = $region104
        $region103: #{vit_forward.1} parent=99 // pred_region
          %s3425 = sand.u32 %s424, 1
          %s3426 = scalar_lea.sflag [#allocation3], %s3425
          %s3427 = sand.u32 %s424, 1
          %s3428 = scalar_lea.vmem [#allocation2], %s3427
          %3429 = dma.done %s3426, 16
        $region104: #{vit_forward.1} parent=99 // pred_fallthru
          _
      $region100: #{vit_forward.1} parent=5 // pred_fallthru
        _
    $region6: #{vit_forward.1} parent=1 // loop_footer
      %s31 = sadd.s32 1, %s27
    $region7: #{vit_forward.1} parent=1 // loop_footer_branch
      %26 = sbr.rel target = $region3
    $region8: #{vit_forward.1} parent=1 // loop_exit
      _
    %3430 = vsyncpa [#allocation3], 1
    %s3431 = scalar_lea.sflag [#allocation3], 1
    %3432 = vsyncpa %s3431, 1

</llo_original>
